<compile_context>
chip_gen: v5e
topology: v5e:2x2
jax: 0.10.0
libtpu: 0.0.40
codegen_flags: <defaults>
</compile_context>

<pallas_src>
import jax
import jax.numpy as jnp
from jax.experimental import pallas as pl
from jax.experimental.pallas import tpu as pltpu

# Model hyperparameters (defaults of GaussianARStepModel)
CHANNELS = 16
KERNEL = 13
N_LAYERS = 4
C2 = 2 * CHANNELS        # fused (mu + logsig) channel count
OUT_PAD = 8              # output-conv rows padded to one sublane tile


def gaussian_ar_step_kernel(ab_ref, x_ref, y_ref,
                            w_in_ref, b_in_ref, wb_ref, bb_ref,
                            w_out_ref, b_out_ref,
                            mu_out_ref, logsig_out_ref,
                            dflat_ref, h_ref, im2col_ref):
    Bt, L = x_ref.shape
    BtL = Bt * L
    a = ab_ref[0, 0]
    b = ab_ref[0, 1]
    mm_dtype = im2col_ref.dtype   # bf16 (fast path) or f32 (exact path)

    # Hoisted iotas (one per shape, reused everywhere).
    # lane_mod = position within each lane-packed row (= lane % L).
    lane_mod = jax.lax.broadcasted_iota(jnp.int32, (1, BtL), 1) % L
    idx_row = jax.lax.broadcasted_iota(jnp.int32, (Bt, L), 1)

    # diff = y - a*x, then causal shift-right-by-1 (zero fill), whole block.
    x_blk = x_ref[...]
    diff = y_ref[...] - a * x_blk
    diff = jnp.where(idx_row >= 1, pltpu.roll(diff, shift=1, axis=1), 0.0)

    # Pack rows into lanes: row r -> lanes [r*L, (r+1)*L).
    for r in range(Bt):
        dflat_ref[0:1, r * L:(r + 1) * L] = diff[r:r + 1, :]

    # Fused input 1x1 conv (1 -> 2C) + ReLU.  From here on h >= 0 (input ReLU
    # plus residual adds of ReLU'd terms), so the per-layer relu(x) of the
    # PyTorch ResBlock input is a no-op and is dropped.
    h_ref[...] = jnp.maximum(w_in_ref[...] * dflat_ref[...] + b_in_ref[...], 0.0)

    for layer in range(N_LAYERS):
        dil = 2 ** layer
        # Cast activations once per layer; taps roll/mask the packed copy.
        h_mm = h_ref[...].astype(mm_dtype)
        for k in range(KERNEL):
            s = (KERNEL - 1 - k) * dil
            row = slice(k * C2, (k + 1) * C2)
            if s == 0:
                im2col_ref[row, :] = h_mm
            elif s >= L:
                im2col_ref[row, :] = jnp.zeros_like(h_mm)
            else:
                # Global lane roll; lanes that wrapped across a row boundary
                # are exactly the first s positions of each row -> masked to 0
                # (matches causal zero padding).
                rolled = pltpu.roll(h_mm, shift=s, axis=1)
                im2col_ref[row, :] = jnp.where(
                    lane_mod >= s, rolled, jnp.zeros_like(rolled))
        acc = jnp.dot(wb_ref[layer],              # (2C, K*2C)   mm_dtype
                      im2col_ref[...],            # (K*2C, Bt*L) mm_dtype
                      preferred_element_type=jnp.float32)
        h_ref[...] = h_ref[...] + jnp.maximum(acc + bb_ref[layer], 0.0)

    # Fused output 1x1 conv as one MXU dot: row 0 -> mu_adj, row 1 -> log_sigma
    # (rows 2..7 are zero padding and discarded).
    out2 = jnp.dot(w_out_ref[...], h_ref[...],
                   preferred_element_type=jnp.float32) + b_out_ref[...]
    for r in range(Bt):
        sl = slice(r * L, (r + 1) * L)
        mu_out_ref[r:r + 1, :] = b * x_blk[r:r + 1, :] + out2[0:1, sl]
        logsig_out_ref[r:r + 1, :] = out2[1:2, sl]


# ---------------- wrapper ----------------
def _is_multi_tensorcore():
    """True only on chips with >1 TensorCore (v7x).  Perf-only heuristic."""
    try:
        dev = jax.devices()[0]
        kind = (getattr(dev, "device_kind", "") or "").lower()
        ncores = getattr(dev, "num_cores", 1) or 1
        return ncores > 1 or "v7" in kind
    except Exception:
        return False


def _pick_row_tile(B, multi_tc):
    """Rows per grid step.

    Single-TC chips (v5e/v6e): the largest sublane-dense tile (fewest grid
    steps).  Multi-TC chips (v7x): keep >= 2 grid steps so both TensorCores
    get work under the 'parallel' grid axis.
    """
    for bt in (8, 4, 2, 1):
        if B % bt:
            continue
        if multi_tc and bt == B and B > 1:
            continue
        return bt
    return 1


def _fuse_causal_stack_params(pmu, pls, matmul_dtype):
    """Fuse mu/logsig stacks into one 2C-channel stack with block-diag body weights."""
    C = CHANNELS
    zero_cc = jnp.zeros((N_LAYERS, KERNEL, C, C), jnp.float32)

    w_in = jnp.concatenate([pmu["w_in"], pls["w_in"]], axis=0)          # (2C, 1)
    b_in = jnp.concatenate([pmu["b_in"], pls["b_in"]], axis=0)          # (2C, 1)

    top = jnp.concatenate([pmu["w_body"], zero_cc], axis=3)             # (NL,K,C,2C)
    bot = jnp.concatenate([zero_cc, pls["w_body"]], axis=3)             # (NL,K,C,2C)
    wb = jnp.concatenate([top, bot], axis=2)                            # (NL,K,2C,2C)
    # im2col weight layout: (NL, 2C_out, K*2C_in); lane-dense last dim = 416.
    wb = jnp.transpose(wb, (0, 2, 1, 3)).reshape(N_LAYERS, C2, KERNEL * C2)
    wb = wb.astype(matmul_dtype)

    b_body = jnp.concatenate([pmu["b_body"], pls["b_body"]], axis=1)    # (NL, 2C, 1)

    w_out = jnp.zeros((OUT_PAD, C2), jnp.float32)
    w_out = w_out.at[0, :C].set(pmu["w_out"][:, 0])
    w_out = w_out.at[1, C:].set(pls["w_out"][:, 0])
    b_out = jnp.zeros((OUT_PAD, 1), jnp.float32)
    b_out = b_out.at[0, 0].set(pmu["b_out"][0, 0])
    b_out = b_out.at[1, 0].set(pls["b_out"][0, 0])
    return [w_in, b_in, wb, b_body, w_out, b_out]


def gaussian_ar_step(x_t, y, params, matmul_dtype=jnp.bfloat16):
    """x_t, y: (B, L) float32.  Returns (mu, log_sigma), each (B, L)."""
    B, L = x_t.shape
    a = jax.nn.sigmoid(params["raw_a"])
    b = jax.nn.sigmoid(params["raw_b"])
    ab = jnp.stack([a, b]).reshape(1, 2).astype(jnp.float32)

    weights = _fuse_causal_stack_params(params["mu"], params["logsig"], matmul_dtype)

    Bt = _pick_row_tile(B, _is_multi_tensorcore())
    grid = (B // Bt,)

    smem_spec = pl.BlockSpec((1, 2), lambda i: (0, 0),
                             memory_space=pltpu.MemorySpace.SMEM)
    row_spec = pl.BlockSpec((Bt, L), lambda i: (i, 0))

    def full_spec(arr):
        nd = arr.ndim
        return pl.BlockSpec(arr.shape, lambda i, _nd=nd: (0,) * _nd)

    in_specs = [smem_spec, row_spec, row_spec] + [full_spec(w) for w in weights]
    out_specs = (row_spec, row_spec)
    out_shape = (jax.ShapeDtypeStruct((B, L), jnp.float32),
                 jax.ShapeDtypeStruct((B, L), jnp.float32))

    return pl.pallas_call(
        gaussian_ar_step_kernel,
        out_shape=out_shape,
        grid=grid,
        in_specs=in_specs,
        out_specs=out_specs,
        scratch_shapes=[
            pltpu.VMEM((1, Bt * L), jnp.float32),             # lane-packed diff
            pltpu.VMEM((C2, Bt * L), jnp.float32),            # f32 master h
            pltpu.VMEM((KERNEL * C2, Bt * L), matmul_dtype),  # im2col (mm dtype)
        ],
        compiler_params=pltpu.CompilerParams(
            dimension_semantics=("parallel",)),
    )(ab, x_t, y, *weights)


# ---------------- deterministic parameter init (synthetic, no checkpoint) ----------------
def init_causal_stack_params(key, channels=CHANNELS, kernel=KERNEL, n_layers=N_LAYERS):
    keys = jax.random.split(key, 6)

    def u(k, shape, fan_in):
        bound = 1.0 / jnp.sqrt(jnp.float32(fan_in))
        return jax.random.uniform(k, shape, jnp.float32, -bound, bound)

    return {
        # conv1d(1, C, 1): weight (C_out=C, C_in=1, K=1) stored as (C, 1)
        "w_in": u(keys[0], (channels, 1), 1),
        "b_in": u(keys[1], (channels, 1), 1),
        # conv1d(C, C, K) per layer, stored as (n_layers, K, C_out, C_in)
        "w_body": u(keys[2], (n_layers, kernel, channels, channels), channels * kernel),
        "b_body": u(keys[3], (n_layers, channels, 1), channels * kernel),
        # conv1d(C, 1, 1): weight (1, C, 1) stored as (C, 1)
        "w_out": u(keys[4], (channels, 1), channels),
        "b_out": u(keys[5], (1, 1), channels),
    }


# ---------------- pure-JAX reference (for correctness check) ----------------
def _ref_causal_conv(x, w, b, dil):
    # x: (B, Cin, L); w: (K, Cout, Cin); b: (Cout,)
    B, Cin, L = x.shape
    K, Cout, _ = w.shape
    out = jnp.zeros((B, Cout, L), jnp.float32)
    for k in range(K):
        s = (K - 1 - k) * dil
        if s >= L:
            continue
        xs = jnp.pad(x, ((0, 0), (0, 0), (s, 0)))[:, :, :L]
        out = out + jnp.einsum("oc,bcl->bol", w[k], xs)
    return out + b.reshape(1, Cout, 1)


def _ref_stack(x1, p):
    h = _ref_causal_conv(x1, p["w_in"].reshape(1, CHANNELS, 1), p["b_in"][:, 0], 1)
    h = jax.nn.relu(h)
    for layer in range(N_LAYERS):
        c = _ref_causal_conv(jax.nn.relu(h), p["w_body"][layer],
                             p["b_body"][layer][:, 0], 2 ** layer)
        h = h + jax.nn.relu(c)
    out = _ref_causal_conv(jax.nn.relu(h), p["w_out"][:, 0].reshape(1, 1, CHANNELS),
                           p["b_out"].reshape(1), 1)
    return out[:, 0, :]


def _ref_forward(x_t, y, params):
    a = jax.nn.sigmoid(params["raw_a"])
    b = jax.nn.sigmoid(params["raw_b"])
    diff = y - a * x_t
    diff_shift = jnp.pad(diff, ((0, 0), (1, 0)))[:, :-1]
    ds = diff_shift[:, None, :]
    return b * x_t + _ref_stack(ds, params["mu"]), _ref_stack(ds, params["logsig"])


if __name__ == "__main__":
    key = jax.random.PRNGKey(0)
    k_x, k_y, k_mu, k_ls = jax.random.split(key, 4)

    B, L = 2, 128
    x_t = jax.random.normal(k_x, (B, L), jnp.float32)
    y = jax.random.normal(k_y, (B, L), jnp.float32)

    params = {
        "raw_a": jnp.float32(-1.0),   # nn.Parameter(torch.tensor(-1.0))
        "raw_b": jnp.float32(1.0),    # nn.Parameter(torch.tensor(1.0))
        "mu": init_causal_stack_params(k_mu),
        "logsig": init_causal_stack_params(k_ls),
    }

    mu_ref, ls_ref = _ref_forward(x_t, y, params)

    # f32-operand path: structurally exact vs. the reference.
    mu32, ls32 = gaussian_ar_step(x_t, y, params, matmul_dtype=jnp.float32)
    jax.block_until_ready((mu32, ls32))
    assert jnp.allclose(mu32, mu_ref, atol=1e-3, rtol=1e-3)
    assert jnp.allclose(ls32, ls_ref, atol=1e-3, rtol=1e-3)

    # default fast path: bf16 MXU operands with f32 accumulation -> tolerance
    # loosened to cover bf16 operand rounding (log_sigma consumers note:
    # ~2e-2 absolute error before the downstream exp()).
    mu, log_sigma = gaussian_ar_step(x_t, y, params)
    jax.block_until_ready((mu, log_sigma))
    assert jnp.allclose(mu, mu_ref, atol=2e-2, rtol=2e-2)
    assert jnp.allclose(log_sigma, ls_ref, atol=2e-2, rtol=2e-2)

    print("KERNEL_OK")
</pallas_src>

<mosaic_0001>
module attributes {stable_mosaic.version = 11 : i64} {
  func.func @gaussian_ar_step_kernel(%arg0: i32, %arg1: memref<1x2xf32, #tpu.memory_space<smem>>, %arg2: memref<2x128xf32, #tpu.memory_space<vmem>>, %arg3: memref<2x128xf32, #tpu.memory_space<vmem>>, %arg4: memref<32x1xf32, #tpu.memory_space<vmem>>, %arg5: memref<32x1xf32, #tpu.memory_space<vmem>>, %arg6: memref<4x32x416xf32, #tpu.memory_space<vmem>>, %arg7: memref<4x32x1xf32, #tpu.memory_space<vmem>>, %arg8: memref<8x32xf32, #tpu.memory_space<vmem>>, %arg9: memref<8x1xf32, #tpu.memory_space<vmem>>, %arg10: memref<2x128xf32, #tpu.memory_space<vmem>>, %arg11: memref<2x128xf32, #tpu.memory_space<vmem>>, %arg12: memref<1x256xf32, #tpu.memory_space<vmem>>, %arg13: memref<32x256xf32, #tpu.memory_space<vmem>>, %arg14: memref<416x256xf32, #tpu.memory_space<vmem>>) attributes {dimension_semantics = [#tpu.dimension_semantics<parallel>], iteration_bounds = array<i64: 1>, scalar_prefetch = 0 : i64, scratch_operands = 3 : i64, tpu.core_type = #tpu.core_type<tc>, window_params = [{transform_indices = @transform_0, window_bounds = array<i64: 1, 2>}, {transform_indices = @transform_1, window_bounds = array<i64: 2, 128>}, {transform_indices = @transform_2, window_bounds = array<i64: 2, 128>}, {pipeline_mode = #tpu.pipeline_mode<synchronous>, transform_indices = @transform_3, window_bounds = array<i64: 32, 1>}, {pipeline_mode = #tpu.pipeline_mode<synchronous>, transform_indices = @transform_4, window_bounds = array<i64: 32, 1>}, {pipeline_mode = #tpu.pipeline_mode<synchronous>, transform_indices = @transform_5, window_bounds = array<i64: 4, 32, 416>}, {pipeline_mode = #tpu.pipeline_mode<synchronous>, transform_indices = @transform_6, window_bounds = array<i64: 4, 32, 1>}, {pipeline_mode = #tpu.pipeline_mode<synchronous>, transform_indices = @transform_7, window_bounds = array<i64: 8, 32>}, {pipeline_mode = #tpu.pipeline_mode<synchronous>, transform_indices = @transform_8, window_bounds = array<i64: 8, 1>}, {transform_indices = @transform_9, window_bounds = array<i64: 2, 128>}, {transform_indices = @transform_10, window_bounds = array<i64: 2, 128>}]} {
    %c0 = arith.constant 0 : index
    %c0_0 = arith.constant 0 : index
    %0 = memref.load %arg1[%c0, %c0_0] : memref<1x2xf32, #tpu.memory_space<smem>>
    %c0_1 = arith.constant 0 : index
    %c1 = arith.constant 1 : index
    %1 = memref.load %arg1[%c0_1, %c1] : memref<1x2xf32, #tpu.memory_space<smem>>
    %2 = tpu.iota {dimensions = array<i32: 1>} : vector<1x256xi32>
    %c128_i32 = arith.constant 128 : i32
    %c0_i32 = arith.constant 0 : i32
    %3 = arith.cmpi eq, %c128_i32, %c0_i32 : i32
    %c1_i32 = arith.constant 1 : i32
    %4 = arith.select %3, %c1_i32, %c128_i32 : i32
    %5 = vector.broadcast %4 : i32 to vector<1x256xi32>
    %6 = arith.remsi %2, %5 : vector<1x256xi32>
    %c0_i32_2 = arith.constant 0 : i32
    %7 = vector.broadcast %c0_i32_2 : i32 to vector<1x256xi32>
    %8 = arith.cmpi ne, %6, %7 : vector<1x256xi32>
    %c0_i32_3 = arith.constant 0 : i32
    %9 = vector.broadcast %c0_i32_3 : i32 to vector<1x256xi32>
    %10 = arith.cmpi slt, %6, %9 : vector<1x256xi32>
    %c0_i32_4 = arith.constant 0 : i32
    %11 = arith.cmpi slt, %4, %c0_i32_4 : i32
    %12 = vector.broadcast %11 : i1 to vector<1x256xi1>
    %13 = vector.broadcast %12 : vector<1x256xi1> to vector<1x256xi1>
    %14 = arith.xori %10, %13 : vector<1x256xi1>
    %15 = arith.andi %14, %8 : vector<1x256xi1>
    %16 = vector.broadcast %4 : i32 to vector<1x256xi32>
    %17 = arith.addi %6, %16 : vector<1x256xi32>
    %18 = arith.select %15, %17, %6 : vector<1x256xi1>, vector<1x256xi32>
    %19 = tpu.iota {dimensions = array<i32: 1>} : vector<2x128xi32>
    %c0_5 = arith.constant 0 : index
    %c0_6 = arith.constant 0 : index
    %20 = vector.load %arg2[%c0_5, %c0_6] : memref<2x128xf32, #tpu.memory_space<vmem>>, vector<2x128xf32>
    %c0_7 = arith.constant 0 : index
    %c0_8 = arith.constant 0 : index
    %21 = vector.load %arg3[%c0_7, %c0_8] : memref<2x128xf32, #tpu.memory_space<vmem>>, vector<2x128xf32>
    %22 = vector.broadcast %0 : f32 to vector<2x128xf32>
    %23 = arith.mulf %22, %20 : vector<2x128xf32>
    %24 = arith.subf %21, %23 : vector<2x128xf32>
    %c1_i32_9 = arith.constant 1 : i32
    %25 = vector.broadcast %c1_i32_9 : i32 to vector<2x128xi32>
    %26 = arith.cmpi sge, %19, %25 : vector<2x128xi32>
    %c1_i32_10 = arith.constant 1 : i32
    %27 = tpu.dynamic_rotate %24 by %c1_i32_10 dim 1 : vector<2x128xf32>, i32 -> vector<2x128xf32>
    %cst = arith.constant 0.000000e+00 : f32
    %28 = vector.broadcast %cst : f32 to vector<2x128xf32>
    %29 = arith.select %26, %27, %28 : vector<2x128xi1>, vector<2x128xf32>
    %30 = vector.extract_strided_slice %29 {offsets = [0, 0], sizes = [1, 128], strides = [1, 1]} : vector<2x128xf32> to vector<1x128xf32>
    %c0_11 = arith.constant 0 : index
    %c0_12 = arith.constant 0 : index
    %31 = vector.load %arg12[%c0_11, %c0_12] : memref<1x256xf32, #tpu.memory_space<vmem>>, vector<1x128xf32>
    tpu.vector_store %arg12[%c0_11, %c0_12], %30 {strides = array<i32>} : memref<1x256xf32, #tpu.memory_space<vmem>>, vector<1x128xf32>,
    %32 = vector.extract_strided_slice %29 {offsets = [1, 0], sizes = [1, 128], strides = [1, 1]} : vector<2x128xf32> to vector<1x128xf32>
    %c0_13 = arith.constant 0 : index
    %c128 = arith.constant 128 : index
    %33 = vector.load %arg12[%c0_13, %c128] : memref<1x256xf32, #tpu.memory_space<vmem>>, vector<1x128xf32>
    tpu.vector_store %arg12[%c0_13, %c128], %32 {strides = array<i32>} : memref<1x256xf32, #tpu.memory_space<vmem>>, vector<1x128xf32>,
    %c0_14 = arith.constant 0 : index
    %c0_15 = arith.constant 0 : index
    %34 = vector.load %arg4[%c0_14, %c0_15] : memref<32x1xf32, #tpu.memory_space<vmem>>, vector<32x1xf32>
    %c0_16 = arith.constant 0 : index
    %c0_17 = arith.constant 0 : index
    %35 = vector.load %arg12[%c0_16, %c0_17] : memref<1x256xf32, #tpu.memory_space<vmem>>, vector<1x256xf32>
    %36 = vector.broadcast %34 : vector<32x1xf32> to vector<32x256xf32>
    %37 = vector.broadcast %35 : vector<1x256xf32> to vector<32x256xf32>
    %38 = arith.mulf %36, %37 : vector<32x256xf32>
    %c0_18 = arith.constant 0 : index
    %c0_19 = arith.constant 0 : index
    %39 = vector.load %arg5[%c0_18, %c0_19] : memref<32x1xf32, #tpu.memory_space<vmem>>, vector<32x1xf32>
    %40 = vector.broadcast %39 : vector<32x1xf32> to vector<32x256xf32>
    %41 = arith.addf %38, %40 : vector<32x256xf32>
    %cst_20 = arith.constant 0.000000e+00 : f32
    %42 = vector.broadcast %cst_20 : f32 to vector<32x256xf32>
    %43 = arith.maximumf %41, %42 : vector<32x256xf32>
    %c0_21 = arith.constant 0 : index
    %c0_22 = arith.constant 0 : index
    %44 = vector.load %arg13[%c0_21, %c0_22] : memref<32x256xf32, #tpu.memory_space<vmem>>, vector<32x256xf32>
    tpu.vector_store %arg13[%c0_21, %c0_22], %43 {strides = array<i32>} : memref<32x256xf32, #tpu.memory_space<vmem>>, vector<32x256xf32>,
    %c0_23 = arith.constant 0 : index
    %c0_24 = arith.constant 0 : index
    %45 = vector.load %arg13[%c0_23, %c0_24] : memref<32x256xf32, #tpu.memory_space<vmem>>, vector<32x256xf32>
    %c12_i32 = arith.constant 12 : i32
    %46 = tpu.dynamic_rotate %45 by %c12_i32 dim 1 : vector<32x256xf32>, i32 -> vector<32x256xf32>
    %c12_i32_25 = arith.constant 12 : i32
    %47 = vector.broadcast %c12_i32_25 : i32 to vector<1x256xi32>
    %48 = arith.cmpi sge, %18, %47 : vector<1x256xi32>
    %cst_26 = arith.constant 0.000000e+00 : f32
    %49 = vector.broadcast %cst_26 : f32 to vector<32x256xf32>
    %50 = vector.shape_cast %48 : vector<1x256xi1> to vector<1x256xi1>
    %51 = vector.broadcast %50 : vector<1x256xi1> to vector<32x256xi1>
    %52 = arith.select %51, %46, %49 : vector<32x256xi1>, vector<32x256xf32>
    %c0_27 = arith.constant 0 : index
    %c0_28 = arith.constant 0 : index
    %53 = vector.load %arg14[%c0_27, %c0_28] : memref<416x256xf32, #tpu.memory_space<vmem>>, vector<32x256xf32>
    tpu.vector_store %arg14[%c0_27, %c0_28], %52 {strides = array<i32>} : memref<416x256xf32, #tpu.memory_space<vmem>>, vector<32x256xf32>,
    %c11_i32 = arith.constant 11 : i32
    %54 = tpu.dynamic_rotate %45 by %c11_i32 dim 1 : vector<32x256xf32>, i32 -> vector<32x256xf32>
    %c11_i32_29 = arith.constant 11 : i32
    %55 = vector.broadcast %c11_i32_29 : i32 to vector<1x256xi32>
    %56 = arith.cmpi sge, %18, %55 : vector<1x256xi32>
    %cst_30 = arith.constant 0.000000e+00 : f32
    %57 = vector.broadcast %cst_30 : f32 to vector<32x256xf32>
    %58 = vector.shape_cast %56 : vector<1x256xi1> to vector<1x256xi1>
    %59 = vector.broadcast %58 : vector<1x256xi1> to vector<32x256xi1>
    %60 = arith.select %59, %54, %57 : vector<32x256xi1>, vector<32x256xf32>
    %c32 = arith.constant 32 : index
    %c0_31 = arith.constant 0 : index
    %61 = vector.load %arg14[%c32, %c0_31] : memref<416x256xf32, #tpu.memory_space<vmem>>, vector<32x256xf32>
    tpu.vector_store %arg14[%c32, %c0_31], %60 {strides = array<i32>} : memref<416x256xf32, #tpu.memory_space<vmem>>, vector<32x256xf32>,
    %c10_i32 = arith.constant 10 : i32
    %62 = tpu.dynamic_rotate %45 by %c10_i32 dim 1 : vector<32x256xf32>, i32 -> vector<32x256xf32>
    %c10_i32_32 = arith.constant 10 : i32
    %63 = vector.broadcast %c10_i32_32 : i32 to vector<1x256xi32>
    %64 = arith.cmpi sge, %18, %63 : vector<1x256xi32>
    %cst_33 = arith.constant 0.000000e+00 : f32
    %65 = vector.broadcast %cst_33 : f32 to vector<32x256xf32>
    %66 = vector.shape_cast %64 : vector<1x256xi1> to vector<1x256xi1>
    %67 = vector.broadcast %66 : vector<1x256xi1> to vector<32x256xi1>
    %68 = arith.select %67, %62, %65 : vector<32x256xi1>, vector<32x256xf32>
    %c64 = arith.constant 64 : index
    %c0_34 = arith.constant 0 : index
    %69 = vector.load %arg14[%c64, %c0_34] : memref<416x256xf32, #tpu.memory_space<vmem>>, vector<32x256xf32>
    tpu.vector_store %arg14[%c64, %c0_34], %68 {strides = array<i32>} : memref<416x256xf32, #tpu.memory_space<vmem>>, vector<32x256xf32>,
    %c9_i32 = arith.constant 9 : i32
    %70 = tpu.dynamic_rotate %45 by %c9_i32 dim 1 : vector<32x256xf32>, i32 -> vector<32x256xf32>
    %c9_i32_35 = arith.constant 9 : i32
    %71 = vector.broadcast %c9_i32_35 : i32 to vector<1x256xi32>
    %72 = arith.cmpi sge, %18, %71 : vector<1x256xi32>
    %cst_36 = arith.constant 0.000000e+00 : f32
    %73 = vector.broadcast %cst_36 : f32 to vector<32x256xf32>
    %74 = vector.shape_cast %72 : vector<1x256xi1> to vector<1x256xi1>
    %75 = vector.broadcast %74 : vector<1x256xi1> to vector<32x256xi1>
    %76 = arith.select %75, %70, %73 : vector<32x256xi1>, vector<32x256xf32>
    %c96 = arith.constant 96 : index
    %c0_37 = arith.constant 0 : index
    %77 = vector.load %arg14[%c96, %c0_37] : memref<416x256xf32, #tpu.memory_space<vmem>>, vector<32x256xf32>
    tpu.vector_store %arg14[%c96, %c0_37], %76 {strides = array<i32>} : memref<416x256xf32, #tpu.memory_space<vmem>>, vector<32x256xf32>,
    %c8_i32 = arith.constant 8 : i32
    %78 = tpu.dynamic_rotate %45 by %c8_i32 dim 1 : vector<32x256xf32>, i32 -> vector<32x256xf32>
    %c8_i32_38 = arith.constant 8 : i32
    %79 = vector.broadcast %c8_i32_38 : i32 to vector<1x256xi32>
    %80 = arith.cmpi sge, %18, %79 : vector<1x256xi32>
    %cst_39 = arith.constant 0.000000e+00 : f32
    %81 = vector.broadcast %cst_39 : f32 to vector<32x256xf32>
    %82 = vector.shape_cast %80 : vector<1x256xi1> to vector<1x256xi1>
    %83 = vector.broadcast %82 : vector<1x256xi1> to vector<32x256xi1>
    %84 = arith.select %83, %78, %81 : vector<32x256xi1>, vector<32x256xf32>
    %c128_40 = arith.constant 128 : index
    %c0_41 = arith.constant 0 : index
    %85 = vector.load %arg14[%c128_40, %c0_41] : memref<416x256xf32, #tpu.memory_space<vmem>>, vector<32x256xf32>
    tpu.vector_store %arg14[%c128_40, %c0_41], %84 {strides = array<i32>} : memref<416x256xf32, #tpu.memory_space<vmem>>, vector<32x256xf32>,
    %c7_i32 = arith.constant 7 : i32
    %86 = tpu.dynamic_rotate %45 by %c7_i32 dim 1 : vector<32x256xf32>, i32 -> vector<32x256xf32>
    %c7_i32_42 = arith.constant 7 : i32
    %87 = vector.broadcast %c7_i32_42 : i32 to vector<1x256xi32>
    %88 = arith.cmpi sge, %18, %87 : vector<1x256xi32>
    %cst_43 = arith.constant 0.000000e+00 : f32
    %89 = vector.broadcast %cst_43 : f32 to vector<32x256xf32>
    %90 = vector.shape_cast %88 : vector<1x256xi1> to vector<1x256xi1>
    %91 = vector.broadcast %90 : vector<1x256xi1> to vector<32x256xi1>
    %92 = arith.select %91, %86, %89 : vector<32x256xi1>, vector<32x256xf32>
    %c160 = arith.constant 160 : index
    %c0_44 = arith.constant 0 : index
    %93 = vector.load %arg14[%c160, %c0_44] : memref<416x256xf32, #tpu.memory_space<vmem>>, vector<32x256xf32>
    tpu.vector_store %arg14[%c160, %c0_44], %92 {strides = array<i32>} : memref<416x256xf32, #tpu.memory_space<vmem>>, vector<32x256xf32>,
    %c6_i32 = arith.constant 6 : i32
    %94 = tpu.dynamic_rotate %45 by %c6_i32 dim 1 : vector<32x256xf32>, i32 -> vector<32x256xf32>
    %c6_i32_45 = arith.constant 6 : i32
    %95 = vector.broadcast %c6_i32_45 : i32 to vector<1x256xi32>
    %96 = arith.cmpi sge, %18, %95 : vector<1x256xi32>
    %cst_46 = arith.constant 0.000000e+00 : f32
    %97 = vector.broadcast %cst_46 : f32 to vector<32x256xf32>
    %98 = vector.shape_cast %96 : vector<1x256xi1> to vector<1x256xi1>
    %99 = vector.broadcast %98 : vector<1x256xi1> to vector<32x256xi1>
    %100 = arith.select %99, %94, %97 : vector<32x256xi1>, vector<32x256xf32>
    %c192 = arith.constant 192 : index
    %c0_47 = arith.constant 0 : index
    %101 = vector.load %arg14[%c192, %c0_47] : memref<416x256xf32, #tpu.memory_space<vmem>>, vector<32x256xf32>
    tpu.vector_store %arg14[%c192, %c0_47], %100 {strides = array<i32>} : memref<416x256xf32, #tpu.memory_space<vmem>>, vector<32x256xf32>,
    %c5_i32 = arith.constant 5 : i32
    %102 = tpu.dynamic_rotate %45 by %c5_i32 dim 1 : vector<32x256xf32>, i32 -> vector<32x256xf32>
    %c5_i32_48 = arith.constant 5 : i32
    %103 = vector.broadcast %c5_i32_48 : i32 to vector<1x256xi32>
    %104 = arith.cmpi sge, %18, %103 : vector<1x256xi32>
    %cst_49 = arith.constant 0.000000e+00 : f32
    %105 = vector.broadcast %cst_49 : f32 to vector<32x256xf32>
    %106 = vector.shape_cast %104 : vector<1x256xi1> to vector<1x256xi1>
    %107 = vector.broadcast %106 : vector<1x256xi1> to vector<32x256xi1>
    %108 = arith.select %107, %102, %105 : vector<32x256xi1>, vector<32x256xf32>
    %c224 = arith.constant 224 : index
    %c0_50 = arith.constant 0 : index
    %109 = vector.load %arg14[%c224, %c0_50] : memref<416x256xf32, #tpu.memory_space<vmem>>, vector<32x256xf32>
    tpu.vector_store %arg14[%c224, %c0_50], %108 {strides = array<i32>} : memref<416x256xf32, #tpu.memory_space<vmem>>, vector<32x256xf32>,
    %c4_i32 = arith.constant 4 : i32
    %110 = tpu.dynamic_rotate %45 by %c4_i32 dim 1 : vector<32x256xf32>, i32 -> vector<32x256xf32>
    %c4_i32_51 = arith.constant 4 : i32
    %111 = vector.broadcast %c4_i32_51 : i32 to vector<1x256xi32>
    %112 = arith.cmpi sge, %18, %111 : vector<1x256xi32>
    %cst_52 = arith.constant 0.000000e+00 : f32
    %113 = vector.broadcast %cst_52 : f32 to vector<32x256xf32>
    %114 = vector.shape_cast %112 : vector<1x256xi1> to vector<1x256xi1>
    %115 = vector.broadcast %114 : vector<1x256xi1> to vector<32x256xi1>
    %116 = arith.select %115, %110, %113 : vector<32x256xi1>, vector<32x256xf32>
    %c256 = arith.constant 256 : index
    %c0_53 = arith.constant 0 : index
    %117 = vector.load %arg14[%c256, %c0_53] : memref<416x256xf32, #tpu.memory_space<vmem>>, vector<32x256xf32>
    tpu.vector_store %arg14[%c256, %c0_53], %116 {strides = array<i32>} : memref<416x256xf32, #tpu.memory_space<vmem>>, vector<32x256xf32>,
    %c3_i32 = arith.constant 3 : i32
    %118 = tpu.dynamic_rotate %45 by %c3_i32 dim 1 : vector<32x256xf32>, i32 -> vector<32x256xf32>
    %c3_i32_54 = arith.constant 3 : i32
    %119 = vector.broadcast %c3_i32_54 : i32 to vector<1x256xi32>
    %120 = arith.cmpi sge, %18, %119 : vector<1x256xi32>
    %cst_55 = arith.constant 0.000000e+00 : f32
    %121 = vector.broadcast %cst_55 : f32 to vector<32x256xf32>
    %122 = vector.shape_cast %120 : vector<1x256xi1> to vector<1x256xi1>
    %123 = vector.broadcast %122 : vector<1x256xi1> to vector<32x256xi1>
    %124 = arith.select %123, %118, %121 : vector<32x256xi1>, vector<32x256xf32>
    %c288 = arith.constant 288 : index
    %c0_56 = arith.constant 0 : index
    %125 = vector.load %arg14[%c288, %c0_56] : memref<416x256xf32, #tpu.memory_space<vmem>>, vector<32x256xf32>
    tpu.vector_store %arg14[%c288, %c0_56], %124 {strides = array<i32>} : memref<416x256xf32, #tpu.memory_space<vmem>>, vector<32x256xf32>,
    %c2_i32 = arith.constant 2 : i32
    %126 = tpu.dynamic_rotate %45 by %c2_i32 dim 1 : vector<32x256xf32>, i32 -> vector<32x256xf32>
    %c2_i32_57 = arith.constant 2 : i32
    %127 = vector.broadcast %c2_i32_57 : i32 to vector<1x256xi32>
    %128 = arith.cmpi sge, %18, %127 : vector<1x256xi32>
    %cst_58 = arith.constant 0.000000e+00 : f32
    %129 = vector.broadcast %cst_58 : f32 to vector<32x256xf32>
    %130 = vector.shape_cast %128 : vector<1x256xi1> to vector<1x256xi1>
    %131 = vector.broadcast %130 : vector<1x256xi1> to vector<32x256xi1>
    %132 = arith.select %131, %126, %129 : vector<32x256xi1>, vector<32x256xf32>
    %c320 = arith.constant 320 : index
    %c0_59 = arith.constant 0 : index
    %133 = vector.load %arg14[%c320, %c0_59] : memref<416x256xf32, #tpu.memory_space<vmem>>, vector<32x256xf32>
    tpu.vector_store %arg14[%c320, %c0_59], %132 {strides = array<i32>} : memref<416x256xf32, #tpu.memory_space<vmem>>, vector<32x256xf32>,
    %c1_i32_60 = arith.constant 1 : i32
    %134 = tpu.dynamic_rotate %45 by %c1_i32_60 dim 1 : vector<32x256xf32>, i32 -> vector<32x256xf32>
    %c1_i32_61 = arith.constant 1 : i32
    %135 = vector.broadcast %c1_i32_61 : i32 to vector<1x256xi32>
    %136 = arith.cmpi sge, %18, %135 : vector<1x256xi32>
    %cst_62 = arith.constant 0.000000e+00 : f32
    %137 = vector.broadcast %cst_62 : f32 to vector<32x256xf32>
    %138 = vector.shape_cast %136 : vector<1x256xi1> to vector<1x256xi1>
    %139 = vector.broadcast %138 : vector<1x256xi1> to vector<32x256xi1>
    %140 = arith.select %139, %134, %137 : vector<32x256xi1>, vector<32x256xf32>
    %c352 = arith.constant 352 : index
    %c0_63 = arith.constant 0 : index
    %141 = vector.load %arg14[%c352, %c0_63] : memref<416x256xf32, #tpu.memory_space<vmem>>, vector<32x256xf32>
    tpu.vector_store %arg14[%c352, %c0_63], %140 {strides = array<i32>} : memref<416x256xf32, #tpu.memory_space<vmem>>, vector<32x256xf32>,
    %c384 = arith.constant 384 : index
    %c0_64 = arith.constant 0 : index
    %142 = vector.load %arg14[%c384, %c0_64] : memref<416x256xf32, #tpu.memory_space<vmem>>, vector<32x256xf32>
    tpu.vector_store %arg14[%c384, %c0_64], %45 {strides = array<i32>} : memref<416x256xf32, #tpu.memory_space<vmem>>, vector<32x256xf32>,
    %c0_65 = arith.constant 0 : index
    %c0_66 = arith.constant 0 : index
    %c0_67 = arith.constant 0 : index
    %143 = vector.load %arg6[%c0_65, %c0_66, %c0_67] : memref<4x32x416xf32, #tpu.memory_space<vmem>>, vector<1x32x416xf32>
    %144 = vector.shape_cast %143 : vector<1x32x416xf32> to vector<32x416xf32>
    %c0_68 = arith.constant 0 : index
    %c0_69 = arith.constant 0 : index
    %145 = vector.load %arg14[%c0_68, %c0_69] : memref<416x256xf32, #tpu.memory_space<vmem>>, vector<416x256xf32>
    %cst_70 = arith.constant dense<0.000000e+00> : vector<32x256xf32>
    %146 = tpu.matmul %144, %145, %cst_70 {dimension_numbers = #tpu.dot_dimension_numbers<[1], [0], [0], [1], [0, 0, 1, 1], [], []>} : vector<32x416xf32>, vector<416x256xf32>, vector<32x256xf32> -> vector<32x256xf32>
    %c0_71 = arith.constant 0 : index
    %c0_72 = arith.constant 0 : index
    %147 = vector.load %arg13[%c0_71, %c0_72] : memref<32x256xf32, #tpu.memory_space<vmem>>, vector<32x256xf32>
    %c0_73 = arith.constant 0 : index
    %c0_74 = arith.constant 0 : index
    %c0_75 = arith.constant 0 : index
    %148 = vector.load %arg7[%c0_73, %c0_74, %c0_75] : memref<4x32x1xf32, #tpu.memory_space<vmem>>, vector<1x32x1xf32>
    %149 = vector.shape_cast %148 : vector<1x32x1xf32> to vector<32x1xf32>
    %150 = vector.broadcast %149 : vector<32x1xf32> to vector<32x256xf32>
    %151 = arith.addf %146, %150 : vector<32x256xf32>
    %cst_76 = arith.constant 0.000000e+00 : f32
    %152 = vector.broadcast %cst_76 : f32 to vector<32x256xf32>
    %153 = arith.maximumf %151, %152 : vector<32x256xf32>
    %154 = arith.addf %147, %153 : vector<32x256xf32>
    %c0_77 = arith.constant 0 : index
    %c0_78 = arith.constant 0 : index
    %155 = vector.load %arg13[%c0_77, %c0_78] : memref<32x256xf32, #tpu.memory_space<vmem>>, vector<32x256xf32>
    tpu.vector_store %arg13[%c0_77, %c0_78], %154 {strides = array<i32>} : memref<32x256xf32, #tpu.memory_space<vmem>>, vector<32x256xf32>,
    %c0_79 = arith.constant 0 : index
    %c0_80 = arith.constant 0 : index
    %156 = vector.load %arg13[%c0_79, %c0_80] : memref<32x256xf32, #tpu.memory_space<vmem>>, vector<32x256xf32>
    %c24_i32 = arith.constant 24 : i32
    %157 = tpu.dynamic_rotate %156 by %c24_i32 dim 1 : vector<32x256xf32>, i32 -> vector<32x256xf32>
    %c24_i32_81 = arith.constant 24 : i32
    %158 = vector.broadcast %c24_i32_81 : i32 to vector<1x256xi32>
    %159 = arith.cmpi sge, %18, %158 : vector<1x256xi32>
    %cst_82 = arith.constant 0.000000e+00 : f32
    %160 = vector.broadcast %cst_82 : f32 to vector<32x256xf32>
    %161 = vector.shape_cast %159 : vector<1x256xi1> to vector<1x256xi1>
    %162 = vector.broadcast %161 : vector<1x256xi1> to vector<32x256xi1>
    %163 = arith.select %162, %157, %160 : vector<32x256xi1>, vector<32x256xf32>
    %c0_83 = arith.constant 0 : index
    %c0_84 = arith.constant 0 : index
    %164 = vector.load %arg14[%c0_83, %c0_84] : memref<416x256xf32, #tpu.memory_space<vmem>>, vector<32x256xf32>
    tpu.vector_store %arg14[%c0_83, %c0_84], %163 {strides = array<i32>} : memref<416x256xf32, #tpu.memory_space<vmem>>, vector<32x256xf32>,
    %c22_i32 = arith.constant 22 : i32
    %165 = tpu.dynamic_rotate %156 by %c22_i32 dim 1 : vector<32x256xf32>, i32 -> vector<32x256xf32>
    %c22_i32_85 = arith.constant 22 : i32
    %166 = vector.broadcast %c22_i32_85 : i32 to vector<1x256xi32>
    %167 = arith.cmpi sge, %18, %166 : vector<1x256xi32>
    %cst_86 = arith.constant 0.000000e+00 : f32
    %168 = vector.broadcast %cst_86 : f32 to vector<32x256xf32>
    %169 = vector.shape_cast %167 : vector<1x256xi1> to vector<1x256xi1>
    %170 = vector.broadcast %169 : vector<1x256xi1> to vector<32x256xi1>
    %171 = arith.select %170, %165, %168 : vector<32x256xi1>, vector<32x256xf32>
    %c32_87 = arith.constant 32 : index
    %c0_88 = arith.constant 0 : index
    %172 = vector.load %arg14[%c32_87, %c0_88] : memref<416x256xf32, #tpu.memory_space<vmem>>, vector<32x256xf32>
    tpu.vector_store %arg14[%c32_87, %c0_88], %171 {strides = array<i32>} : memref<416x256xf32, #tpu.memory_space<vmem>>, vector<32x256xf32>,
    %c20_i32 = arith.constant 20 : i32
    %173 = tpu.dynamic_rotate %156 by %c20_i32 dim 1 : vector<32x256xf32>, i32 -> vector<32x256xf32>
    %c20_i32_89 = arith.constant 20 : i32
    %174 = vector.broadcast %c20_i32_89 : i32 to vector<1x256xi32>
    %175 = arith.cmpi sge, %18, %174 : vector<1x256xi32>
    %cst_90 = arith.constant 0.000000e+00 : f32
    %176 = vector.broadcast %cst_90 : f32 to vector<32x256xf32>
    %177 = vector.shape_cast %175 : vector<1x256xi1> to vector<1x256xi1>
    %178 = vector.broadcast %177 : vector<1x256xi1> to vector<32x256xi1>
    %179 = arith.select %178, %173, %176 : vector<32x256xi1>, vector<32x256xf32>
    %c64_91 = arith.constant 64 : index
    %c0_92 = arith.constant 0 : index
    %180 = vector.load %arg14[%c64_91, %c0_92] : memref<416x256xf32, #tpu.memory_space<vmem>>, vector<32x256xf32>
    tpu.vector_store %arg14[%c64_91, %c0_92], %179 {strides = array<i32>} : memref<416x256xf32, #tpu.memory_space<vmem>>, vector<32x256xf32>,
    %c18_i32 = arith.constant 18 : i32
    %181 = tpu.dynamic_rotate %156 by %c18_i32 dim 1 : vector<32x256xf32>, i32 -> vector<32x256xf32>
    %c18_i32_93 = arith.constant 18 : i32
    %182 = vector.broadcast %c18_i32_93 : i32 to vector<1x256xi32>
    %183 = arith.cmpi sge, %18, %182 : vector<1x256xi32>
    %cst_94 = arith.constant 0.000000e+00 : f32
    %184 = vector.broadcast %cst_94 : f32 to vector<32x256xf32>
    %185 = vector.shape_cast %183 : vector<1x256xi1> to vector<1x256xi1>
    %186 = vector.broadcast %185 : vector<1x256xi1> to vector<32x256xi1>
    %187 = arith.select %186, %181, %184 : vector<32x256xi1>, vector<32x256xf32>
    %c96_95 = arith.constant 96 : index
    %c0_96 = arith.constant 0 : index
    %188 = vector.load %arg14[%c96_95, %c0_96] : memref<416x256xf32, #tpu.memory_space<vmem>>, vector<32x256xf32>
    tpu.vector_store %arg14[%c96_95, %c0_96], %187 {strides = array<i32>} : memref<416x256xf32, #tpu.memory_space<vmem>>, vector<32x256xf32>,
    %c16_i32 = arith.constant 16 : i32
    %189 = tpu.dynamic_rotate %156 by %c16_i32 dim 1 : vector<32x256xf32>, i32 -> vector<32x256xf32>
    %c16_i32_97 = arith.constant 16 : i32
    %190 = vector.broadcast %c16_i32_97 : i32 to vector<1x256xi32>
    %191 = arith.cmpi sge, %18, %190 : vector<1x256xi32>
    %cst_98 = arith.constant 0.000000e+00 : f32
    %192 = vector.broadcast %cst_98 : f32 to vector<32x256xf32>
    %193 = vector.shape_cast %191 : vector<1x256xi1> to vector<1x256xi1>
    %194 = vector.broadcast %193 : vector<1x256xi1> to vector<32x256xi1>
    %195 = arith.select %194, %189, %192 : vector<32x256xi1>, vector<32x256xf32>
    %c128_99 = arith.constant 128 : index
    %c0_100 = arith.constant 0 : index
    %196 = vector.load %arg14[%c128_99, %c0_100] : memref<416x256xf32, #tpu.memory_space<vmem>>, vector<32x256xf32>
    tpu.vector_store %arg14[%c128_99, %c0_100], %195 {strides = array<i32>} : memref<416x256xf32, #tpu.memory_space<vmem>>, vector<32x256xf32>,
    %c14_i32 = arith.constant 14 : i32
    %197 = tpu.dynamic_rotate %156 by %c14_i32 dim 1 : vector<32x256xf32>, i32 -> vector<32x256xf32>
    %c14_i32_101 = arith.constant 14 : i32
    %198 = vector.broadcast %c14_i32_101 : i32 to vector<1x256xi32>
    %199 = arith.cmpi sge, %18, %198 : vector<1x256xi32>
    %cst_102 = arith.constant 0.000000e+00 : f32
    %200 = vector.broadcast %cst_102 : f32 to vector<32x256xf32>
    %201 = vector.shape_cast %199 : vector<1x256xi1> to vector<1x256xi1>
    %202 = vector.broadcast %201 : vector<1x256xi1> to vector<32x256xi1>
    %203 = arith.select %202, %197, %200 : vector<32x256xi1>, vector<32x256xf32>
    %c160_103 = arith.constant 160 : index
    %c0_104 = arith.constant 0 : index
    %204 = vector.load %arg14[%c160_103, %c0_104] : memref<416x256xf32, #tpu.memory_space<vmem>>, vector<32x256xf32>
    tpu.vector_store %arg14[%c160_103, %c0_104], %203 {strides = array<i32>} : memref<416x256xf32, #tpu.memory_space<vmem>>, vector<32x256xf32>,
    %c12_i32_105 = arith.constant 12 : i32
    %205 = tpu.dynamic_rotate %156 by %c12_i32_105 dim 1 : vector<32x256xf32>, i32 -> vector<32x256xf32>
    %c12_i32_106 = arith.constant 12 : i32
    %206 = vector.broadcast %c12_i32_106 : i32 to vector<1x256xi32>
    %207 = arith.cmpi sge, %18, %206 : vector<1x256xi32>
    %cst_107 = arith.constant 0.000000e+00 : f32
    %208 = vector.broadcast %cst_107 : f32 to vector<32x256xf32>
    %209 = vector.shape_cast %207 : vector<1x256xi1> to vector<1x256xi1>
    %210 = vector.broadcast %209 : vector<1x256xi1> to vector<32x256xi1>
    %211 = arith.select %210, %205, %208 : vector<32x256xi1>, vector<32x256xf32>
    %c192_108 = arith.constant 192 : index
    %c0_109 = arith.constant 0 : index
    %212 = vector.load %arg14[%c192_108, %c0_109] : memref<416x256xf32, #tpu.memory_space<vmem>>, vector<32x256xf32>
    tpu.vector_store %arg14[%c192_108, %c0_109], %211 {strides = array<i32>} : memref<416x256xf32, #tpu.memory_space<vmem>>, vector<32x256xf32>,
    %c10_i32_110 = arith.constant 10 : i32
    %213 = tpu.dynamic_rotate %156 by %c10_i32_110 dim 1 : vector<32x256xf32>, i32 -> vector<32x256xf32>
    %c10_i32_111 = arith.constant 10 : i32
    %214 = vector.broadcast %c10_i32_111 : i32 to vector<1x256xi32>
    %215 = arith.cmpi sge, %18, %214 : vector<1x256xi32>
    %cst_112 = arith.constant 0.000000e+00 : f32
    %216 = vector.broadcast %cst_112 : f32 to vector<32x256xf32>
    %217 = vector.shape_cast %215 : vector<1x256xi1> to vector<1x256xi1>
    %218 = vector.broadcast %217 : vector<1x256xi1> to vector<32x256xi1>
    %219 = arith.select %218, %213, %216 : vector<32x256xi1>, vector<32x256xf32>
    %c224_113 = arith.constant 224 : index
    %c0_114 = arith.constant 0 : index
    %220 = vector.load %arg14[%c224_113, %c0_114] : memref<416x256xf32, #tpu.memory_space<vmem>>, vector<32x256xf32>
    tpu.vector_store %arg14[%c224_113, %c0_114], %219 {strides = array<i32>} : memref<416x256xf32, #tpu.memory_space<vmem>>, vector<32x256xf32>,
    %c8_i32_115 = arith.constant 8 : i32
    %221 = tpu.dynamic_rotate %156 by %c8_i32_115 dim 1 : vector<32x256xf32>, i32 -> vector<32x256xf32>
    %c8_i32_116 = arith.constant 8 : i32
    %222 = vector.broadcast %c8_i32_116 : i32 to vector<1x256xi32>
    %223 = arith.cmpi sge, %18, %222 : vector<1x256xi32>
    %cst_117 = arith.constant 0.000000e+00 : f32
    %224 = vector.broadcast %cst_117 : f32 to vector<32x256xf32>
    %225 = vector.shape_cast %223 : vector<1x256xi1> to vector<1x256xi1>
    %226 = vector.broadcast %225 : vector<1x256xi1> to vector<32x256xi1>
    %227 = arith.select %226, %221, %224 : vector<32x256xi1>, vector<32x256xf32>
    %c256_118 = arith.constant 256 : index
    %c0_119 = arith.constant 0 : index
    %228 = vector.load %arg14[%c256_118, %c0_119] : memref<416x256xf32, #tpu.memory_space<vmem>>, vector<32x256xf32>
    tpu.vector_store %arg14[%c256_118, %c0_119], %227 {strides = array<i32>} : memref<416x256xf32, #tpu.memory_space<vmem>>, vector<32x256xf32>,
    %c6_i32_120 = arith.constant 6 : i32
    %229 = tpu.dynamic_rotate %156 by %c6_i32_120 dim 1 : vector<32x256xf32>, i32 -> vector<32x256xf32>
    %c6_i32_121 = arith.constant 6 : i32
    %230 = vector.broadcast %c6_i32_121 : i32 to vector<1x256xi32>
    %231 = arith.cmpi sge, %18, %230 : vector<1x256xi32>
    %cst_122 = arith.constant 0.000000e+00 : f32
    %232 = vector.broadcast %cst_122 : f32 to vector<32x256xf32>
    %233 = vector.shape_cast %231 : vector<1x256xi1> to vector<1x256xi1>
    %234 = vector.broadcast %233 : vector<1x256xi1> to vector<32x256xi1>
    %235 = arith.select %234, %229, %232 : vector<32x256xi1>, vector<32x256xf32>
    %c288_123 = arith.constant 288 : index
    %c0_124 = arith.constant 0 : index
    %236 = vector.load %arg14[%c288_123, %c0_124] : memref<416x256xf32, #tpu.memory_space<vmem>>, vector<32x256xf32>
    tpu.vector_store %arg14[%c288_123, %c0_124], %235 {strides = array<i32>} : memref<416x256xf32, #tpu.memory_space<vmem>>, vector<32x256xf32>,
    %c4_i32_125 = arith.constant 4 : i32
    %237 = tpu.dynamic_rotate %156 by %c4_i32_125 dim 1 : vector<32x256xf32>, i32 -> vector<32x256xf32>
    %c4_i32_126 = arith.constant 4 : i32
    %238 = vector.broadcast %c4_i32_126 : i32 to vector<1x256xi32>
    %239 = arith.cmpi sge, %18, %238 : vector<1x256xi32>
    %cst_127 = arith.constant 0.000000e+00 : f32
    %240 = vector.broadcast %cst_127 : f32 to vector<32x256xf32>
    %241 = vector.shape_cast %239 : vector<1x256xi1> to vector<1x256xi1>
    %242 = vector.broadcast %241 : vector<1x256xi1> to vector<32x256xi1>
    %243 = arith.select %242, %237, %240 : vector<32x256xi1>, vector<32x256xf32>
    %c320_128 = arith.constant 320 : index
    %c0_129 = arith.constant 0 : index
    %244 = vector.load %arg14[%c320_128, %c0_129] : memref<416x256xf32, #tpu.memory_space<vmem>>, vector<32x256xf32>
    tpu.vector_store %arg14[%c320_128, %c0_129], %243 {strides = array<i32>} : memref<416x256xf32, #tpu.memory_space<vmem>>, vector<32x256xf32>,
    %c2_i32_130 = arith.constant 2 : i32
    %245 = tpu.dynamic_rotate %156 by %c2_i32_130 dim 1 : vector<32x256xf32>, i32 -> vector<32x256xf32>
    %c2_i32_131 = arith.constant 2 : i32
    %246 = vector.broadcast %c2_i32_131 : i32 to vector<1x256xi32>
    %247 = arith.cmpi sge, %18, %246 : vector<1x256xi32>
    %cst_132 = arith.constant 0.000000e+00 : f32
    %248 = vector.broadcast %cst_132 : f32 to vector<32x256xf32>
    %249 = vector.shape_cast %247 : vector<1x256xi1> to vector<1x256xi1>
    %250 = vector.broadcast %249 : vector<1x256xi1> to vector<32x256xi1>
    %251 = arith.select %250, %245, %248 : vector<32x256xi1>, vector<32x256xf32>
    %c352_133 = arith.constant 352 : index
    %c0_134 = arith.constant 0 : index
    %252 = vector.load %arg14[%c352_133, %c0_134] : memref<416x256xf32, #tpu.memory_space<vmem>>, vector<32x256xf32>
    tpu.vector_store %arg14[%c352_133, %c0_134], %251 {strides = array<i32>} : memref<416x256xf32, #tpu.memory_space<vmem>>, vector<32x256xf32>,
    %c384_135 = arith.constant 384 : index
    %c0_136 = arith.constant 0 : index
    %253 = vector.load %arg14[%c384_135, %c0_136] : memref<416x256xf32, #tpu.memory_space<vmem>>, vector<32x256xf32>
    tpu.vector_store %arg14[%c384_135, %c0_136], %156 {strides = array<i32>} : memref<416x256xf32, #tpu.memory_space<vmem>>, vector<32x256xf32>,
    %c1_137 = arith.constant 1 : index
    %c0_138 = arith.constant 0 : index
    %c0_139 = arith.constant 0 : index
    %254 = vector.load %arg6[%c1_137, %c0_138, %c0_139] : memref<4x32x416xf32, #tpu.memory_space<vmem>>, vector<1x32x416xf32>
    %255 = vector.shape_cast %254 : vector<1x32x416xf32> to vector<32x416xf32>
    %c0_140 = arith.constant 0 : index
    %c0_141 = arith.constant 0 : index
    %256 = vector.load %arg14[%c0_140, %c0_141] : memref<416x256xf32, #tpu.memory_space<vmem>>, vector<416x256xf32>
    %cst_142 = arith.constant dense<0.000000e+00> : vector<32x256xf32>
    %257 = tpu.matmul %255, %256, %cst_142 {dimension_numbers = #tpu.dot_dimension_numbers<[1], [0], [0], [1], [0, 0, 1, 1], [], []>} : vector<32x416xf32>, vector<416x256xf32>, vector<32x256xf32> -> vector<32x256xf32>
    %c0_143 = arith.constant 0 : index
    %c0_144 = arith.constant 0 : index
    %258 = vector.load %arg13[%c0_143, %c0_144] : memref<32x256xf32, #tpu.memory_space<vmem>>, vector<32x256xf32>
    %c1_145 = arith.constant 1 : index
    %c0_146 = arith.constant 0 : index
    %c0_147 = arith.constant 0 : index
    %259 = vector.load %arg7[%c1_145, %c0_146, %c0_147] : memref<4x32x1xf32, #tpu.memory_space<vmem>>, vector<1x32x1xf32>
    %260 = vector.shape_cast %259 : vector<1x32x1xf32> to vector<32x1xf32>
    %261 = vector.broadcast %260 : vector<32x1xf32> to vector<32x256xf32>
    %262 = arith.addf %257, %261 : vector<32x256xf32>
    %cst_148 = arith.constant 0.000000e+00 : f32
    %263 = vector.broadcast %cst_148 : f32 to vector<32x256xf32>
    %264 = arith.maximumf %262, %263 : vector<32x256xf32>
    %265 = arith.addf %258, %264 : vector<32x256xf32>
    %c0_149 = arith.constant 0 : index
    %c0_150 = arith.constant 0 : index
    %266 = vector.load %arg13[%c0_149, %c0_150] : memref<32x256xf32, #tpu.memory_space<vmem>>, vector<32x256xf32>
    tpu.vector_store %arg13[%c0_149, %c0_150], %265 {strides = array<i32>} : memref<32x256xf32, #tpu.memory_space<vmem>>, vector<32x256xf32>,
    %c0_151 = arith.constant 0 : index
    %c0_152 = arith.constant 0 : index
    %267 = vector.load %arg13[%c0_151, %c0_152] : memref<32x256xf32, #tpu.memory_space<vmem>>, vector<32x256xf32>
    %c48_i32 = arith.constant 48 : i32
    %268 = tpu.dynamic_rotate %267 by %c48_i32 dim 1 : vector<32x256xf32>, i32 -> vector<32x256xf32>
    %c48_i32_153 = arith.constant 48 : i32
    %269 = vector.broadcast %c48_i32_153 : i32 to vector<1x256xi32>
    %270 = arith.cmpi sge, %18, %269 : vector<1x256xi32>
    %cst_154 = arith.constant 0.000000e+00 : f32
    %271 = vector.broadcast %cst_154 : f32 to vector<32x256xf32>
    %272 = vector.shape_cast %270 : vector<1x256xi1> to vector<1x256xi1>
    %273 = vector.broadcast %272 : vector<1x256xi1> to vector<32x256xi1>
    %274 = arith.select %273, %268, %271 : vector<32x256xi1>, vector<32x256xf32>
    %c0_155 = arith.constant 0 : index
    %c0_156 = arith.constant 0 : index
    %275 = vector.load %arg14[%c0_155, %c0_156] : memref<416x256xf32, #tpu.memory_space<vmem>>, vector<32x256xf32>
    tpu.vector_store %arg14[%c0_155, %c0_156], %274 {strides = array<i32>} : memref<416x256xf32, #tpu.memory_space<vmem>>, vector<32x256xf32>,
    %c44_i32 = arith.constant 44 : i32
    %276 = tpu.dynamic_rotate %267 by %c44_i32 dim 1 : vector<32x256xf32>, i32 -> vector<32x256xf32>
    %c44_i32_157 = arith.constant 44 : i32
    %277 = vector.broadcast %c44_i32_157 : i32 to vector<1x256xi32>
    %278 = arith.cmpi sge, %18, %277 : vector<1x256xi32>
    %cst_158 = arith.constant 0.000000e+00 : f32
    %279 = vector.broadcast %cst_158 : f32 to vector<32x256xf32>
    %280 = vector.shape_cast %278 : vector<1x256xi1> to vector<1x256xi1>
    %281 = vector.broadcast %280 : vector<1x256xi1> to vector<32x256xi1>
    %282 = arith.select %281, %276, %279 : vector<32x256xi1>, vector<32x256xf32>
    %c32_159 = arith.constant 32 : index
    %c0_160 = arith.constant 0 : index
    %283 = vector.load %arg14[%c32_159, %c0_160] : memref<416x256xf32, #tpu.memory_space<vmem>>, vector<32x256xf32>
    tpu.vector_store %arg14[%c32_159, %c0_160], %282 {strides = array<i32>} : memref<416x256xf32, #tpu.memory_space<vmem>>, vector<32x256xf32>,
    %c40_i32 = arith.constant 40 : i32
    %284 = tpu.dynamic_rotate %267 by %c40_i32 dim 1 : vector<32x256xf32>, i32 -> vector<32x256xf32>
    %c40_i32_161 = arith.constant 40 : i32
    %285 = vector.broadcast %c40_i32_161 : i32 to vector<1x256xi32>
    %286 = arith.cmpi sge, %18, %285 : vector<1x256xi32>
    %cst_162 = arith.constant 0.000000e+00 : f32
    %287 = vector.broadcast %cst_162 : f32 to vector<32x256xf32>
    %288 = vector.shape_cast %286 : vector<1x256xi1> to vector<1x256xi1>
    %289 = vector.broadcast %288 : vector<1x256xi1> to vector<32x256xi1>
    %290 = arith.select %289, %284, %287 : vector<32x256xi1>, vector<32x256xf32>
    %c64_163 = arith.constant 64 : index
    %c0_164 = arith.constant 0 : index
    %291 = vector.load %arg14[%c64_163, %c0_164] : memref<416x256xf32, #tpu.memory_space<vmem>>, vector<32x256xf32>
    tpu.vector_store %arg14[%c64_163, %c0_164], %290 {strides = array<i32>} : memref<416x256xf32, #tpu.memory_space<vmem>>, vector<32x256xf32>,
    %c36_i32 = arith.constant 36 : i32
    %292 = tpu.dynamic_rotate %267 by %c36_i32 dim 1 : vector<32x256xf32>, i32 -> vector<32x256xf32>
    %c36_i32_165 = arith.constant 36 : i32
    %293 = vector.broadcast %c36_i32_165 : i32 to vector<1x256xi32>
    %294 = arith.cmpi sge, %18, %293 : vector<1x256xi32>
    %cst_166 = arith.constant 0.000000e+00 : f32
    %295 = vector.broadcast %cst_166 : f32 to vector<32x256xf32>
    %296 = vector.shape_cast %294 : vector<1x256xi1> to vector<1x256xi1>
    %297 = vector.broadcast %296 : vector<1x256xi1> to vector<32x256xi1>
    %298 = arith.select %297, %292, %295 : vector<32x256xi1>, vector<32x256xf32>
    %c96_167 = arith.constant 96 : index
    %c0_168 = arith.constant 0 : index
    %299 = vector.load %arg14[%c96_167, %c0_168] : memref<416x256xf32, #tpu.memory_space<vmem>>, vector<32x256xf32>
    tpu.vector_store %arg14[%c96_167, %c0_168], %298 {strides = array<i32>} : memref<416x256xf32, #tpu.memory_space<vmem>>, vector<32x256xf32>,
    %c32_i32 = arith.constant 32 : i32
    %300 = tpu.dynamic_rotate %267 by %c32_i32 dim 1 : vector<32x256xf32>, i32 -> vector<32x256xf32>
    %c32_i32_169 = arith.constant 32 : i32
    %301 = vector.broadcast %c32_i32_169 : i32 to vector<1x256xi32>
    %302 = arith.cmpi sge, %18, %301 : vector<1x256xi32>
    %cst_170 = arith.constant 0.000000e+00 : f32
    %303 = vector.broadcast %cst_170 : f32 to vector<32x256xf32>
    %304 = vector.shape_cast %302 : vector<1x256xi1> to vector<1x256xi1>
    %305 = vector.broadcast %304 : vector<1x256xi1> to vector<32x256xi1>
    %306 = arith.select %305, %300, %303 : vector<32x256xi1>, vector<32x256xf32>
    %c128_171 = arith.constant 128 : index
    %c0_172 = arith.constant 0 : index
    %307 = vector.load %arg14[%c128_171, %c0_172] : memref<416x256xf32, #tpu.memory_space<vmem>>, vector<32x256xf32>
    tpu.vector_store %arg14[%c128_171, %c0_172], %306 {strides = array<i32>} : memref<416x256xf32, #tpu.memory_space<vmem>>, vector<32x256xf32>,
    %c28_i32 = arith.constant 28 : i32
    %308 = tpu.dynamic_rotate %267 by %c28_i32 dim 1 : vector<32x256xf32>, i32 -> vector<32x256xf32>
    %c28_i32_173 = arith.constant 28 : i32
    %309 = vector.broadcast %c28_i32_173 : i32 to vector<1x256xi32>
    %310 = arith.cmpi sge, %18, %309 : vector<1x256xi32>
    %cst_174 = arith.constant 0.000000e+00 : f32
    %311 = vector.broadcast %cst_174 : f32 to vector<32x256xf32>
    %312 = vector.shape_cast %310 : vector<1x256xi1> to vector<1x256xi1>
    %313 = vector.broadcast %312 : vector<1x256xi1> to vector<32x256xi1>
    %314 = arith.select %313, %308, %311 : vector<32x256xi1>, vector<32x256xf32>
    %c160_175 = arith.constant 160 : index
    %c0_176 = arith.constant 0 : index
    %315 = vector.load %arg14[%c160_175, %c0_176] : memref<416x256xf32, #tpu.memory_space<vmem>>, vector<32x256xf32>
    tpu.vector_store %arg14[%c160_175, %c0_176], %314 {strides = array<i32>} : memref<416x256xf32, #tpu.memory_space<vmem>>, vector<32x256xf32>,
    %c24_i32_177 = arith.constant 24 : i32
    %316 = tpu.dynamic_rotate %267 by %c24_i32_177 dim 1 : vector<32x256xf32>, i32 -> vector<32x256xf32>
    %c24_i32_178 = arith.constant 24 : i32
    %317 = vector.broadcast %c24_i32_178 : i32 to vector<1x256xi32>
    %318 = arith.cmpi sge, %18, %317 : vector<1x256xi32>
    %cst_179 = arith.constant 0.000000e+00 : f32
    %319 = vector.broadcast %cst_179 : f32 to vector<32x256xf32>
    %320 = vector.shape_cast %318 : vector<1x256xi1> to vector<1x256xi1>
    %321 = vector.broadcast %320 : vector<1x256xi1> to vector<32x256xi1>
    %322 = arith.select %321, %316, %319 : vector<32x256xi1>, vector<32x256xf32>
    %c192_180 = arith.constant 192 : index
    %c0_181 = arith.constant 0 : index
    %323 = vector.load %arg14[%c192_180, %c0_181] : memref<416x256xf32, #tpu.memory_space<vmem>>, vector<32x256xf32>
    tpu.vector_store %arg14[%c192_180, %c0_181], %322 {strides = array<i32>} : memref<416x256xf32, #tpu.memory_space<vmem>>, vector<32x256xf32>,
    %c20_i32_182 = arith.constant 20 : i32
    %324 = tpu.dynamic_rotate %267 by %c20_i32_182 dim 1 : vector<32x256xf32>, i32 -> vector<32x256xf32>
    %c20_i32_183 = arith.constant 20 : i32
    %325 = vector.broadcast %c20_i32_183 : i32 to vector<1x256xi32>
    %326 = arith.cmpi sge, %18, %325 : vector<1x256xi32>
    %cst_184 = arith.constant 0.000000e+00 : f32
    %327 = vector.broadcast %cst_184 : f32 to vector<32x256xf32>
    %328 = vector.shape_cast %326 : vector<1x256xi1> to vector<1x256xi1>
    %329 = vector.broadcast %328 : vector<1x256xi1> to vector<32x256xi1>
    %330 = arith.select %329, %324, %327 : vector<32x256xi1>, vector<32x256xf32>
    %c224_185 = arith.constant 224 : index
    %c0_186 = arith.constant 0 : index
    %331 = vector.load %arg14[%c224_185, %c0_186] : memref<416x256xf32, #tpu.memory_space<vmem>>, vector<32x256xf32>
    tpu.vector_store %arg14[%c224_185, %c0_186], %330 {strides = array<i32>} : memref<416x256xf32, #tpu.memory_space<vmem>>, vector<32x256xf32>,
    %c16_i32_187 = arith.constant 16 : i32
    %332 = tpu.dynamic_rotate %267 by %c16_i32_187 dim 1 : vector<32x256xf32>, i32 -> vector<32x256xf32>
    %c16_i32_188 = arith.constant 16 : i32
    %333 = vector.broadcast %c16_i32_188 : i32 to vector<1x256xi32>
    %334 = arith.cmpi sge, %18, %333 : vector<1x256xi32>
    %cst_189 = arith.constant 0.000000e+00 : f32
    %335 = vector.broadcast %cst_189 : f32 to vector<32x256xf32>
    %336 = vector.shape_cast %334 : vector<1x256xi1> to vector<1x256xi1>
    %337 = vector.broadcast %336 : vector<1x256xi1> to vector<32x256xi1>
    %338 = arith.select %337, %332, %335 : vector<32x256xi1>, vector<32x256xf32>
    %c256_190 = arith.constant 256 : index
    %c0_191 = arith.constant 0 : index
    %339 = vector.load %arg14[%c256_190, %c0_191] : memref<416x256xf32, #tpu.memory_space<vmem>>, vector<32x256xf32>
    tpu.vector_store %arg14[%c256_190, %c0_191], %338 {strides = array<i32>} : memref<416x256xf32, #tpu.memory_space<vmem>>, vector<32x256xf32>,
    %c12_i32_192 = arith.constant 12 : i32
    %340 = tpu.dynamic_rotate %267 by %c12_i32_192 dim 1 : vector<32x256xf32>, i32 -> vector<32x256xf32>
    %c12_i32_193 = arith.constant 12 : i32
    %341 = vector.broadcast %c12_i32_193 : i32 to vector<1x256xi32>
    %342 = arith.cmpi sge, %18, %341 : vector<1x256xi32>
    %cst_194 = arith.constant 0.000000e+00 : f32
    %343 = vector.broadcast %cst_194 : f32 to vector<32x256xf32>
    %344 = vector.shape_cast %342 : vector<1x256xi1> to vector<1x256xi1>
    %345 = vector.broadcast %344 : vector<1x256xi1> to vector<32x256xi1>
    %346 = arith.select %345, %340, %343 : vector<32x256xi1>, vector<32x256xf32>
    %c288_195 = arith.constant 288 : index
    %c0_196 = arith.constant 0 : index
    %347 = vector.load %arg14[%c288_195, %c0_196] : memref<416x256xf32, #tpu.memory_space<vmem>>, vector<32x256xf32>
    tpu.vector_store %arg14[%c288_195, %c0_196], %346 {strides = array<i32>} : memref<416x256xf32, #tpu.memory_space<vmem>>, vector<32x256xf32>,
    %c8_i32_197 = arith.constant 8 : i32
    %348 = tpu.dynamic_rotate %267 by %c8_i32_197 dim 1 : vector<32x256xf32>, i32 -> vector<32x256xf32>
    %c8_i32_198 = arith.constant 8 : i32
    %349 = vector.broadcast %c8_i32_198 : i32 to vector<1x256xi32>
    %350 = arith.cmpi sge, %18, %349 : vector<1x256xi32>
    %cst_199 = arith.constant 0.000000e+00 : f32
    %351 = vector.broadcast %cst_199 : f32 to vector<32x256xf32>
    %352 = vector.shape_cast %350 : vector<1x256xi1> to vector<1x256xi1>
    %353 = vector.broadcast %352 : vector<1x256xi1> to vector<32x256xi1>
    %354 = arith.select %353, %348, %351 : vector<32x256xi1>, vector<32x256xf32>
    %c320_200 = arith.constant 320 : index
    %c0_201 = arith.constant 0 : index
    %355 = vector.load %arg14[%c320_200, %c0_201] : memref<416x256xf32, #tpu.memory_space<vmem>>, vector<32x256xf32>
    tpu.vector_store %arg14[%c320_200, %c0_201], %354 {strides = array<i32>} : memref<416x256xf32, #tpu.memory_space<vmem>>, vector<32x256xf32>,
    %c4_i32_202 = arith.constant 4 : i32
    %356 = tpu.dynamic_rotate %267 by %c4_i32_202 dim 1 : vector<32x256xf32>, i32 -> vector<32x256xf32>
    %c4_i32_203 = arith.constant 4 : i32
    %357 = vector.broadcast %c4_i32_203 : i32 to vector<1x256xi32>
    %358 = arith.cmpi sge, %18, %357 : vector<1x256xi32>
    %cst_204 = arith.constant 0.000000e+00 : f32
    %359 = vector.broadcast %cst_204 : f32 to vector<32x256xf32>
    %360 = vector.shape_cast %358 : vector<1x256xi1> to vector<1x256xi1>
    %361 = vector.broadcast %360 : vector<1x256xi1> to vector<32x256xi1>
    %362 = arith.select %361, %356, %359 : vector<32x256xi1>, vector<32x256xf32>
    %c352_205 = arith.constant 352 : index
    %c0_206 = arith.constant 0 : index
    %363 = vector.load %arg14[%c352_205, %c0_206] : memref<416x256xf32, #tpu.memory_space<vmem>>, vector<32x256xf32>
    tpu.vector_store %arg14[%c352_205, %c0_206], %362 {strides = array<i32>} : memref<416x256xf32, #tpu.memory_space<vmem>>, vector<32x256xf32>,
    %c384_207 = arith.constant 384 : index
    %c0_208 = arith.constant 0 : index
    %364 = vector.load %arg14[%c384_207, %c0_208] : memref<416x256xf32, #tpu.memory_space<vmem>>, vector<32x256xf32>
    tpu.vector_store %arg14[%c384_207, %c0_208], %267 {strides = array<i32>} : memref<416x256xf32, #tpu.memory_space<vmem>>, vector<32x256xf32>,
    %c2 = arith.constant 2 : index
    %c0_209 = arith.constant 0 : index
    %c0_210 = arith.constant 0 : index
    %365 = vector.load %arg6[%c2, %c0_209, %c0_210] : memref<4x32x416xf32, #tpu.memory_space<vmem>>, vector<1x32x416xf32>
    %366 = vector.shape_cast %365 : vector<1x32x416xf32> to vector<32x416xf32>
    %c0_211 = arith.constant 0 : index
    %c0_212 = arith.constant 0 : index
    %367 = vector.load %arg14[%c0_211, %c0_212] : memref<416x256xf32, #tpu.memory_space<vmem>>, vector<416x256xf32>
    %cst_213 = arith.constant dense<0.000000e+00> : vector<32x256xf32>
    %368 = tpu.matmul %366, %367, %cst_213 {dimension_numbers = #tpu.dot_dimension_numbers<[1], [0], [0], [1], [0, 0, 1, 1], [], []>} : vector<32x416xf32>, vector<416x256xf32>, vector<32x256xf32> -> vector<32x256xf32>
    %c0_214 = arith.constant 0 : index
    %c0_215 = arith.constant 0 : index
    %369 = vector.load %arg13[%c0_214, %c0_215] : memref<32x256xf32, #tpu.memory_space<vmem>>, vector<32x256xf32>
    %c2_216 = arith.constant 2 : index
    %c0_217 = arith.constant 0 : index
    %c0_218 = arith.constant 0 : index
    %370 = vector.load %arg7[%c2_216, %c0_217, %c0_218] : memref<4x32x1xf32, #tpu.memory_space<vmem>>, vector<1x32x1xf32>
    %371 = vector.shape_cast %370 : vector<1x32x1xf32> to vector<32x1xf32>
    %372 = vector.broadcast %371 : vector<32x1xf32> to vector<32x256xf32>
    %373 = arith.addf %368, %372 : vector<32x256xf32>
    %cst_219 = arith.constant 0.000000e+00 : f32
    %374 = vector.broadcast %cst_219 : f32 to vector<32x256xf32>
    %375 = arith.maximumf %373, %374 : vector<32x256xf32>
    %376 = arith.addf %369, %375 : vector<32x256xf32>
    %c0_220 = arith.constant 0 : index
    %c0_221 = arith.constant 0 : index
    %377 = vector.load %arg13[%c0_220, %c0_221] : memref<32x256xf32, #tpu.memory_space<vmem>>, vector<32x256xf32>
    tpu.vector_store %arg13[%c0_220, %c0_221], %376 {strides = array<i32>} : memref<32x256xf32, #tpu.memory_space<vmem>>, vector<32x256xf32>,
    %c0_222 = arith.constant 0 : index
    %c0_223 = arith.constant 0 : index
    %378 = vector.load %arg13[%c0_222, %c0_223] : memref<32x256xf32, #tpu.memory_space<vmem>>, vector<32x256xf32>
    %c96_i32 = arith.constant 96 : i32
    %379 = tpu.dynamic_rotate %378 by %c96_i32 dim 1 : vector<32x256xf32>, i32 -> vector<32x256xf32>
    %c96_i32_224 = arith.constant 96 : i32
    %380 = vector.broadcast %c96_i32_224 : i32 to vector<1x256xi32>
    %381 = arith.cmpi sge, %18, %380 : vector<1x256xi32>
    %cst_225 = arith.constant 0.000000e+00 : f32
    %382 = vector.broadcast %cst_225 : f32 to vector<32x256xf32>
    %383 = vector.shape_cast %381 : vector<1x256xi1> to vector<1x256xi1>
    %384 = vector.broadcast %383 : vector<1x256xi1> to vector<32x256xi1>
    %385 = arith.select %384, %379, %382 : vector<32x256xi1>, vector<32x256xf32>
    %c0_226 = arith.constant 0 : index
    %c0_227 = arith.constant 0 : index
    %386 = vector.load %arg14[%c0_226, %c0_227] : memref<416x256xf32, #tpu.memory_space<vmem>>, vector<32x256xf32>
    tpu.vector_store %arg14[%c0_226, %c0_227], %385 {strides = array<i32>} : memref<416x256xf32, #tpu.memory_space<vmem>>, vector<32x256xf32>,
    %c88_i32 = arith.constant 88 : i32
    %387 = tpu.dynamic_rotate %378 by %c88_i32 dim 1 : vector<32x256xf32>, i32 -> vector<32x256xf32>
    %c88_i32_228 = arith.constant 88 : i32
    %388 = vector.broadcast %c88_i32_228 : i32 to vector<1x256xi32>
    %389 = arith.cmpi sge, %18, %388 : vector<1x256xi32>
    %cst_229 = arith.constant 0.000000e+00 : f32
    %390 = vector.broadcast %cst_229 : f32 to vector<32x256xf32>
    %391 = vector.shape_cast %389 : vector<1x256xi1> to vector<1x256xi1>
    %392 = vector.broadcast %391 : vector<1x256xi1> to vector<32x256xi1>
    %393 = arith.select %392, %387, %390 : vector<32x256xi1>, vector<32x256xf32>
    %c32_230 = arith.constant 32 : index
    %c0_231 = arith.constant 0 : index
    %394 = vector.load %arg14[%c32_230, %c0_231] : memref<416x256xf32, #tpu.memory_space<vmem>>, vector<32x256xf32>
    tpu.vector_store %arg14[%c32_230, %c0_231], %393 {strides = array<i32>} : memref<416x256xf32, #tpu.memory_space<vmem>>, vector<32x256xf32>,
    %c80_i32 = arith.constant 80 : i32
    %395 = tpu.dynamic_rotate %378 by %c80_i32 dim 1 : vector<32x256xf32>, i32 -> vector<32x256xf32>
    %c80_i32_232 = arith.constant 80 : i32
    %396 = vector.broadcast %c80_i32_232 : i32 to vector<1x256xi32>
    %397 = arith.cmpi sge, %18, %396 : vector<1x256xi32>
    %cst_233 = arith.constant 0.000000e+00 : f32
    %398 = vector.broadcast %cst_233 : f32 to vector<32x256xf32>
    %399 = vector.shape_cast %397 : vector<1x256xi1> to vector<1x256xi1>
    %400 = vector.broadcast %399 : vector<1x256xi1> to vector<32x256xi1>
    %401 = arith.select %400, %395, %398 : vector<32x256xi1>, vector<32x256xf32>
    %c64_234 = arith.constant 64 : index
    %c0_235 = arith.constant 0 : index
    %402 = vector.load %arg14[%c64_234, %c0_235] : memref<416x256xf32, #tpu.memory_space<vmem>>, vector<32x256xf32>
    tpu.vector_store %arg14[%c64_234, %c0_235], %401 {strides = array<i32>} : memref<416x256xf32, #tpu.memory_space<vmem>>, vector<32x256xf32>,
    %c72_i32 = arith.constant 72 : i32
    %403 = tpu.dynamic_rotate %378 by %c72_i32 dim 1 : vector<32x256xf32>, i32 -> vector<32x256xf32>
    %c72_i32_236 = arith.constant 72 : i32
    %404 = vector.broadcast %c72_i32_236 : i32 to vector<1x256xi32>
    %405 = arith.cmpi sge, %18, %404 : vector<1x256xi32>
    %cst_237 = arith.constant 0.000000e+00 : f32
    %406 = vector.broadcast %cst_237 : f32 to vector<32x256xf32>
    %407 = vector.shape_cast %405 : vector<1x256xi1> to vector<1x256xi1>
    %408 = vector.broadcast %407 : vector<1x256xi1> to vector<32x256xi1>
    %409 = arith.select %408, %403, %406 : vector<32x256xi1>, vector<32x256xf32>
    %c96_238 = arith.constant 96 : index
    %c0_239 = arith.constant 0 : index
    %410 = vector.load %arg14[%c96_238, %c0_239] : memref<416x256xf32, #tpu.memory_space<vmem>>, vector<32x256xf32>
    tpu.vector_store %arg14[%c96_238, %c0_239], %409 {strides = array<i32>} : memref<416x256xf32, #tpu.memory_space<vmem>>, vector<32x256xf32>,
    %c64_i32 = arith.constant 64 : i32
    %411 = tpu.dynamic_rotate %378 by %c64_i32 dim 1 : vector<32x256xf32>, i32 -> vector<32x256xf32>
    %c64_i32_240 = arith.constant 64 : i32
    %412 = vector.broadcast %c64_i32_240 : i32 to vector<1x256xi32>
    %413 = arith.cmpi sge, %18, %412 : vector<1x256xi32>
    %cst_241 = arith.constant 0.000000e+00 : f32
    %414 = vector.broadcast %cst_241 : f32 to vector<32x256xf32>
    %415 = vector.shape_cast %413 : vector<1x256xi1> to vector<1x256xi1>
    %416 = vector.broadcast %415 : vector<1x256xi1> to vector<32x256xi1>
    %417 = arith.select %416, %411, %414 : vector<32x256xi1>, vector<32x256xf32>
    %c128_242 = arith.constant 128 : index
    %c0_243 = arith.constant 0 : index
    %418 = vector.load %arg14[%c128_242, %c0_243] : memref<416x256xf32, #tpu.memory_space<vmem>>, vector<32x256xf32>
    tpu.vector_store %arg14[%c128_242, %c0_243], %417 {strides = array<i32>} : memref<416x256xf32, #tpu.memory_space<vmem>>, vector<32x256xf32>,
    %c56_i32 = arith.constant 56 : i32
    %419 = tpu.dynamic_rotate %378 by %c56_i32 dim 1 : vector<32x256xf32>, i32 -> vector<32x256xf32>
    %c56_i32_244 = arith.constant 56 : i32
    %420 = vector.broadcast %c56_i32_244 : i32 to vector<1x256xi32>
    %421 = arith.cmpi sge, %18, %420 : vector<1x256xi32>
    %cst_245 = arith.constant 0.000000e+00 : f32
    %422 = vector.broadcast %cst_245 : f32 to vector<32x256xf32>
    %423 = vector.shape_cast %421 : vector<1x256xi1> to vector<1x256xi1>
    %424 = vector.broadcast %423 : vector<1x256xi1> to vector<32x256xi1>
    %425 = arith.select %424, %419, %422 : vector<32x256xi1>, vector<32x256xf32>
    %c160_246 = arith.constant 160 : index
    %c0_247 = arith.constant 0 : index
    %426 = vector.load %arg14[%c160_246, %c0_247] : memref<416x256xf32, #tpu.memory_space<vmem>>, vector<32x256xf32>
    tpu.vector_store %arg14[%c160_246, %c0_247], %425 {strides = array<i32>} : memref<416x256xf32, #tpu.memory_space<vmem>>, vector<32x256xf32>,
    %c48_i32_248 = arith.constant 48 : i32
    %427 = tpu.dynamic_rotate %378 by %c48_i32_248 dim 1 : vector<32x256xf32>, i32 -> vector<32x256xf32>
    %c48_i32_249 = arith.constant 48 : i32
    %428 = vector.broadcast %c48_i32_249 : i32 to vector<1x256xi32>
    %429 = arith.cmpi sge, %18, %428 : vector<1x256xi32>
    %cst_250 = arith.constant 0.000000e+00 : f32
    %430 = vector.broadcast %cst_250 : f32 to vector<32x256xf32>
    %431 = vector.shape_cast %429 : vector<1x256xi1> to vector<1x256xi1>
    %432 = vector.broadcast %431 : vector<1x256xi1> to vector<32x256xi1>
    %433 = arith.select %432, %427, %430 : vector<32x256xi1>, vector<32x256xf32>
    %c192_251 = arith.constant 192 : index
    %c0_252 = arith.constant 0 : index
    %434 = vector.load %arg14[%c192_251, %c0_252] : memref<416x256xf32, #tpu.memory_space<vmem>>, vector<32x256xf32>
    tpu.vector_store %arg14[%c192_251, %c0_252], %433 {strides = array<i32>} : memref<416x256xf32, #tpu.memory_space<vmem>>, vector<32x256xf32>,
    %c40_i32_253 = arith.constant 40 : i32
    %435 = tpu.dynamic_rotate %378 by %c40_i32_253 dim 1 : vector<32x256xf32>, i32 -> vector<32x256xf32>
    %c40_i32_254 = arith.constant 40 : i32
    %436 = vector.broadcast %c40_i32_254 : i32 to vector<1x256xi32>
    %437 = arith.cmpi sge, %18, %436 : vector<1x256xi32>
    %cst_255 = arith.constant 0.000000e+00 : f32
    %438 = vector.broadcast %cst_255 : f32 to vector<32x256xf32>
    %439 = vector.shape_cast %437 : vector<1x256xi1> to vector<1x256xi1>
    %440 = vector.broadcast %439 : vector<1x256xi1> to vector<32x256xi1>
    %441 = arith.select %440, %435, %438 : vector<32x256xi1>, vector<32x256xf32>
    %c224_256 = arith.constant 224 : index
    %c0_257 = arith.constant 0 : index
    %442 = vector.load %arg14[%c224_256, %c0_257] : memref<416x256xf32, #tpu.memory_space<vmem>>, vector<32x256xf32>
    tpu.vector_store %arg14[%c224_256, %c0_257], %441 {strides = array<i32>} : memref<416x256xf32, #tpu.memory_space<vmem>>, vector<32x256xf32>,
    %c32_i32_258 = arith.constant 32 : i32
    %443 = tpu.dynamic_rotate %378 by %c32_i32_258 dim 1 : vector<32x256xf32>, i32 -> vector<32x256xf32>
    %c32_i32_259 = arith.constant 32 : i32
    %444 = vector.broadcast %c32_i32_259 : i32 to vector<1x256xi32>
    %445 = arith.cmpi sge, %18, %444 : vector<1x256xi32>
    %cst_260 = arith.constant 0.000000e+00 : f32
    %446 = vector.broadcast %cst_260 : f32 to vector<32x256xf32>
    %447 = vector.shape_cast %445 : vector<1x256xi1> to vector<1x256xi1>
    %448 = vector.broadcast %447 : vector<1x256xi1> to vector<32x256xi1>
    %449 = arith.select %448, %443, %446 : vector<32x256xi1>, vector<32x256xf32>
    %c256_261 = arith.constant 256 : index
    %c0_262 = arith.constant 0 : index
    %450 = vector.load %arg14[%c256_261, %c0_262] : memref<416x256xf32, #tpu.memory_space<vmem>>, vector<32x256xf32>
    tpu.vector_store %arg14[%c256_261, %c0_262], %449 {strides = array<i32>} : memref<416x256xf32, #tpu.memory_space<vmem>>, vector<32x256xf32>,
    %c24_i32_263 = arith.constant 24 : i32
    %451 = tpu.dynamic_rotate %378 by %c24_i32_263 dim 1 : vector<32x256xf32>, i32 -> vector<32x256xf32>
    %c24_i32_264 = arith.constant 24 : i32
    %452 = vector.broadcast %c24_i32_264 : i32 to vector<1x256xi32>
    %453 = arith.cmpi sge, %18, %452 : vector<1x256xi32>
    %cst_265 = arith.constant 0.000000e+00 : f32
    %454 = vector.broadcast %cst_265 : f32 to vector<32x256xf32>
    %455 = vector.shape_cast %453 : vector<1x256xi1> to vector<1x256xi1>
    %456 = vector.broadcast %455 : vector<1x256xi1> to vector<32x256xi1>
    %457 = arith.select %456, %451, %454 : vector<32x256xi1>, vector<32x256xf32>
    %c288_266 = arith.constant 288 : index
    %c0_267 = arith.constant 0 : index
    %458 = vector.load %arg14[%c288_266, %c0_267] : memref<416x256xf32, #tpu.memory_space<vmem>>, vector<32x256xf32>
    tpu.vector_store %arg14[%c288_266, %c0_267], %457 {strides = array<i32>} : memref<416x256xf32, #tpu.memory_space<vmem>>, vector<32x256xf32>,
    %c16_i32_268 = arith.constant 16 : i32
    %459 = tpu.dynamic_rotate %378 by %c16_i32_268 dim 1 : vector<32x256xf32>, i32 -> vector<32x256xf32>
    %c16_i32_269 = arith.constant 16 : i32
    %460 = vector.broadcast %c16_i32_269 : i32 to vector<1x256xi32>
    %461 = arith.cmpi sge, %18, %460 : vector<1x256xi32>
    %cst_270 = arith.constant 0.000000e+00 : f32
    %462 = vector.broadcast %cst_270 : f32 to vector<32x256xf32>
    %463 = vector.shape_cast %461 : vector<1x256xi1> to vector<1x256xi1>
    %464 = vector.broadcast %463 : vector<1x256xi1> to vector<32x256xi1>
    %465 = arith.select %464, %459, %462 : vector<32x256xi1>, vector<32x256xf32>
    %c320_271 = arith.constant 320 : index
    %c0_272 = arith.constant 0 : index
    %466 = vector.load %arg14[%c320_271, %c0_272] : memref<416x256xf32, #tpu.memory_space<vmem>>, vector<32x256xf32>
    tpu.vector_store %arg14[%c320_271, %c0_272], %465 {strides = array<i32>} : memref<416x256xf32, #tpu.memory_space<vmem>>, vector<32x256xf32>,
    %c8_i32_273 = arith.constant 8 : i32
    %467 = tpu.dynamic_rotate %378 by %c8_i32_273 dim 1 : vector<32x256xf32>, i32 -> vector<32x256xf32>
    %c8_i32_274 = arith.constant 8 : i32
    %468 = vector.broadcast %c8_i32_274 : i32 to vector<1x256xi32>
    %469 = arith.cmpi sge, %18, %468 : vector<1x256xi32>
    %cst_275 = arith.constant 0.000000e+00 : f32
    %470 = vector.broadcast %cst_275 : f32 to vector<32x256xf32>
    %471 = vector.shape_cast %469 : vector<1x256xi1> to vector<1x256xi1>
    %472 = vector.broadcast %471 : vector<1x256xi1> to vector<32x256xi1>
    %473 = arith.select %472, %467, %470 : vector<32x256xi1>, vector<32x256xf32>
    %c352_276 = arith.constant 352 : index
    %c0_277 = arith.constant 0 : index
    %474 = vector.load %arg14[%c352_276, %c0_277] : memref<416x256xf32, #tpu.memory_space<vmem>>, vector<32x256xf32>
    tpu.vector_store %arg14[%c352_276, %c0_277], %473 {strides = array<i32>} : memref<416x256xf32, #tpu.memory_space<vmem>>, vector<32x256xf32>,
    %c384_278 = arith.constant 384 : index
    %c0_279 = arith.constant 0 : index
    %475 = vector.load %arg14[%c384_278, %c0_279] : memref<416x256xf32, #tpu.memory_space<vmem>>, vector<32x256xf32>
    tpu.vector_store %arg14[%c384_278, %c0_279], %378 {strides = array<i32>} : memref<416x256xf32, #tpu.memory_space<vmem>>, vector<32x256xf32>,
    %c3 = arith.constant 3 : index
    %c0_280 = arith.constant 0 : index
    %c0_281 = arith.constant 0 : index
    %476 = vector.load %arg6[%c3, %c0_280, %c0_281] : memref<4x32x416xf32, #tpu.memory_space<vmem>>, vector<1x32x416xf32>
    %477 = vector.shape_cast %476 : vector<1x32x416xf32> to vector<32x416xf32>
    %c0_282 = arith.constant 0 : index
    %c0_283 = arith.constant 0 : index
    %478 = vector.load %arg14[%c0_282, %c0_283] : memref<416x256xf32, #tpu.memory_space<vmem>>, vector<416x256xf32>
    %cst_284 = arith.constant dense<0.000000e+00> : vector<32x256xf32>
    %479 = tpu.matmul %477, %478, %cst_284 {dimension_numbers = #tpu.dot_dimension_numbers<[1], [0], [0], [1], [0, 0, 1, 1], [], []>} : vector<32x416xf32>, vector<416x256xf32>, vector<32x256xf32> -> vector<32x256xf32>
    %c0_285 = arith.constant 0 : index
    %c0_286 = arith.constant 0 : index
    %480 = vector.load %arg13[%c0_285, %c0_286] : memref<32x256xf32, #tpu.memory_space<vmem>>, vector<32x256xf32>
    %c3_287 = arith.constant 3 : index
    %c0_288 = arith.constant 0 : index
    %c0_289 = arith.constant 0 : index
    %481 = vector.load %arg7[%c3_287, %c0_288, %c0_289] : memref<4x32x1xf32, #tpu.memory_space<vmem>>, vector<1x32x1xf32>
    %482 = vector.shape_cast %481 : vector<1x32x1xf32> to vector<32x1xf32>
    %483 = vector.broadcast %482 : vector<32x1xf32> to vector<32x256xf32>
    %484 = arith.addf %479, %483 : vector<32x256xf32>
    %cst_290 = arith.constant 0.000000e+00 : f32
    %485 = vector.broadcast %cst_290 : f32 to vector<32x256xf32>
    %486 = arith.maximumf %484, %485 : vector<32x256xf32>
    %487 = arith.addf %480, %486 : vector<32x256xf32>
    %c0_291 = arith.constant 0 : index
    %c0_292 = arith.constant 0 : index
    %488 = vector.load %arg13[%c0_291, %c0_292] : memref<32x256xf32, #tpu.memory_space<vmem>>, vector<32x256xf32>
    tpu.vector_store %arg13[%c0_291, %c0_292], %487 {strides = array<i32>} : memref<32x256xf32, #tpu.memory_space<vmem>>, vector<32x256xf32>,
    %c0_293 = arith.constant 0 : index
    %c0_294 = arith.constant 0 : index
    %489 = vector.load %arg8[%c0_293, %c0_294] : memref<8x32xf32, #tpu.memory_space<vmem>>, vector<8x32xf32>
    %c0_295 = arith.constant 0 : index
    %c0_296 = arith.constant 0 : index
    %490 = vector.load %arg13[%c0_295, %c0_296] : memref<32x256xf32, #tpu.memory_space<vmem>>, vector<32x256xf32>
    %cst_297 = arith.constant dense<0.000000e+00> : vector<8x256xf32>
    %491 = tpu.matmul %489, %490, %cst_297 {dimension_numbers = #tpu.dot_dimension_numbers<[1], [0], [0], [1], [0, 0, 1, 1], [], []>} : vector<8x32xf32>, vector<32x256xf32>, vector<8x256xf32> -> vector<8x256xf32>
    %c0_298 = arith.constant 0 : index
    %c0_299 = arith.constant 0 : index
    %492 = vector.load %arg9[%c0_298, %c0_299] : memref<8x1xf32, #tpu.memory_space<vmem>>, vector<8x1xf32>
    %493 = vector.broadcast %492 : vector<8x1xf32> to vector<8x256xf32>
    %494 = arith.addf %491, %493 : vector<8x256xf32>
    %495 = vector.extract_strided_slice %20 {offsets = [0, 0], sizes = [1, 128], strides = [1, 1]} : vector<2x128xf32> to vector<1x128xf32>
    %496 = vector.broadcast %1 : f32 to vector<1x128xf32>
    %497 = arith.mulf %496, %495 : vector<1x128xf32>
    %498 = vector.extract_strided_slice %494 {offsets = [0, 0], sizes = [1, 128], strides = [1, 1]} : vector<8x256xf32> to vector<1x128xf32>
    %499 = arith.addf %497, %498 : vector<1x128xf32>
    %c0_300 = arith.constant 0 : index
    %c0_301 = arith.constant 0 : index
    %500 = vector.load %arg10[%c0_300, %c0_301] : memref<2x128xf32, #tpu.memory_space<vmem>>, vector<1x128xf32>
    tpu.vector_store %arg10[%c0_300, %c0_301], %499 {strides = array<i32>} : memref<2x128xf32, #tpu.memory_space<vmem>>, vector<1x128xf32>,
    %501 = vector.extract_strided_slice %494 {offsets = [1, 0], sizes = [1, 128], strides = [1, 1]} : vector<8x256xf32> to vector<1x128xf32>
    %c0_302 = arith.constant 0 : index
    %c0_303 = arith.constant 0 : index
    %502 = vector.load %arg11[%c0_302, %c0_303] : memref<2x128xf32, #tpu.memory_space<vmem>>, vector<1x128xf32>
    tpu.vector_store %arg11[%c0_302, %c0_303], %501 {strides = array<i32>} : memref<2x128xf32, #tpu.memory_space<vmem>>, vector<1x128xf32>,
    %503 = vector.extract_strided_slice %20 {offsets = [1, 0], sizes = [1, 128], strides = [1, 1]} : vector<2x128xf32> to vector<1x128xf32>
    %504 = vector.broadcast %1 : f32 to vector<1x128xf32>
    %505 = arith.mulf %504, %503 : vector<1x128xf32>
    %506 = vector.extract_strided_slice %494 {offsets = [0, 128], sizes = [1, 128], strides = [1, 1]} : vector<8x256xf32> to vector<1x128xf32>
    %507 = arith.addf %505, %506 : vector<1x128xf32>
    %c1_304 = arith.constant 1 : index
    %c0_305 = arith.constant 0 : index
    %508 = vector.load %arg10[%c1_304, %c0_305] : memref<2x128xf32, #tpu.memory_space<vmem>>, vector<1x128xf32>
    tpu.vector_store %arg10[%c1_304, %c0_305], %507 {strides = array<i32>} : memref<2x128xf32, #tpu.memory_space<vmem>>, vector<1x128xf32>,
    %509 = vector.extract_strided_slice %494 {offsets = [1, 128], sizes = [1, 128], strides = [1, 1]} : vector<8x256xf32> to vector<1x128xf32>
    %c1_306 = arith.constant 1 : index
    %c0_307 = arith.constant 0 : index
    %510 = vector.load %arg11[%c1_306, %c0_307] : memref<2x128xf32, #tpu.memory_space<vmem>>, vector<1x128xf32>
    tpu.vector_store %arg11[%c1_306, %c0_307], %509 {strides = array<i32>} : memref<2x128xf32, #tpu.memory_space<vmem>>, vector<1x128xf32>,
    return
  }
  func.func @transform_0(%arg0: i32) -> (i32, i32) {
    %c0_i32 = arith.constant 0 : i32
    %c0_i32_0 = arith.constant 0 : i32
    %c0_i32_1 = arith.constant 0 : i32
    return %c0_i32, %c0_i32_0 : i32, i32
  }
  func.func @transform_1(%arg0: i32) -> (i32, i32) {
    %c0_i32 = arith.constant 0 : i32
    %c0_i32_0 = arith.constant 0 : i32
    return %arg0, %c0_i32 : i32, i32
  }
  func.func @transform_2(%arg0: i32) -> (i32, i32) {
    %c0_i32 = arith.constant 0 : i32
    %c0_i32_0 = arith.constant 0 : i32
    return %arg0, %c0_i32 : i32, i32
  }
  func.func @transform_3(%arg0: i32) -> (i32, i32) {
    %c0_i32 = arith.constant 0 : i32
    %c0_i32_0 = arith.constant 0 : i32
    %c0_i32_1 = arith.constant 0 : i32
    return %c0_i32, %c0_i32_0 : i32, i32
  }
  func.func @transform_4(%arg0: i32) -> (i32, i32) {
    %c0_i32 = arith.constant 0 : i32
    %c0_i32_0 = arith.constant 0 : i32
    %c0_i32_1 = arith.constant 0 : i32
    return %c0_i32, %c0_i32_0 : i32, i32
  }
  func.func @transform_5(%arg0: i32) -> (i32, i32, i32) {
    %c0_i32 = arith.constant 0 : i32
    %c0_i32_0 = arith.constant 0 : i32
    %c0_i32_1 = arith.constant 0 : i32
    %c0_i32_2 = arith.constant 0 : i32
    return %c0_i32, %c0_i32_0, %c0_i32_1 : i32, i32, i32
  }
  func.func @transform_6(%arg0: i32) -> (i32, i32, i32) {
    %c0_i32 = arith.constant 0 : i32
    %c0_i32_0 = arith.constant 0 : i32
    %c0_i32_1 = arith.constant 0 : i32
    %c0_i32_2 = arith.constant 0 : i32
    return %c0_i32, %c0_i32_0, %c0_i32_1 : i32, i32, i32
  }
  func.func @transform_7(%arg0: i32) -> (i32, i32) {
    %c0_i32 = arith.constant 0 : i32
    %c0_i32_0 = arith.constant 0 : i32
    %c0_i32_1 = arith.constant 0 : i32
    return %c0_i32, %c0_i32_0 : i32, i32
  }
  func.func @transform_8(%arg0: i32) -> (i32, i32) {
    %c0_i32 = arith.constant 0 : i32
    %c0_i32_0 = arith.constant 0 : i32
    %c0_i32_1 = arith.constant 0 : i32
    return %c0_i32, %c0_i32_0 : i32, i32
  }
  func.func @transform_9(%arg0: i32) -> (i32, i32) {
    %c0_i32 = arith.constant 0 : i32
    %c0_i32_0 = arith.constant 0 : i32
    return %arg0, %c0_i32 : i32, i32
  }
  func.func @transform_10(%arg0: i32) -> (i32, i32) {
    %c0_i32 = arith.constant 0 : i32
    %c0_i32_0 = arith.constant 0 : i32
    return %arg0, %c0_i32 : i32, i32
  }
}

</mosaic_0001>

<llo_original>
// kernel: tpu_custom_call.1
$region0: #{tpu_custom_call.1}
  #allocation0 [shape = 'u32[]', space=smem, size = 0x4, offset = 0x4, fixed_abs, tag = 'smem constant byte address 0x4 - core index']
  #allocation1 [shape = 'u32[72,128]{1,0:T(1,128)}', space=vmem, size = 0x9000, scoped, tag = 'internal scratch']
  #allocation2 [shape = 'f32[1,256]{1,0:T(1,128)}', space=vmem, size = 0x400, scoped, tag = 'scratch operand']
  #allocation3 [shape = 'f32[32,256]{1,0:T(8,128)}', space=vmem, size = 0x8000, scoped, tag = 'scratch operand']
  #allocation4 [shape = 'f32[416,256]{1,0:T(8,128)}', space=vmem, size = 0x68000, scoped, tag = 'scratch operand']
  %s0 = inlined_call_operand.vmem [shape: f32[1,2], index: 0, kind: input, shape index: {}]
  %s1 = inlined_call_operand.vmem [shape: f32[2,128], index: 1, kind: input, shape index: {}]
  %s2 = inlined_call_operand.vmem [shape: f32[2,128], index: 2, kind: input, shape index: {}]
  %s3 = inlined_call_operand.vmem [shape: f32[32,1], index: 3, kind: input, shape index: {}]
  %s4 = inlined_call_operand.vmem [shape: f32[32,1], index: 4, kind: input, shape index: {}]
  %s5 = inlined_call_operand.hbm [shape: f32[4,32,416], index: 5, kind: input, shape index: {}]
  %s6 = inlined_call_operand.vmem [shape: f32[4,32,1], index: 6, kind: input, shape index: {}]
  %s7 = inlined_call_operand.vmem [shape: f32[8,32], index: 7, kind: input, shape index: {}]
  %s8 = inlined_call_operand.vmem [shape: f32[8,1], index: 8, kind: input, shape index: {}]
  %s9 = inlined_call_operand.hbm [shape: f32[2,128], index: 9, kind: output, shape index: {0}]
  %s10 = inlined_call_operand.hbm [shape: f32[2,128], index: 10, kind: output, shape index: {1}]
  %11 = xla_tuple %s9, %s10
  %s12 = sld [smem:[#allocation0]]
  $region62: #{tpu_custom_call.1} parent=0
    _
  %s14 = ssub.s32 1, %s12
  %s15 = scalar_select 0, %s14, %s12
  $region1: #{tpu_custom_call.1} parent=0
    #allocation5 [shape = 'u8[512]{0}', space=smem, size = 0x200, scoped, tag = 'input window, operand 0, single buffered']
    #allocation6 [shape = 's32[1]{0}', space=sflag, size = 0x4, scoped, tag = 'scoped memory for tpu_custom_call.1']
    #allocation7 [shape = 's32[1]{0}', space=sflag, size = 0x4, scoped, tag = 'scoped memory for tpu_custom_call.1']
    #allocation8 [shape = 's32[1]{0}', space=sflag, size = 0x4, scoped, tag = 'scoped memory for tpu_custom_call.1']
    #allocation9 [shape = 'u8[262144]{0}', space=vmem, size = 0x40000, scoped, tag = 'input window, operand 5, single buffered']
    #allocation10 [shape = 'u8[1024]{0}', space=vmem, size = 0x400, scoped, tag = 'output window, operand 0, single buffered']
    #allocation11 [shape = 'u8[1024]{0}', space=vmem, size = 0x400, scoped, tag = 'output window, operand 1, single buffered']
    #allocation12 [shape = 's32[1]{0}', space=sflag, size = 0x4, scoped, tag = 'scoped memory for tpu_custom_call.1']
    %16 = vsyncpa [#allocation8], 0
    %17 = vsyncpa [#allocation6], 0
    %18 = vsyncpa [#allocation7], 0
    %19 = vsyncpa [#allocation12], 0
    // Predicated region
    $region2: #{tpu_custom_call.1} parent=1 // pred_check
      _
    $region3: #{tpu_custom_call.1} parent=1 // pred_check_branch
      %21 = sbr.rel (0) target = $region5
    $region4: #{tpu_custom_call.1} parent=1 // pred_region
      %23 = vsyncadd [#allocation8], 0
      %s25 = sshll.u32 %s0, 4
      %s26 = int_to_ptr.vmem [resolvable:$true] %s25
      %28 = dma.vmem_to_smem %s26, 16, [#allocation5], [#allocation8]
    $region5: #{tpu_custom_call.1} parent=1 // pred_fallthru
      _
    // Predicated region
    $region6: #{tpu_custom_call.1} parent=1 // pred_check
      _
    $region7: #{tpu_custom_call.1} parent=1 // pred_check_branch
      %30 = sbr.rel (0) target = $region9
    $region8: #{tpu_custom_call.1} parent=1 // pred_region
      _
    $region9: #{tpu_custom_call.1} parent=1 // pred_fallthru
      _
    // Predicated region
    $region10: #{tpu_custom_call.1} parent=1 // pred_check
      _
    $region11: #{tpu_custom_call.1} parent=1 // pred_check_branch
      %32 = sbr.rel (0) target = $region13
    $region12: #{tpu_custom_call.1} parent=1 // pred_region
      _
    $region13: #{tpu_custom_call.1} parent=1 // pred_fallthru
      _
    // Predicated region
    $region14: #{tpu_custom_call.1} parent=1 // pred_check
      _
    $region15: #{tpu_custom_call.1} parent=1 // pred_check_branch
      %34 = sbr.rel (0) target = $region17
    $region16: #{tpu_custom_call.1} parent=1 // pred_region
      _
    $region17: #{tpu_custom_call.1} parent=1 // pred_fallthru
      _
    // Predicated region
    $region18: #{tpu_custom_call.1} parent=1 // pred_check
      _
    $region19: #{tpu_custom_call.1} parent=1 // pred_check_branch
      %36 = sbr.rel (0) target = $region21
    $region20: #{tpu_custom_call.1} parent=1 // pred_region
      _
    $region21: #{tpu_custom_call.1} parent=1 // pred_fallthru
      _
    // Predicated region
    $region22: #{tpu_custom_call.1} parent=1 // pred_check
      _
    $region23: #{tpu_custom_call.1} parent=1 // pred_check_branch
      %38 = sbr.rel (0) target = $region25
    $region24: #{tpu_custom_call.1} parent=1 // pred_region
      %40 = vsyncadd [#allocation6], 0
      %s41 = sshll.u32 %s5, 4
      %s42 = int_to_ptr.hbm [resolvable:$true] %s41
      %s43 = sshll.u32 [#allocation9], 4
      %s44 = int_to_ptr.vmem [resolvable:$true] %s43
      %49 = dma.hbm_to_vmem [thread:$0]  %s42, 8192, %s44, [#allocation6], 512, 512, 32
    $region25: #{tpu_custom_call.1} parent=1 // pred_fallthru
      _
    // Predicated region
    $region26: #{tpu_custom_call.1} parent=1 // pred_check
      _
    $region27: #{tpu_custom_call.1} parent=1 // pred_check_branch
      %51 = sbr.rel (0) target = $region29
    $region28: #{tpu_custom_call.1} parent=1 // pred_region
      _
    $region29: #{tpu_custom_call.1} parent=1 // pred_fallthru
      _
    // Predicated region
    $region30: #{tpu_custom_call.1} parent=1 // pred_check
      _
    $region31: #{tpu_custom_call.1} parent=1 // pred_check_branch
      %53 = sbr.rel (0) target = $region33
    $region32: #{tpu_custom_call.1} parent=1 // pred_region
      _
    $region33: #{tpu_custom_call.1} parent=1 // pred_fallthru
      _
    // Predicated region
    $region34: #{tpu_custom_call.1} parent=1 // pred_check
      _
    $region35: #{tpu_custom_call.1} parent=1 // pred_check_branch
      %55 = sbr.rel (0) target = $region37
    $region36: #{tpu_custom_call.1} parent=1 // pred_region
      _
    $region37: #{tpu_custom_call.1} parent=1 // pred_fallthru
      _
    // Predicated region
    $region38: #{tpu_custom_call.1} parent=1 // pred_check
      _
    $region39: #{tpu_custom_call.1} parent=1 // pred_check_branch
      %57 = sbr.rel (0) target = $region41
    $region40: #{tpu_custom_call.1} parent=1 // pred_region
      %59 = dma.done [#allocation8], 16
    $region41: #{tpu_custom_call.1} parent=1 // pred_fallthru
      _
    // Predicated region
    $region42: #{tpu_custom_call.1} parent=1 // pred_check
      _
    $region43: #{tpu_custom_call.1} parent=1 // pred_check_branch
      %61 = sbr.rel (0) target = $region45
    $region44: #{tpu_custom_call.1} parent=1 // pred_region
      %63 = dma.done [#allocation6], 8192
    $region45: #{tpu_custom_call.1} parent=1 // pred_fallthru
      _
    %64 = sfence
    %s65 = sld [smem:[#allocation5]]
    %s66 = sld [smem:[#allocation5 + $0x1]]
    %v67 = vlaneseq
    %v68 = vand.u32 %v67, 127
    %v69 = vadd.s32 %v68, 128
    %vm70 = vcmp.lt.s32.totalorder %v68, 0
    %v71 = vsub.s32 0, %v68
    %v72 = vsel %vm70, %v71, %v68
    %v73 = vshrl.u32 %v72, 7
    %v74 = vand.u32 %v72, 127
    %v75 = vsub.s32 0, %v74
    %v76 = vsel %vm70, %v75, %v74
    %vm77 = vcmp.lt.s32.totalorder %v69, 0
    %v78 = vsub.s32 0, %v69
    %v79 = vsel %vm77, %v78, %v69
    %v80 = vshrl.u32 %v79, 7
    %v81 = vand.u32 %v79, 127
    %v82 = vsub.s32 0, %v81
    %v83 = vsel %vm77, %v82, %v81
    %vm84 = vcmp.ne.s32.totalorder %v76, 0
    %vm85 = vcmp.ne.s32.totalorder %v83, 0
    %vm86 = vcmp.lt.s32.totalorder %v76, 0
    %vm87 = vcmp.lt.s32.totalorder %v83, 0
    %vm88 = vmand %vm86, %vm84
    %vm89 = vmand %vm87, %vm85
    %v90 = vadd.s32 %v76, 128
    %v91 = vadd.s32 %v83, 128
    %v92 = vsel %vm88, %v90, %v76
    %v93 = vsel %vm89, %v91, %v83
    %v94 = vld [vmem:[%s1] sm:$0x3]
    %v95 = vld [vmem:[%s2] sm:$0x3]
    %v96 = vstv %s65
    %v97 = vmul.f32 %v96, %v94
    %v98 = vsub.f32 %v95, %v97
    %vm99 = vcmp.ge.s32.totalorder %v68, 1
    %100 = vrot.lane.b32.xlu0 %v98, 1
    %v101 = vpop.permute.xlu0 %100
    %v102 = vsel %vm99, %v101, 0.0
    %v103 = vlaneseq
    %vm104 = vcmp.ge.s32.totalorder %v103, 0
    %vm105 = vcmp.lt.s32.totalorder %v103, 128
    %vm106 = vmand %vm104, %vm105
    %107 = vst.msk [vmem:[#allocation2] sm:$0x1] %vm106, %v102
    %109 = vst [vmem:[#allocation1] sm:$0xff] %v102
    %s110 = scalar_lea.vmem [#allocation1], 1
    %v111 = vld [vmem:[%s110] ss:$9 sm:$0xff]
    %113 = vst.msk [vmem:[#allocation2 + $0x1] sm:$0x1] %vm106, %v111
    %v114 = vld [vmem:[%s3] sm:$0xff]
    %v115 = vld [vmem:[%s3 + $0x8] sm:$0xff]
    %v116 = vld [vmem:[%s3 + $0x10] sm:$0xff]
    %v117 = vld [vmem:[%s3 + $0x18] sm:$0xff]
    %v118 = vld [vmem:[#allocation2] sm:$0x3]
    %120 = vset.pattern.permute.xlu0 0
    %121 = vperm.xlu0 %120, %v114
    %v122 = vpop.permute.xlu0 %121
    %125 = vset.pattern.permute.xlu0 0
    %126 = vperm.xlu0 %125, %v115
    %v127 = vpop.permute.xlu0 %126
    %130 = vset.pattern.permute.xlu0 0
    %131 = vperm.xlu0 %130, %v116
    %v132 = vpop.permute.xlu0 %131
    %135 = vset.pattern.permute.xlu0 0
    %136 = vperm.xlu0 %135, %v117
    %v137 = vpop.permute.xlu0 %136
    %v140 = vperm.slane %v118, 0
    %v141 = vperm.slane %v118, 1
    %v144 = vmul.f32 %v122, %v140
    %v145 = vmul.f32 %v122, %v141
    %v146 = vmul.f32 %v127, %v140
    %v147 = vmul.f32 %v127, %v141
    %v148 = vmul.f32 %v132, %v140
    %v149 = vmul.f32 %v132, %v141
    %v150 = vmul.f32 %v137, %v140
    %v151 = vmul.f32 %v137, %v141
    %v152 = vld [vmem:[%s4] sm:$0xff]
    %v153 = vld [vmem:[%s4 + $0x8] sm:$0xff]
    %v154 = vld [vmem:[%s4 + $0x10] sm:$0xff]
    %v155 = vld [vmem:[%s4 + $0x18] sm:$0xff]
    %157 = vset.pattern.permute.xlu0 0
    %158 = vperm.xlu0 %157, %v152
    %v159 = vpop.permute.xlu0 %158
    %162 = vset.pattern.permute.xlu0 0
    %163 = vperm.xlu0 %162, %v153
    %v164 = vpop.permute.xlu0 %163
    %167 = vset.pattern.permute.xlu0 0
    %168 = vperm.xlu0 %167, %v154
    %v169 = vpop.permute.xlu0 %168
    %172 = vset.pattern.permute.xlu0 0
    %173 = vperm.xlu0 %172, %v155
    %v174 = vpop.permute.xlu0 %173
    %v176 = vadd.f32 %v144, %v159
    %v177 = vadd.f32 %v145, %v159
    %v178 = vadd.f32 %v146, %v164
    %v179 = vadd.f32 %v147, %v164
    %v180 = vadd.f32 %v148, %v169
    %v181 = vadd.f32 %v149, %v169
    %v182 = vadd.f32 %v150, %v174
    %v183 = vadd.f32 %v151, %v174
    %v184 = vmax.f32 %v176, 0.0
    %v185 = vmax.f32 %v177, 0.0
    %v186 = vmax.f32 %v178, 0.0
    %v187 = vmax.f32 %v179, 0.0
    %v188 = vmax.f32 %v180, 0.0
    %v189 = vmax.f32 %v181, 0.0
    %v190 = vmax.f32 %v182, 0.0
    %v191 = vmax.f32 %v183, 0.0
    %192 = vst [vmem:[#allocation3] sm:$0xff] %v184
    %193 = vst [vmem:[#allocation3 + $0x8] sm:$0xff] %v185
    %194 = vst [vmem:[#allocation3 + $0x10] sm:$0xff] %v186
    %195 = vst [vmem:[#allocation3 + $0x18] sm:$0xff] %v187
    %196 = vst [vmem:[#allocation3 + $0x20] sm:$0xff] %v188
    %197 = vst [vmem:[#allocation3 + $0x28] sm:$0xff] %v189
    %198 = vst [vmem:[#allocation3 + $0x30] sm:$0xff] %v190
    %199 = vst [vmem:[#allocation3 + $0x38] sm:$0xff] %v191
    %v200 = vld [vmem:[#allocation3] sm:$0xff]
    %v201 = vld [vmem:[#allocation3 + $0x8] sm:$0xff]
    %v202 = vld [vmem:[#allocation3 + $0x10] sm:$0xff]
    %v203 = vld [vmem:[#allocation3 + $0x18] sm:$0xff]
    %v204 = vld [vmem:[#allocation3 + $0x20] sm:$0xff]
    %v205 = vld [vmem:[#allocation3 + $0x28] sm:$0xff]
    %v206 = vld [vmem:[#allocation3 + $0x30] sm:$0xff]
    %v207 = vld [vmem:[#allocation3 + $0x38] sm:$0xff]
    %208 = vrot.lane.b32.xlu0 %v200, 12
    %v209 = vpop.permute.xlu0 %208
    %210 = vrot.lane.b32.xlu0 %v202, 12
    %v211 = vpop.permute.xlu0 %210
    %212 = vrot.lane.b32.xlu0 %v204, 12
    %v213 = vpop.permute.xlu0 %212
    %214 = vrot.lane.b32.xlu0 %v206, 12
    %v215 = vpop.permute.xlu0 %214
    %216 = vrot.lane.b32.xlu0 %v201, 12
    %v217 = vpop.permute.xlu0 %216
    %218 = vrot.lane.b32.xlu0 %v203, 12
    %v219 = vpop.permute.xlu0 %218
    %220 = vrot.lane.b32.xlu0 %v205, 12
    %v221 = vpop.permute.xlu0 %220
    %222 = vrot.lane.b32.xlu0 %v207, 12
    %v223 = vpop.permute.xlu0 %222
    %vm224 = vcmp.lt.s32.totalorder %v68, 12
    %v225 = vsel %vm224, %v209, %v217
    %v226 = vsel %vm224, %v211, %v219
    %v227 = vsel %vm224, %v213, %v221
    %v228 = vsel %vm224, %v215, %v223
    %v229 = vsel %vm224, %v217, %v209
    %v230 = vsel %vm224, %v219, %v211
    %v231 = vsel %vm224, %v221, %v213
    %v232 = vsel %vm224, %v223, %v215
    %vm233 = vcmp.ge.s32.totalorder %v92, 12
    %vm234 = vcmp.ge.s32.totalorder %v93, 12
    %v235 = vsel %vm233, 1, 0
    %v236 = vsel %vm234, 1, 0
    %vm237 = vcmp.eq.s32.totalorder %v235, 1
    %vm238 = vcmp.eq.s32.totalorder %v236, 1
    %v239 = vsel %vm237, %v229, 0.0
    %v240 = vsel %vm238, %v225, 0.0
    %v241 = vsel %vm237, %v230, 0.0
    %v242 = vsel %vm238, %v226, 0.0
    %v243 = vsel %vm237, %v231, 0.0
    %v244 = vsel %vm238, %v227, 0.0
    %v245 = vsel %vm237, %v232, 0.0
    %v246 = vsel %vm238, %v228, 0.0
    %247 = vst [vmem:[#allocation4] sm:$0xff] %v239
    %248 = vst [vmem:[#allocation4 + $0x8] sm:$0xff] %v240
    %249 = vst [vmem:[#allocation4 + $0x10] sm:$0xff] %v241
    %250 = vst [vmem:[#allocation4 + $0x18] sm:$0xff] %v242
    %251 = vst [vmem:[#allocation4 + $0x20] sm:$0xff] %v243
    %252 = vst [vmem:[#allocation4 + $0x28] sm:$0xff] %v244
    %253 = vst [vmem:[#allocation4 + $0x30] sm:$0xff] %v245
    %254 = vst [vmem:[#allocation4 + $0x38] sm:$0xff] %v246
    %255 = vrot.lane.b32.xlu0 %v200, 11
    %v256 = vpop.permute.xlu0 %255
    %257 = vrot.lane.b32.xlu0 %v202, 11
    %v258 = vpop.permute.xlu0 %257
    %259 = vrot.lane.b32.xlu0 %v204, 11
    %v260 = vpop.permute.xlu0 %259
    %261 = vrot.lane.b32.xlu0 %v206, 11
    %v262 = vpop.permute.xlu0 %261
    %263 = vrot.lane.b32.xlu0 %v201, 11
    %v264 = vpop.permute.xlu0 %263
    %265 = vrot.lane.b32.xlu0 %v203, 11
    %v266 = vpop.permute.xlu0 %265
    %267 = vrot.lane.b32.xlu0 %v205, 11
    %v268 = vpop.permute.xlu0 %267
    %269 = vrot.lane.b32.xlu0 %v207, 11
    %v270 = vpop.permute.xlu0 %269
    %vm271 = vcmp.lt.s32.totalorder %v68, 11
    %v272 = vsel %vm271, %v256, %v264
    %v273 = vsel %vm271, %v258, %v266
    %v274 = vsel %vm271, %v260, %v268
    %v275 = vsel %vm271, %v262, %v270
    %v276 = vsel %vm271, %v264, %v256
    %v277 = vsel %vm271, %v266, %v258
    %v278 = vsel %vm271, %v268, %v260
    %v279 = vsel %vm271, %v270, %v262
    %vm280 = vcmp.ge.s32.totalorder %v92, 11
    %vm281 = vcmp.ge.s32.totalorder %v93, 11
    %v282 = vsel %vm280, 1, 0
    %v283 = vsel %vm281, 1, 0
    %vm284 = vcmp.eq.s32.totalorder %v282, 1
    %vm285 = vcmp.eq.s32.totalorder %v283, 1
    %v286 = vsel %vm284, %v276, 0.0
    %v287 = vsel %vm285, %v272, 0.0
    %v288 = vsel %vm284, %v277, 0.0
    %v289 = vsel %vm285, %v273, 0.0
    %v290 = vsel %vm284, %v278, 0.0
    %v291 = vsel %vm285, %v274, 0.0
    %v292 = vsel %vm284, %v279, 0.0
    %v293 = vsel %vm285, %v275, 0.0
    %294 = vst [vmem:[#allocation4 + $0x40] sm:$0xff] %v286
    %295 = vst [vmem:[#allocation4 + $0x48] sm:$0xff] %v287
    %296 = vst [vmem:[#allocation4 + $0x50] sm:$0xff] %v288
    %297 = vst [vmem:[#allocation4 + $0x58] sm:$0xff] %v289
    %298 = vst [vmem:[#allocation4 + $0x60] sm:$0xff] %v290
    %299 = vst [vmem:[#allocation4 + $0x68] sm:$0xff] %v291
    %300 = vst [vmem:[#allocation4 + $0x70] sm:$0xff] %v292
    %301 = vst [vmem:[#allocation4 + $0x78] sm:$0xff] %v293
    %302 = vrot.lane.b32.xlu0 %v200, 10
    %v303 = vpop.permute.xlu0 %302
    %304 = vrot.lane.b32.xlu0 %v202, 10
    %v305 = vpop.permute.xlu0 %304
    %306 = vrot.lane.b32.xlu0 %v204, 10
    %v307 = vpop.permute.xlu0 %306
    %308 = vrot.lane.b32.xlu0 %v206, 10
    %v309 = vpop.permute.xlu0 %308
    %310 = vrot.lane.b32.xlu0 %v201, 10
    %v311 = vpop.permute.xlu0 %310
    %312 = vrot.lane.b32.xlu0 %v203, 10
    %v313 = vpop.permute.xlu0 %312
    %314 = vrot.lane.b32.xlu0 %v205, 10
    %v315 = vpop.permute.xlu0 %314
    %316 = vrot.lane.b32.xlu0 %v207, 10
    %v317 = vpop.permute.xlu0 %316
    %vm318 = vcmp.lt.s32.totalorder %v68, 10
    %v319 = vsel %vm318, %v303, %v311
    %v320 = vsel %vm318, %v305, %v313
    %v321 = vsel %vm318, %v307, %v315
    %v322 = vsel %vm318, %v309, %v317
    %v323 = vsel %vm318, %v311, %v303
    %v324 = vsel %vm318, %v313, %v305
    %v325 = vsel %vm318, %v315, %v307
    %v326 = vsel %vm318, %v317, %v309
    %vm327 = vcmp.ge.s32.totalorder %v92, 10
    %vm328 = vcmp.ge.s32.totalorder %v93, 10
    %v329 = vsel %vm327, 1, 0
    %v330 = vsel %vm328, 1, 0
    %vm331 = vcmp.eq.s32.totalorder %v329, 1
    %vm332 = vcmp.eq.s32.totalorder %v330, 1
    %v333 = vsel %vm331, %v323, 0.0
    %v334 = vsel %vm332, %v319, 0.0
    %v335 = vsel %vm331, %v324, 0.0
    %v336 = vsel %vm332, %v320, 0.0
    %v337 = vsel %vm331, %v325, 0.0
    %v338 = vsel %vm332, %v321, 0.0
    %v339 = vsel %vm331, %v326, 0.0
    %v340 = vsel %vm332, %v322, 0.0
    %341 = vst [vmem:[#allocation4 + $0x80] sm:$0xff] %v333
    %342 = vst [vmem:[#allocation4 + $0x88] sm:$0xff] %v334
    %343 = vst [vmem:[#allocation4 + $0x90] sm:$0xff] %v335
    %344 = vst [vmem:[#allocation4 + $0x98] sm:$0xff] %v336
    %345 = vst [vmem:[#allocation4 + $0xa0] sm:$0xff] %v337
    %346 = vst [vmem:[#allocation4 + $0xa8] sm:$0xff] %v338
    %347 = vst [vmem:[#allocation4 + $0xb0] sm:$0xff] %v339
    %348 = vst [vmem:[#allocation4 + $0xb8] sm:$0xff] %v340
    %349 = vrot.lane.b32.xlu0 %v200, 9
    %v350 = vpop.permute.xlu0 %349
    %351 = vrot.lane.b32.xlu0 %v202, 9
    %v352 = vpop.permute.xlu0 %351
    %353 = vrot.lane.b32.xlu0 %v204, 9
    %v354 = vpop.permute.xlu0 %353
    %355 = vrot.lane.b32.xlu0 %v206, 9
    %v356 = vpop.permute.xlu0 %355
    %357 = vrot.lane.b32.xlu0 %v201, 9
    %v358 = vpop.permute.xlu0 %357
    %359 = vrot.lane.b32.xlu0 %v203, 9
    %v360 = vpop.permute.xlu0 %359
    %361 = vrot.lane.b32.xlu0 %v205, 9
    %v362 = vpop.permute.xlu0 %361
    %363 = vrot.lane.b32.xlu0 %v207, 9
    %v364 = vpop.permute.xlu0 %363
    %vm365 = vcmp.lt.s32.totalorder %v68, 9
    %v366 = vsel %vm365, %v350, %v358
    %v367 = vsel %vm365, %v352, %v360
    %v368 = vsel %vm365, %v354, %v362
    %v369 = vsel %vm365, %v356, %v364
    %v370 = vsel %vm365, %v358, %v350
    %v371 = vsel %vm365, %v360, %v352
    %v372 = vsel %vm365, %v362, %v354
    %v373 = vsel %vm365, %v364, %v356
    %vm374 = vcmp.ge.s32.totalorder %v92, 9
    %vm375 = vcmp.ge.s32.totalorder %v93, 9
    %v376 = vsel %vm374, 1, 0
    %v377 = vsel %vm375, 1, 0
    %vm378 = vcmp.eq.s32.totalorder %v376, 1
    %vm379 = vcmp.eq.s32.totalorder %v377, 1
    %v380 = vsel %vm378, %v370, 0.0
    %v381 = vsel %vm379, %v366, 0.0
    %v382 = vsel %vm378, %v371, 0.0
    %v383 = vsel %vm379, %v367, 0.0
    %v384 = vsel %vm378, %v372, 0.0
    %v385 = vsel %vm379, %v368, 0.0
    %v386 = vsel %vm378, %v373, 0.0
    %v387 = vsel %vm379, %v369, 0.0
    %388 = vst [vmem:[#allocation4 + $0xc0] sm:$0xff] %v380
    %389 = vst [vmem:[#allocation4 + $0xc8] sm:$0xff] %v381
    %390 = vst [vmem:[#allocation4 + $0xd0] sm:$0xff] %v382
    %391 = vst [vmem:[#allocation4 + $0xd8] sm:$0xff] %v383
    %392 = vst [vmem:[#allocation4 + $0xe0] sm:$0xff] %v384
    %393 = vst [vmem:[#allocation4 + $0xe8] sm:$0xff] %v385
    %394 = vst [vmem:[#allocation4 + $0xf0] sm:$0xff] %v386
    %395 = vst [vmem:[#allocation4 + $0xf8] sm:$0xff] %v387
    %396 = vrot.lane.b32.xlu0 %v200, 8
    %v397 = vpop.permute.xlu0 %396
    %398 = vrot.lane.b32.xlu0 %v202, 8
    %v399 = vpop.permute.xlu0 %398
    %400 = vrot.lane.b32.xlu0 %v204, 8
    %v401 = vpop.permute.xlu0 %400
    %402 = vrot.lane.b32.xlu0 %v206, 8
    %v403 = vpop.permute.xlu0 %402
    %404 = vrot.lane.b32.xlu0 %v201, 8
    %v405 = vpop.permute.xlu0 %404
    %406 = vrot.lane.b32.xlu0 %v203, 8
    %v407 = vpop.permute.xlu0 %406
    %408 = vrot.lane.b32.xlu0 %v205, 8
    %v409 = vpop.permute.xlu0 %408
    %410 = vrot.lane.b32.xlu0 %v207, 8
    %v411 = vpop.permute.xlu0 %410
    %vm412 = vcmp.lt.s32.totalorder %v68, 8
    %v413 = vsel %vm412, %v397, %v405
    %v414 = vsel %vm412, %v399, %v407
    %v415 = vsel %vm412, %v401, %v409
    %v416 = vsel %vm412, %v403, %v411
    %v417 = vsel %vm412, %v405, %v397
    %v418 = vsel %vm412, %v407, %v399
    %v419 = vsel %vm412, %v409, %v401
    %v420 = vsel %vm412, %v411, %v403
    %vm421 = vcmp.ge.s32.totalorder %v92, 8
    %vm422 = vcmp.ge.s32.totalorder %v93, 8
    %v423 = vsel %vm421, 1, 0
    %v424 = vsel %vm422, 1, 0
    %vm425 = vcmp.eq.s32.totalorder %v423, 1
    %vm426 = vcmp.eq.s32.totalorder %v424, 1
    %v427 = vsel %vm425, %v417, 0.0
    %v428 = vsel %vm426, %v413, 0.0
    %v429 = vsel %vm425, %v418, 0.0
    %v430 = vsel %vm426, %v414, 0.0
    %v431 = vsel %vm425, %v419, 0.0
    %v432 = vsel %vm426, %v415, 0.0
    %v433 = vsel %vm425, %v420, 0.0
    %v434 = vsel %vm426, %v416, 0.0
    %435 = vst [vmem:[#allocation4 + $0x100] sm:$0xff] %v427
    %436 = vst [vmem:[#allocation4 + $0x108] sm:$0xff] %v428
    %437 = vst [vmem:[#allocation4 + $0x110] sm:$0xff] %v429
    %438 = vst [vmem:[#allocation4 + $0x118] sm:$0xff] %v430
    %439 = vst [vmem:[#allocation4 + $0x120] sm:$0xff] %v431
    %440 = vst [vmem:[#allocation4 + $0x128] sm:$0xff] %v432
    %441 = vst [vmem:[#allocation4 + $0x130] sm:$0xff] %v433
    %442 = vst [vmem:[#allocation4 + $0x138] sm:$0xff] %v434
    %443 = vrot.lane.b32.xlu0 %v200, 7
    %v444 = vpop.permute.xlu0 %443
    %445 = vrot.lane.b32.xlu0 %v202, 7
    %v446 = vpop.permute.xlu0 %445
    %447 = vrot.lane.b32.xlu0 %v204, 7
    %v448 = vpop.permute.xlu0 %447
    %449 = vrot.lane.b32.xlu0 %v206, 7
    %v450 = vpop.permute.xlu0 %449
    %451 = vrot.lane.b32.xlu0 %v201, 7
    %v452 = vpop.permute.xlu0 %451
    %453 = vrot.lane.b32.xlu0 %v203, 7
    %v454 = vpop.permute.xlu0 %453
    %455 = vrot.lane.b32.xlu0 %v205, 7
    %v456 = vpop.permute.xlu0 %455
    %457 = vrot.lane.b32.xlu0 %v207, 7
    %v458 = vpop.permute.xlu0 %457
    %vm459 = vcmp.lt.s32.totalorder %v68, 7
    %v460 = vsel %vm459, %v444, %v452
    %v461 = vsel %vm459, %v446, %v454
    %v462 = vsel %vm459, %v448, %v456
    %v463 = vsel %vm459, %v450, %v458
    %v464 = vsel %vm459, %v452, %v444
    %v465 = vsel %vm459, %v454, %v446
    %v466 = vsel %vm459, %v456, %v448
    %v467 = vsel %vm459, %v458, %v450
    %vm468 = vcmp.ge.s32.totalorder %v92, 7
    %vm469 = vcmp.ge.s32.totalorder %v93, 7
    %v470 = vsel %vm468, 1, 0
    %v471 = vsel %vm469, 1, 0
    %vm472 = vcmp.eq.s32.totalorder %v470, 1
    %vm473 = vcmp.eq.s32.totalorder %v471, 1
    %v474 = vsel %vm472, %v464, 0.0
    %v475 = vsel %vm473, %v460, 0.0
    %v476 = vsel %vm472, %v465, 0.0
    %v477 = vsel %vm473, %v461, 0.0
    %v478 = vsel %vm472, %v466, 0.0
    %v479 = vsel %vm473, %v462, 0.0
    %v480 = vsel %vm472, %v467, 0.0
    %v481 = vsel %vm473, %v463, 0.0
    %482 = vst [vmem:[#allocation4 + $0x140] sm:$0xff] %v474
    %483 = vst [vmem:[#allocation4 + $0x148] sm:$0xff] %v475
    %484 = vst [vmem:[#allocation4 + $0x150] sm:$0xff] %v476
    %485 = vst [vmem:[#allocation4 + $0x158] sm:$0xff] %v477
    %486 = vst [vmem:[#allocation4 + $0x160] sm:$0xff] %v478
    %487 = vst [vmem:[#allocation4 + $0x168] sm:$0xff] %v479
    %488 = vst [vmem:[#allocation4 + $0x170] sm:$0xff] %v480
    %489 = vst [vmem:[#allocation4 + $0x178] sm:$0xff] %v481
    %490 = vrot.lane.b32.xlu0 %v200, 6
    %v491 = vpop.permute.xlu0 %490
    %492 = vrot.lane.b32.xlu0 %v202, 6
    %v493 = vpop.permute.xlu0 %492
    %494 = vrot.lane.b32.xlu0 %v204, 6
    %v495 = vpop.permute.xlu0 %494
    %496 = vrot.lane.b32.xlu0 %v206, 6
    %v497 = vpop.permute.xlu0 %496
    %498 = vrot.lane.b32.xlu0 %v201, 6
    %v499 = vpop.permute.xlu0 %498
    %500 = vrot.lane.b32.xlu0 %v203, 6
    %v501 = vpop.permute.xlu0 %500
    %502 = vrot.lane.b32.xlu0 %v205, 6
    %v503 = vpop.permute.xlu0 %502
    %504 = vrot.lane.b32.xlu0 %v207, 6
    %v505 = vpop.permute.xlu0 %504
    %vm506 = vcmp.lt.s32.totalorder %v68, 6
    %v507 = vsel %vm506, %v491, %v499
    %v508 = vsel %vm506, %v493, %v501
    %v509 = vsel %vm506, %v495, %v503
    %v510 = vsel %vm506, %v497, %v505
    %v511 = vsel %vm506, %v499, %v491
    %v512 = vsel %vm506, %v501, %v493
    %v513 = vsel %vm506, %v503, %v495
    %v514 = vsel %vm506, %v505, %v497
    %vm515 = vcmp.ge.s32.totalorder %v92, 6
    %vm516 = vcmp.ge.s32.totalorder %v93, 6
    %v517 = vsel %vm515, 1, 0
    %v518 = vsel %vm516, 1, 0
    %vm519 = vcmp.eq.s32.totalorder %v517, 1
    %vm520 = vcmp.eq.s32.totalorder %v518, 1
    %v521 = vsel %vm519, %v511, 0.0
    %v522 = vsel %vm520, %v507, 0.0
    %v523 = vsel %vm519, %v512, 0.0
    %v524 = vsel %vm520, %v508, 0.0
    %v525 = vsel %vm519, %v513, 0.0
    %v526 = vsel %vm520, %v509, 0.0
    %v527 = vsel %vm519, %v514, 0.0
    %v528 = vsel %vm520, %v510, 0.0
    %529 = vst [vmem:[#allocation4 + $0x180] sm:$0xff] %v521
    %530 = vst [vmem:[#allocation4 + $0x188] sm:$0xff] %v522
    %531 = vst [vmem:[#allocation4 + $0x190] sm:$0xff] %v523
    %532 = vst [vmem:[#allocation4 + $0x198] sm:$0xff] %v524
    %533 = vst [vmem:[#allocation4 + $0x1a0] sm:$0xff] %v525
    %534 = vst [vmem:[#allocation4 + $0x1a8] sm:$0xff] %v526
    %535 = vst [vmem:[#allocation4 + $0x1b0] sm:$0xff] %v527
    %536 = vst [vmem:[#allocation4 + $0x1b8] sm:$0xff] %v528
    %537 = vrot.lane.b32.xlu0 %v200, 5
    %v538 = vpop.permute.xlu0 %537
    %539 = vrot.lane.b32.xlu0 %v202, 5
    %v540 = vpop.permute.xlu0 %539
    %541 = vrot.lane.b32.xlu0 %v204, 5
    %v542 = vpop.permute.xlu0 %541
    %543 = vrot.lane.b32.xlu0 %v206, 5
    %v544 = vpop.permute.xlu0 %543
    %545 = vrot.lane.b32.xlu0 %v201, 5
    %v546 = vpop.permute.xlu0 %545
    %547 = vrot.lane.b32.xlu0 %v203, 5
    %v548 = vpop.permute.xlu0 %547
    %549 = vrot.lane.b32.xlu0 %v205, 5
    %v550 = vpop.permute.xlu0 %549
    %551 = vrot.lane.b32.xlu0 %v207, 5
    %v552 = vpop.permute.xlu0 %551
    %vm553 = vcmp.lt.s32.totalorder %v68, 5
    %v554 = vsel %vm553, %v538, %v546
    %v555 = vsel %vm553, %v540, %v548
    %v556 = vsel %vm553, %v542, %v550
    %v557 = vsel %vm553, %v544, %v552
    %v558 = vsel %vm553, %v546, %v538
    %v559 = vsel %vm553, %v548, %v540
    %v560 = vsel %vm553, %v550, %v542
    %v561 = vsel %vm553, %v552, %v544
    %vm562 = vcmp.ge.s32.totalorder %v92, 5
    %vm563 = vcmp.ge.s32.totalorder %v93, 5
    %v564 = vsel %vm562, 1, 0
    %v565 = vsel %vm563, 1, 0
    %vm566 = vcmp.eq.s32.totalorder %v564, 1
    %vm567 = vcmp.eq.s32.totalorder %v565, 1
    %v568 = vsel %vm566, %v558, 0.0
    %v569 = vsel %vm567, %v554, 0.0
    %v570 = vsel %vm566, %v559, 0.0
    %v571 = vsel %vm567, %v555, 0.0
    %v572 = vsel %vm566, %v560, 0.0
    %v573 = vsel %vm567, %v556, 0.0
    %v574 = vsel %vm566, %v561, 0.0
    %v575 = vsel %vm567, %v557, 0.0
    %576 = vst [vmem:[#allocation4 + $0x1c0] sm:$0xff] %v568
    %577 = vst [vmem:[#allocation4 + $0x1c8] sm:$0xff] %v569
    %578 = vst [vmem:[#allocation4 + $0x1d0] sm:$0xff] %v570
    %579 = vst [vmem:[#allocation4 + $0x1d8] sm:$0xff] %v571
    %580 = vst [vmem:[#allocation4 + $0x1e0] sm:$0xff] %v572
    %581 = vst [vmem:[#allocation4 + $0x1e8] sm:$0xff] %v573
    %582 = vst [vmem:[#allocation4 + $0x1f0] sm:$0xff] %v574
    %583 = vst [vmem:[#allocation4 + $0x1f8] sm:$0xff] %v575
    %584 = vrot.lane.b32.xlu0 %v200, 4
    %v585 = vpop.permute.xlu0 %584
    %586 = vrot.lane.b32.xlu0 %v202, 4
    %v587 = vpop.permute.xlu0 %586
    %588 = vrot.lane.b32.xlu0 %v204, 4
    %v589 = vpop.permute.xlu0 %588
    %590 = vrot.lane.b32.xlu0 %v206, 4
    %v591 = vpop.permute.xlu0 %590
    %592 = vrot.lane.b32.xlu0 %v201, 4
    %v593 = vpop.permute.xlu0 %592
    %594 = vrot.lane.b32.xlu0 %v203, 4
    %v595 = vpop.permute.xlu0 %594
    %596 = vrot.lane.b32.xlu0 %v205, 4
    %v597 = vpop.permute.xlu0 %596
    %598 = vrot.lane.b32.xlu0 %v207, 4
    %v599 = vpop.permute.xlu0 %598
    %vm600 = vcmp.lt.s32.totalorder %v68, 4
    %v601 = vsel %vm600, %v585, %v593
    %v602 = vsel %vm600, %v587, %v595
    %v603 = vsel %vm600, %v589, %v597
    %v604 = vsel %vm600, %v591, %v599
    %v605 = vsel %vm600, %v593, %v585
    %v606 = vsel %vm600, %v595, %v587
    %v607 = vsel %vm600, %v597, %v589
    %v608 = vsel %vm600, %v599, %v591
    %vm609 = vcmp.ge.s32.totalorder %v92, 4
    %vm610 = vcmp.ge.s32.totalorder %v93, 4
    %v611 = vsel %vm609, 1, 0
    %v612 = vsel %vm610, 1, 0
    %vm613 = vcmp.eq.s32.totalorder %v611, 1
    %vm614 = vcmp.eq.s32.totalorder %v612, 1
    %v615 = vsel %vm613, %v605, 0.0
    %v616 = vsel %vm614, %v601, 0.0
    %v617 = vsel %vm613, %v606, 0.0
    %v618 = vsel %vm614, %v602, 0.0
    %v619 = vsel %vm613, %v607, 0.0
    %v620 = vsel %vm614, %v603, 0.0
    %v621 = vsel %vm613, %v608, 0.0
    %v622 = vsel %vm614, %v604, 0.0
    %623 = vst [vmem:[#allocation4 + $0x200] sm:$0xff] %v615
    %624 = vst [vmem:[#allocation4 + $0x208] sm:$0xff] %v616
    %625 = vst [vmem:[#allocation4 + $0x210] sm:$0xff] %v617
    %626 = vst [vmem:[#allocation4 + $0x218] sm:$0xff] %v618
    %627 = vst [vmem:[#allocation4 + $0x220] sm:$0xff] %v619
    %628 = vst [vmem:[#allocation4 + $0x228] sm:$0xff] %v620
    %629 = vst [vmem:[#allocation4 + $0x230] sm:$0xff] %v621
    %630 = vst [vmem:[#allocation4 + $0x238] sm:$0xff] %v622
    %631 = vrot.lane.b32.xlu0 %v200, 3
    %v632 = vpop.permute.xlu0 %631
    %633 = vrot.lane.b32.xlu0 %v202, 3
    %v634 = vpop.permute.xlu0 %633
    %635 = vrot.lane.b32.xlu0 %v204, 3
    %v636 = vpop.permute.xlu0 %635
    %637 = vrot.lane.b32.xlu0 %v206, 3
    %v638 = vpop.permute.xlu0 %637
    %639 = vrot.lane.b32.xlu0 %v201, 3
    %v640 = vpop.permute.xlu0 %639
    %641 = vrot.lane.b32.xlu0 %v203, 3
    %v642 = vpop.permute.xlu0 %641
    %643 = vrot.lane.b32.xlu0 %v205, 3
    %v644 = vpop.permute.xlu0 %643
    %645 = vrot.lane.b32.xlu0 %v207, 3
    %v646 = vpop.permute.xlu0 %645
    %vm647 = vcmp.lt.s32.totalorder %v68, 3
    %v648 = vsel %vm647, %v632, %v640
    %v649 = vsel %vm647, %v634, %v642
    %v650 = vsel %vm647, %v636, %v644
    %v651 = vsel %vm647, %v638, %v646
    %v652 = vsel %vm647, %v640, %v632
    %v653 = vsel %vm647, %v642, %v634
    %v654 = vsel %vm647, %v644, %v636
    %v655 = vsel %vm647, %v646, %v638
    %vm656 = vcmp.ge.s32.totalorder %v92, 3
    %vm657 = vcmp.ge.s32.totalorder %v93, 3
    %v658 = vsel %vm656, 1, 0
    %v659 = vsel %vm657, 1, 0
    %vm660 = vcmp.eq.s32.totalorder %v658, 1
    %vm661 = vcmp.eq.s32.totalorder %v659, 1
    %v662 = vsel %vm660, %v652, 0.0
    %v663 = vsel %vm661, %v648, 0.0
    %v664 = vsel %vm660, %v653, 0.0
    %v665 = vsel %vm661, %v649, 0.0
    %v666 = vsel %vm660, %v654, 0.0
    %v667 = vsel %vm661, %v650, 0.0
    %v668 = vsel %vm660, %v655, 0.0
    %v669 = vsel %vm661, %v651, 0.0
    %670 = vst [vmem:[#allocation4 + $0x240] sm:$0xff] %v662
    %671 = vst [vmem:[#allocation4 + $0x248] sm:$0xff] %v663
    %672 = vst [vmem:[#allocation4 + $0x250] sm:$0xff] %v664
    %673 = vst [vmem:[#allocation4 + $0x258] sm:$0xff] %v665
    %674 = vst [vmem:[#allocation4 + $0x260] sm:$0xff] %v666
    %675 = vst [vmem:[#allocation4 + $0x268] sm:$0xff] %v667
    %676 = vst [vmem:[#allocation4 + $0x270] sm:$0xff] %v668
    %677 = vst [vmem:[#allocation4 + $0x278] sm:$0xff] %v669
    %678 = vrot.lane.b32.xlu0 %v200, 2
    %v679 = vpop.permute.xlu0 %678
    %680 = vrot.lane.b32.xlu0 %v202, 2
    %v681 = vpop.permute.xlu0 %680
    %682 = vrot.lane.b32.xlu0 %v204, 2
    %v683 = vpop.permute.xlu0 %682
    %684 = vrot.lane.b32.xlu0 %v206, 2
    %v685 = vpop.permute.xlu0 %684
    %686 = vrot.lane.b32.xlu0 %v201, 2
    %v687 = vpop.permute.xlu0 %686
    %688 = vrot.lane.b32.xlu0 %v203, 2
    %v689 = vpop.permute.xlu0 %688
    %690 = vrot.lane.b32.xlu0 %v205, 2
    %v691 = vpop.permute.xlu0 %690
    %692 = vrot.lane.b32.xlu0 %v207, 2
    %v693 = vpop.permute.xlu0 %692
    %vm694 = vcmp.lt.s32.totalorder %v68, 2
    %v695 = vsel %vm694, %v679, %v687
    %v696 = vsel %vm694, %v681, %v689
    %v697 = vsel %vm694, %v683, %v691
    %v698 = vsel %vm694, %v685, %v693
    %v699 = vsel %vm694, %v687, %v679
    %v700 = vsel %vm694, %v689, %v681
    %v701 = vsel %vm694, %v691, %v683
    %v702 = vsel %vm694, %v693, %v685
    %vm703 = vcmp.ge.s32.totalorder %v92, 2
    %vm704 = vcmp.ge.s32.totalorder %v93, 2
    %v705 = vsel %vm703, 1, 0
    %v706 = vsel %vm704, 1, 0
    %vm707 = vcmp.eq.s32.totalorder %v705, 1
    %vm708 = vcmp.eq.s32.totalorder %v706, 1
    %v709 = vsel %vm707, %v699, 0.0
    %v710 = vsel %vm708, %v695, 0.0
    %v711 = vsel %vm707, %v700, 0.0
    %v712 = vsel %vm708, %v696, 0.0
    %v713 = vsel %vm707, %v701, 0.0
    %v714 = vsel %vm708, %v697, 0.0
    %v715 = vsel %vm707, %v702, 0.0
    %v716 = vsel %vm708, %v698, 0.0
    %717 = vst [vmem:[#allocation4 + $0x280] sm:$0xff] %v709
    %718 = vst [vmem:[#allocation4 + $0x288] sm:$0xff] %v710
    %719 = vst [vmem:[#allocation4 + $0x290] sm:$0xff] %v711
    %720 = vst [vmem:[#allocation4 + $0x298] sm:$0xff] %v712
    %721 = vst [vmem:[#allocation4 + $0x2a0] sm:$0xff] %v713
    %722 = vst [vmem:[#allocation4 + $0x2a8] sm:$0xff] %v714
    %723 = vst [vmem:[#allocation4 + $0x2b0] sm:$0xff] %v715
    %724 = vst [vmem:[#allocation4 + $0x2b8] sm:$0xff] %v716
    %725 = vrot.lane.b32.xlu0 %v200, 1
    %v726 = vpop.permute.xlu0 %725
    %727 = vrot.lane.b32.xlu0 %v202, 1
    %v728 = vpop.permute.xlu0 %727
    %729 = vrot.lane.b32.xlu0 %v204, 1
    %v730 = vpop.permute.xlu0 %729
    %731 = vrot.lane.b32.xlu0 %v206, 1
    %v732 = vpop.permute.xlu0 %731
    %733 = vrot.lane.b32.xlu0 %v201, 1
    %v734 = vpop.permute.xlu0 %733
    %735 = vrot.lane.b32.xlu0 %v203, 1
    %v736 = vpop.permute.xlu0 %735
    %737 = vrot.lane.b32.xlu0 %v205, 1
    %v738 = vpop.permute.xlu0 %737
    %739 = vrot.lane.b32.xlu0 %v207, 1
    %v740 = vpop.permute.xlu0 %739
    %vm741 = vcmp.lt.s32.totalorder %v68, 1
    %v742 = vsel %vm741, %v726, %v734
    %v743 = vsel %vm741, %v728, %v736
    %v744 = vsel %vm741, %v730, %v738
    %v745 = vsel %vm741, %v732, %v740
    %v746 = vsel %vm741, %v734, %v726
    %v747 = vsel %vm741, %v736, %v728
    %v748 = vsel %vm741, %v738, %v730
    %v749 = vsel %vm741, %v740, %v732
    %vm750 = vcmp.ge.s32.totalorder %v92, 1
    %vm751 = vcmp.ge.s32.totalorder %v93, 1
    %v752 = vsel %vm750, 1, 0
    %v753 = vsel %vm751, 1, 0
    %vm754 = vcmp.eq.s32.totalorder %v752, 1
    %vm755 = vcmp.eq.s32.totalorder %v753, 1
    %v756 = vsel %vm754, %v746, 0.0
    %v757 = vsel %vm755, %v742, 0.0
    %v758 = vsel %vm754, %v747, 0.0
    %v759 = vsel %vm755, %v743, 0.0
    %v760 = vsel %vm754, %v748, 0.0
    %v761 = vsel %vm755, %v744, 0.0
    %v762 = vsel %vm754, %v749, 0.0
    %v763 = vsel %vm755, %v745, 0.0
    %764 = vst [vmem:[#allocation4 + $0x2c0] sm:$0xff] %v756
    %765 = vst [vmem:[#allocation4 + $0x2c8] sm:$0xff] %v757
    %766 = vst [vmem:[#allocation4 + $0x2d0] sm:$0xff] %v758
    %767 = vst [vmem:[#allocation4 + $0x2d8] sm:$0xff] %v759
    %768 = vst [vmem:[#allocation4 + $0x2e0] sm:$0xff] %v760
    %769 = vst [vmem:[#allocation4 + $0x2e8] sm:$0xff] %v761
    %770 = vst [vmem:[#allocation4 + $0x2f0] sm:$0xff] %v762
    %771 = vst [vmem:[#allocation4 + $0x2f8] sm:$0xff] %v763
    %772 = vst [vmem:[#allocation4 + $0x300] sm:$0xff] %v200
    %773 = vst [vmem:[#allocation4 + $0x308] sm:$0xff] %v201
    %774 = vst [vmem:[#allocation4 + $0x310] sm:$0xff] %v202
    %775 = vst [vmem:[#allocation4 + $0x318] sm:$0xff] %v203
    %776 = vst [vmem:[#allocation4 + $0x320] sm:$0xff] %v204
    %777 = vst [vmem:[#allocation4 + $0x328] sm:$0xff] %v205
    %778 = vst [vmem:[#allocation4 + $0x330] sm:$0xff] %v206
    %779 = vst [vmem:[#allocation4 + $0x338] sm:$0xff] %v207
    %v780 = vld [vmem:[#allocation9] sm:$0xff]
    %v781 = vld [vmem:[#allocation9 + $0x8] sm:$0xff]
    %v782 = vld [vmem:[#allocation9 + $0x10] sm:$0xff]
    %v783 = vld [vmem:[#allocation9 + $0x18] sm:$0xff]
    %v784 = vld [vmem:[#allocation9 + $0x20] sm:$0xff]
    %v785 = vld [vmem:[#allocation9 + $0x28] sm:$0xff]
    %v786 = vld [vmem:[#allocation9 + $0x30] sm:$0xff]
    %v787 = vld [vmem:[#allocation9 + $0x38] sm:$0xff]
    %v788 = vld [vmem:[#allocation9 + $0x40] sm:$0xff]
    %v789 = vld [vmem:[#allocation9 + $0x48] sm:$0xff]
    %v790 = vld [vmem:[#allocation9 + $0x50] sm:$0xff]
    %v791 = vld [vmem:[#allocation9 + $0x58] sm:$0xff]
    %v792 = vld [vmem:[#allocation9 + $0x60] sm:$0xff]
    %v793 = vld [vmem:[#allocation9 + $0x68] sm:$0xff]
    %v794 = vld [vmem:[#allocation9 + $0x70] sm:$0xff]
    %v795 = vld [vmem:[#allocation9 + $0x78] sm:$0xff]
    %v796 = vld [vmem:[#allocation4] sm:$0xff]
    %v797 = vld [vmem:[#allocation4 + $0x8] sm:$0xff]
    %v798 = vld [vmem:[#allocation4 + $0x10] sm:$0xff]
    %v799 = vld [vmem:[#allocation4 + $0x18] sm:$0xff]
    %v800 = vld [vmem:[#allocation4 + $0x20] sm:$0xff]
    %v801 = vld [vmem:[#allocation4 + $0x28] sm:$0xff]
    %v802 = vld [vmem:[#allocation4 + $0x30] sm:$0xff]
    %v803 = vld [vmem:[#allocation4 + $0x38] sm:$0xff]
    %v804 = vld [vmem:[#allocation4 + $0x40] sm:$0xff]
    %v805 = vld [vmem:[#allocation4 + $0x48] sm:$0xff]
    %v806 = vld [vmem:[#allocation4 + $0x50] sm:$0xff]
    %v807 = vld [vmem:[#allocation4 + $0x58] sm:$0xff]
    %v808 = vld [vmem:[#allocation4 + $0x60] sm:$0xff]
    %v809 = vld [vmem:[#allocation4 + $0x68] sm:$0xff]
    %v810 = vld [vmem:[#allocation4 + $0x70] sm:$0xff]
    %v811 = vld [vmem:[#allocation4 + $0x78] sm:$0xff]
    %v812 = vld [vmem:[#allocation4 + $0x80] sm:$0xff]
    %v813 = vld [vmem:[#allocation4 + $0x88] sm:$0xff]
    %v814 = vld [vmem:[#allocation4 + $0x90] sm:$0xff]
    %v815 = vld [vmem:[#allocation4 + $0x98] sm:$0xff]
    %v816 = vld [vmem:[#allocation4 + $0xa0] sm:$0xff]
    %v817 = vld [vmem:[#allocation4 + $0xa8] sm:$0xff]
    %v818 = vld [vmem:[#allocation4 + $0xb0] sm:$0xff]
    %v819 = vld [vmem:[#allocation4 + $0xb8] sm:$0xff]
    %v820 = vld [vmem:[#allocation4 + $0xc0] sm:$0xff]
    %v821 = vld [vmem:[#allocation4 + $0xc8] sm:$0xff]
    %v822 = vld [vmem:[#allocation4 + $0xd0] sm:$0xff]
    %v823 = vld [vmem:[#allocation4 + $0xd8] sm:$0xff]
    %v824 = vld [vmem:[#allocation4 + $0xe0] sm:$0xff]
    %v825 = vld [vmem:[#allocation4 + $0xe8] sm:$0xff]
    %v826 = vld [vmem:[#allocation4 + $0xf0] sm:$0xff]
    %v827 = vld [vmem:[#allocation4 + $0xf8] sm:$0xff]
    %v828 = vld [vmem:[#allocation4 + $0x100] sm:$0xff]
    %v829 = vld [vmem:[#allocation4 + $0x108] sm:$0xff]
    %v830 = vld [vmem:[#allocation4 + $0x110] sm:$0xff]
    %v831 = vld [vmem:[#allocation4 + $0x118] sm:$0xff]
    %v832 = vld [vmem:[#allocation4 + $0x120] sm:$0xff]
    %v833 = vld [vmem:[#allocation4 + $0x128] sm:$0xff]
    %v834 = vld [vmem:[#allocation4 + $0x130] sm:$0xff]
    %v835 = vld [vmem:[#allocation4 + $0x138] sm:$0xff]
    %v836 = vld [vmem:[#allocation4 + $0x140] sm:$0xff]
    %v837 = vld [vmem:[#allocation4 + $0x148] sm:$0xff]
    %v838 = vld [vmem:[#allocation4 + $0x150] sm:$0xff]
    %v839 = vld [vmem:[#allocation4 + $0x158] sm:$0xff]
    %v840 = vld [vmem:[#allocation4 + $0x160] sm:$0xff]
    %v841 = vld [vmem:[#allocation4 + $0x168] sm:$0xff]
    %v842 = vld [vmem:[#allocation4 + $0x170] sm:$0xff]
    %v843 = vld [vmem:[#allocation4 + $0x178] sm:$0xff]
    %v844 = vld [vmem:[#allocation4 + $0x180] sm:$0xff]
    %v845 = vld [vmem:[#allocation4 + $0x188] sm:$0xff]
    %v846 = vld [vmem:[#allocation4 + $0x190] sm:$0xff]
    %v847 = vld [vmem:[#allocation4 + $0x198] sm:$0xff]
    %v848 = vld [vmem:[#allocation4 + $0x1a0] sm:$0xff]
    %v849 = vld [vmem:[#allocation4 + $0x1a8] sm:$0xff]
    %v850 = vld [vmem:[#allocation4 + $0x1b0] sm:$0xff]
    %v851 = vld [vmem:[#allocation4 + $0x1b8] sm:$0xff]
    %v852 = vld [vmem:[#allocation4 + $0x1c0] sm:$0xff]
    %v853 = vld [vmem:[#allocation4 + $0x1c8] sm:$0xff]
    %v854 = vld [vmem:[#allocation4 + $0x1d0] sm:$0xff]
    %v855 = vld [vmem:[#allocation4 + $0x1d8] sm:$0xff]
    %v856 = vld [vmem:[#allocation4 + $0x1e0] sm:$0xff]
    %v857 = vld [vmem:[#allocation4 + $0x1e8] sm:$0xff]
    %v858 = vld [vmem:[#allocation4 + $0x1f0] sm:$0xff]
    %v859 = vld [vmem:[#allocation4 + $0x1f8] sm:$0xff]
    %v860 = vld [vmem:[#allocation4 + $0x200] sm:$0xff]
    %v861 = vld [vmem:[#allocation4 + $0x208] sm:$0xff]
    %v862 = vld [vmem:[#allocation4 + $0x210] sm:$0xff]
    %v863 = vld [vmem:[#allocation4 + $0x218] sm:$0xff]
    %v864 = vld [vmem:[#allocation4 + $0x220] sm:$0xff]
    %v865 = vld [vmem:[#allocation4 + $0x228] sm:$0xff]
    %v866 = vld [vmem:[#allocation4 + $0x230] sm:$0xff]
    %v867 = vld [vmem:[#allocation4 + $0x238] sm:$0xff]
    %v868 = vld [vmem:[#allocation4 + $0x240] sm:$0xff]
    %v869 = vld [vmem:[#allocation4 + $0x248] sm:$0xff]
    %v870 = vld [vmem:[#allocation4 + $0x250] sm:$0xff]
    %v871 = vld [vmem:[#allocation4 + $0x258] sm:$0xff]
    %v872 = vld [vmem:[#allocation4 + $0x260] sm:$0xff]
    %v873 = vld [vmem:[#allocation4 + $0x268] sm:$0xff]
    %v874 = vld [vmem:[#allocation4 + $0x270] sm:$0xff]
    %v875 = vld [vmem:[#allocation4 + $0x278] sm:$0xff]
    %v876 = vld [vmem:[#allocation4 + $0x280] sm:$0xff]
    %v877 = vld [vmem:[#allocation4 + $0x288] sm:$0xff]
    %v878 = vld [vmem:[#allocation4 + $0x290] sm:$0xff]
    %v879 = vld [vmem:[#allocation4 + $0x298] sm:$0xff]
    %v880 = vld [vmem:[#allocation4 + $0x2a0] sm:$0xff]
    %v881 = vld [vmem:[#allocation4 + $0x2a8] sm:$0xff]
    %v882 = vld [vmem:[#allocation4 + $0x2b0] sm:$0xff]
    %v883 = vld [vmem:[#allocation4 + $0x2b8] sm:$0xff]
    %v884 = vld [vmem:[#allocation4 + $0x2c0] sm:$0xff]
    %v885 = vld [vmem:[#allocation4 + $0x2c8] sm:$0xff]
    %v886 = vld [vmem:[#allocation4 + $0x2d0] sm:$0xff]
    %v887 = vld [vmem:[#allocation4 + $0x2d8] sm:$0xff]
    %v888 = vld [vmem:[#allocation4 + $0x2e0] sm:$0xff]
    %v889 = vld [vmem:[#allocation4 + $0x2e8] sm:$0xff]
    %v890 = vld [vmem:[#allocation4 + $0x2f0] sm:$0xff]
    %v891 = vld [vmem:[#allocation4 + $0x2f8] sm:$0xff]
    %v892 = vld [vmem:[#allocation4 + $0x300] sm:$0xff]
    %v893 = vld [vmem:[#allocation4 + $0x308] sm:$0xff]
    %v894 = vld [vmem:[#allocation4 + $0x310] sm:$0xff]
    %v895 = vld [vmem:[#allocation4 + $0x318] sm:$0xff]
    %v896 = vld [vmem:[#allocation4 + $0x320] sm:$0xff]
    %v897 = vld [vmem:[#allocation4 + $0x328] sm:$0xff]
    %v898 = vld [vmem:[#allocation4 + $0x330] sm:$0xff]
    %v899 = vld [vmem:[#allocation4 + $0x338] sm:$0xff]
    %v900 = vld [vmem:[#allocation3] sm:$0xff]
    %v901 = vld [vmem:[#allocation3 + $0x8] sm:$0xff]
    %v902 = vld [vmem:[#allocation3 + $0x10] sm:$0xff]
    %v903 = vld [vmem:[#allocation3 + $0x18] sm:$0xff]
    %v904 = vld [vmem:[#allocation3 + $0x20] sm:$0xff]
    %v905 = vld [vmem:[#allocation3 + $0x28] sm:$0xff]
    %v906 = vld [vmem:[#allocation3 + $0x30] sm:$0xff]
    %v907 = vld [vmem:[#allocation3 + $0x38] sm:$0xff]
    %v908 = vld [vmem:[%s6] sm:$0xff]
    %v909 = vld [vmem:[%s6 + $0x8] sm:$0xff]
    %v910 = vld [vmem:[%s6 + $0x10] sm:$0xff]
    %v911 = vld [vmem:[%s6 + $0x18] sm:$0xff]
    %913 = vset.pattern.permute.xlu0 0
    %914 = vperm.xlu0 %913, %v908
    %v915 = vpop.permute.xlu0 %914
    %918 = vset.pattern.permute.xlu0 0
    %919 = vperm.xlu0 %918, %v909
    %v920 = vpop.permute.xlu0 %919
    %923 = vset.pattern.permute.xlu0 0
    %924 = vperm.xlu0 %923, %v910
    %v925 = vpop.permute.xlu0 %924
    %928 = vset.pattern.permute.xlu0 0
    %929 = vperm.xlu0 %928, %v911
    %v930 = vpop.permute.xlu0 %929
    %vm932 = vcmask 261120
    %v934 = vsel %vm932, %v783, 0
    %v937 = vsel %vm932, %v787, 0
    %v940 = vsel %vm932, %v791, 0
    %v943 = vsel %vm932, %v795, 0
    %945 = vmatpush.msra.mxu0 %v826
    %946 = vmatpush.msra.mxu0 %v824
    %947 = vmatpush.msra.mxu0 %v822
    %948 = vmatpush.msra.mxu0 %v820
    %949 = vmatpush.msra.mxu0 %v818
    %950 = vmatpush.msra.mxu0 %v816
    %951 = vmatpush.msra.mxu0 %v814
    %952 = vmatpush.msra.mxu0 %v812
    %953 = vmatpush.msra.mxu0 %v810
    %954 = vmatpush.msra.mxu0 %v808
    %955 = vmatpush.msra.mxu0 %v806
    %956 = vmatpush.msra.mxu0 %v804
    %957 = vmatpush.msra.mxu0 %v802
    %958 = vmatpush.msra.mxu0 %v800
    %959 = vmatpush.msra.mxu0 %v798
    %960 = vmatpush.msra.mxu0 %v796
    %961 = vmatmul.f32.gmra.mxu0 %v780
    %v962 = vpop.f32.mrf.mxu0
    %v963 = vadd.f32 %v915, %v962
    %964 = vmatmul.f32.gmra.mxu0 %v784
    %v965 = vpop.f32.mrf.mxu0
    %v966 = vadd.f32 %v920, %v965
    %967 = vmatmul.f32.gmra.mxu0 %v788
    %v968 = vpop.f32.mrf.mxu0
    %v969 = vadd.f32 %v925, %v968
    %970 = vmatmul.f32.gmra.mxu0 %v792
    %v971 = vpop.f32.mrf.mxu0
    %v972 = vadd.f32 %v930, %v971
    %973 = vdwg.mxu0
    %974 = vmatpush.msra.mxu0 %v858
    %975 = vmatpush.msra.mxu0 %v856
    %976 = vmatpush.msra.mxu0 %v854
    %977 = vmatpush.msra.mxu0 %v852
    %978 = vmatpush.msra.mxu0 %v850
    %979 = vmatpush.msra.mxu0 %v848
    %980 = vmatpush.msra.mxu0 %v846
    %981 = vmatpush.msra.mxu0 %v844
    %982 = vmatpush.msra.mxu0 %v842
    %983 = vmatpush.msra.mxu0 %v840
    %984 = vmatpush.msra.mxu0 %v838
    %985 = vmatpush.msra.mxu0 %v836
    %986 = vmatpush.msra.mxu0 %v834
    %987 = vmatpush.msra.mxu0 %v832
    %988 = vmatpush.msra.mxu0 %v830
    %989 = vmatpush.msra.mxu0 %v828
    %990 = vmatmul.f32.gmra.mxu0 %v781
    %v991 = vpop.f32.mrf.mxu0
    %v992 = vadd.f32 %v963, %v991
    %993 = vmatmul.f32.gmra.mxu0 %v785
    %v994 = vpop.f32.mrf.mxu0
    %v995 = vadd.f32 %v966, %v994
    %996 = vmatmul.f32.gmra.mxu0 %v789
    %v997 = vpop.f32.mrf.mxu0
    %v998 = vadd.f32 %v969, %v997
    %999 = vmatmul.f32.gmra.mxu0 %v793
    %v1000 = vpop.f32.mrf.mxu0
    %v1001 = vadd.f32 %v972, %v1000
    %1002 = vdwg.mxu0
    %1003 = vmatpush.msra.mxu0 %v890
    %1004 = vmatpush.msra.mxu0 %v888
    %1005 = vmatpush.msra.mxu0 %v886
    %1006 = vmatpush.msra.mxu0 %v884
    %1007 = vmatpush.msra.mxu0 %v882
    %1008 = vmatpush.msra.mxu0 %v880
    %1009 = vmatpush.msra.mxu0 %v878
    %1010 = vmatpush.msra.mxu0 %v876
    %1011 = vmatpush.msra.mxu0 %v874
    %1012 = vmatpush.msra.mxu0 %v872
    %1013 = vmatpush.msra.mxu0 %v870
    %1014 = vmatpush.msra.mxu0 %v868
    %1015 = vmatpush.msra.mxu0 %v866
    %1016 = vmatpush.msra.mxu0 %v864
    %1017 = vmatpush.msra.mxu0 %v862
    %1018 = vmatpush.msra.mxu0 %v860
    %1019 = vmatmul.f32.gmra.mxu0 %v782
    %v1020 = vpop.f32.mrf.mxu0
    %v1021 = vadd.f32 %v992, %v1020
    %1022 = vmatmul.f32.gmra.mxu0 %v786
    %v1023 = vpop.f32.mrf.mxu0
    %v1024 = vadd.f32 %v995, %v1023
    %1025 = vmatmul.f32.gmra.mxu0 %v790
    %v1026 = vpop.f32.mrf.mxu0
    %v1027 = vadd.f32 %v998, %v1026
    %1028 = vmatmul.f32.gmra.mxu0 %v794
    %v1029 = vpop.f32.mrf.mxu0
    %v1030 = vadd.f32 %v1001, %v1029
    %1031 = vdwg.mxu0
    %1032 = vmatpush.msra.mxu0 0.0
    %1033 = vmatpush.msra.mxu0 0.0
    %1034 = vmatpush.msra.mxu0 0.0
    %1035 = vmatpush.msra.mxu0 0.0
    %1036 = vmatpush.msra.mxu0 0.0
    %1037 = vmatpush.msra.mxu0 0.0
    %1038 = vmatpush.msra.mxu0 0.0
    %1039 = vmatpush.msra.mxu0 0.0
    %1040 = vmatpush.msra.mxu0 0.0
    %1041 = vmatpush.msra.mxu0 0.0
    %1042 = vmatpush.msra.mxu0 0.0
    %1043 = vmatpush.msra.mxu0 0.0
    %1044 = vmatpush.msra.mxu0 %v898
    %1045 = vmatpush.msra.mxu0 %v896
    %1046 = vmatpush.msra.mxu0 %v894
    %1047 = vmatpush.msra.mxu0 %v892
    %1048 = vmatmul.f32.gmra.mxu0 %v934
    %v1049 = vpop.f32.mrf.mxu0
    %v1050 = vadd.f32 %v1021, %v1049
    %1051 = vmatmul.f32.gmra.mxu0 %v937
    %v1052 = vpop.f32.mrf.mxu0
    %v1053 = vadd.f32 %v1024, %v1052
    %1054 = vmatmul.f32.gmra.mxu0 %v940
    %v1055 = vpop.f32.mrf.mxu0
    %v1056 = vadd.f32 %v1027, %v1055
    %1057 = vmatmul.f32.gmra.mxu0 %v943
    %v1058 = vpop.f32.mrf.mxu0
    %v1059 = vadd.f32 %v1030, %v1058
    %1060 = vdwg.mxu0
    %1061 = vmatpush.msra.mxu0 %v827
    %1062 = vmatpush.msra.mxu0 %v825
    %1063 = vmatpush.msra.mxu0 %v823
    %1064 = vmatpush.msra.mxu0 %v821
    %1065 = vmatpush.msra.mxu0 %v819
    %1066 = vmatpush.msra.mxu0 %v817
    %1067 = vmatpush.msra.mxu0 %v815
    %1068 = vmatpush.msra.mxu0 %v813
    %1069 = vmatpush.msra.mxu0 %v811
    %1070 = vmatpush.msra.mxu0 %v809
    %1071 = vmatpush.msra.mxu0 %v807
    %1072 = vmatpush.msra.mxu0 %v805
    %1073 = vmatpush.msra.mxu0 %v803
    %1074 = vmatpush.msra.mxu0 %v801
    %1075 = vmatpush.msra.mxu0 %v799
    %1076 = vmatpush.msra.mxu0 %v797
    %1077 = vmatmul.f32.gmra.mxu0 %v780
    %v1078 = vpop.f32.mrf.mxu0
    %v1079 = vadd.f32 %v915, %v1078
    %1080 = vmatmul.f32.gmra.mxu0 %v784
    %v1081 = vpop.f32.mrf.mxu0
    %v1082 = vadd.f32 %v920, %v1081
    %1083 = vmatmul.f32.gmra.mxu0 %v788
    %v1084 = vpop.f32.mrf.mxu0
    %v1085 = vadd.f32 %v925, %v1084
    %1086 = vmatmul.f32.gmra.mxu0 %v792
    %v1087 = vpop.f32.mrf.mxu0
    %v1088 = vadd.f32 %v930, %v1087
    %1089 = vdwg.mxu0
    %1090 = vmatpush.msra.mxu0 %v859
    %1091 = vmatpush.msra.mxu0 %v857
    %1092 = vmatpush.msra.mxu0 %v855
    %1093 = vmatpush.msra.mxu0 %v853
    %1094 = vmatpush.msra.mxu0 %v851
    %1095 = vmatpush.msra.mxu0 %v849
    %1096 = vmatpush.msra.mxu0 %v847
    %1097 = vmatpush.msra.mxu0 %v845
    %1098 = vmatpush.msra.mxu0 %v843
    %1099 = vmatpush.msra.mxu0 %v841
    %1100 = vmatpush.msra.mxu0 %v839
    %1101 = vmatpush.msra.mxu0 %v837
    %1102 = vmatpush.msra.mxu0 %v835
    %1103 = vmatpush.msra.mxu0 %v833
    %1104 = vmatpush.msra.mxu0 %v831
    %1105 = vmatpush.msra.mxu0 %v829
    %1106 = vmatmul.f32.gmra.mxu0 %v781
    %v1107 = vpop.f32.mrf.mxu0
    %v1108 = vadd.f32 %v1079, %v1107
    %1109 = vmatmul.f32.gmra.mxu0 %v785
    %v1110 = vpop.f32.mrf.mxu0
    %v1111 = vadd.f32 %v1082, %v1110
    %1112 = vmatmul.f32.gmra.mxu0 %v789
    %v1113 = vpop.f32.mrf.mxu0
    %v1114 = vadd.f32 %v1085, %v1113
    %1115 = vmatmul.f32.gmra.mxu0 %v793
    %v1116 = vpop.f32.mrf.mxu0
    %v1117 = vadd.f32 %v1088, %v1116
    %1118 = vdwg.mxu0
    %1119 = vmatpush.msra.mxu0 %v891
    %1120 = vmatpush.msra.mxu0 %v889
    %1121 = vmatpush.msra.mxu0 %v887
    %1122 = vmatpush.msra.mxu0 %v885
    %1123 = vmatpush.msra.mxu0 %v883
    %1124 = vmatpush.msra.mxu0 %v881
    %1125 = vmatpush.msra.mxu0 %v879
    %1126 = vmatpush.msra.mxu0 %v877
    %1127 = vmatpush.msra.mxu0 %v875
    %1128 = vmatpush.msra.mxu0 %v873
    %1129 = vmatpush.msra.mxu0 %v871
    %1130 = vmatpush.msra.mxu0 %v869
    %1131 = vmatpush.msra.mxu0 %v867
    %1132 = vmatpush.msra.mxu0 %v865
    %1133 = vmatpush.msra.mxu0 %v863
    %1134 = vmatpush.msra.mxu0 %v861
    %1135 = vmatmul.f32.gmra.mxu0 %v782
    %v1136 = vpop.f32.mrf.mxu0
    %v1137 = vadd.f32 %v1108, %v1136
    %1138 = vmatmul.f32.gmra.mxu0 %v786
    %v1139 = vpop.f32.mrf.mxu0
    %v1140 = vadd.f32 %v1111, %v1139
    %1141 = vmatmul.f32.gmra.mxu0 %v790
    %v1142 = vpop.f32.mrf.mxu0
    %v1143 = vadd.f32 %v1114, %v1142
    %1144 = vmatmul.f32.gmra.mxu0 %v794
    %v1145 = vpop.f32.mrf.mxu0
    %v1146 = vadd.f32 %v1117, %v1145
    %1147 = vdwg.mxu0
    %1148 = vmatpush.msra.mxu0 0.0
    %1149 = vmatpush.msra.mxu0 0.0
    %1150 = vmatpush.msra.mxu0 0.0
    %1151 = vmatpush.msra.mxu0 0.0
    %1152 = vmatpush.msra.mxu0 0.0
    %1153 = vmatpush.msra.mxu0 0.0
    %1154 = vmatpush.msra.mxu0 0.0
    %1155 = vmatpush.msra.mxu0 0.0
    %1156 = vmatpush.msra.mxu0 0.0
    %1157 = vmatpush.msra.mxu0 0.0
    %1158 = vmatpush.msra.mxu0 0.0
    %1159 = vmatpush.msra.mxu0 0.0
    %1160 = vmatpush.msra.mxu0 %v899
    %1161 = vmatpush.msra.mxu0 %v897
    %1162 = vmatpush.msra.mxu0 %v895
    %1163 = vmatpush.msra.mxu0 %v893
    %1164 = vmatmul.f32.gmra.mxu0 %v934
    %v1165 = vpop.f32.mrf.mxu0
    %v1166 = vadd.f32 %v1137, %v1165
    %1167 = vmatmul.f32.gmra.mxu0 %v937
    %v1168 = vpop.f32.mrf.mxu0
    %v1169 = vadd.f32 %v1140, %v1168
    %1170 = vmatmul.f32.gmra.mxu0 %v940
    %v1171 = vpop.f32.mrf.mxu0
    %v1172 = vadd.f32 %v1143, %v1171
    %1173 = vmatmul.f32.gmra.mxu0 %v943
    %v1174 = vpop.f32.mrf.mxu0
    %v1175 = vadd.f32 %v1146, %v1174
    %1176 = vdwg.mxu0
    %v1177 = vmax.f32 %v1050, 0.0
    %v1178 = vmax.f32 %v1166, 0.0
    %v1179 = vmax.f32 %v1053, 0.0
    %v1180 = vmax.f32 %v1169, 0.0
    %v1181 = vmax.f32 %v1056, 0.0
    %v1182 = vmax.f32 %v1172, 0.0
    %v1183 = vmax.f32 %v1059, 0.0
    %v1184 = vmax.f32 %v1175, 0.0
    %v1185 = vadd.f32 %v900, %v1177
    %v1186 = vadd.f32 %v901, %v1178
    %v1187 = vadd.f32 %v902, %v1179
    %v1188 = vadd.f32 %v903, %v1180
    %v1189 = vadd.f32 %v904, %v1181
    %v1190 = vadd.f32 %v905, %v1182
    %v1191 = vadd.f32 %v906, %v1183
    %v1192 = vadd.f32 %v907, %v1184
    %1193 = vst [vmem:[#allocation3] sm:$0xff] %v1185
    %1194 = vst [vmem:[#allocation3 + $0x8] sm:$0xff] %v1186
    %1195 = vst [vmem:[#allocation3 + $0x10] sm:$0xff] %v1187
    %1196 = vst [vmem:[#allocation3 + $0x18] sm:$0xff] %v1188
    %1197 = vst [vmem:[#allocation3 + $0x20] sm:$0xff] %v1189
    %1198 = vst [vmem:[#allocation3 + $0x28] sm:$0xff] %v1190
    %1199 = vst [vmem:[#allocation3 + $0x30] sm:$0xff] %v1191
    %1200 = vst [vmem:[#allocation3 + $0x38] sm:$0xff] %v1192
    %v1201 = vld [vmem:[#allocation3] sm:$0xff]
    %v1202 = vld [vmem:[#allocation3 + $0x8] sm:$0xff]
    %v1203 = vld [vmem:[#allocation3 + $0x10] sm:$0xff]
    %v1204 = vld [vmem:[#allocation3 + $0x18] sm:$0xff]
    %v1205 = vld [vmem:[#allocation3 + $0x20] sm:$0xff]
    %v1206 = vld [vmem:[#allocation3 + $0x28] sm:$0xff]
    %v1207 = vld [vmem:[#allocation3 + $0x30] sm:$0xff]
    %v1208 = vld [vmem:[#allocation3 + $0x38] sm:$0xff]
    %1209 = vrot.lane.b32.xlu0 %v1201, 24
    %v1210 = vpop.permute.xlu0 %1209
    %1211 = vrot.lane.b32.xlu0 %v1203, 24
    %v1212 = vpop.permute.xlu0 %1211
    %1213 = vrot.lane.b32.xlu0 %v1205, 24
    %v1214 = vpop.permute.xlu0 %1213
    %1215 = vrot.lane.b32.xlu0 %v1207, 24
    %v1216 = vpop.permute.xlu0 %1215
    %1217 = vrot.lane.b32.xlu0 %v1202, 24
    %v1218 = vpop.permute.xlu0 %1217
    %1219 = vrot.lane.b32.xlu0 %v1204, 24
    %v1220 = vpop.permute.xlu0 %1219
    %1221 = vrot.lane.b32.xlu0 %v1206, 24
    %v1222 = vpop.permute.xlu0 %1221
    %1223 = vrot.lane.b32.xlu0 %v1208, 24
    %v1224 = vpop.permute.xlu0 %1223
    %vm1225 = vcmp.lt.s32.totalorder %v68, 24
    %v1226 = vsel %vm1225, %v1210, %v1218
    %v1227 = vsel %vm1225, %v1212, %v1220
    %v1228 = vsel %vm1225, %v1214, %v1222
    %v1229 = vsel %vm1225, %v1216, %v1224
    %v1230 = vsel %vm1225, %v1218, %v1210
    %v1231 = vsel %vm1225, %v1220, %v1212
    %v1232 = vsel %vm1225, %v1222, %v1214
    %v1233 = vsel %vm1225, %v1224, %v1216
    %vm1234 = vcmp.ge.s32.totalorder %v92, 24
    %vm1235 = vcmp.ge.s32.totalorder %v93, 24
    %v1236 = vsel %vm1234, 1, 0
    %v1237 = vsel %vm1235, 1, 0
    %vm1238 = vcmp.eq.s32.totalorder %v1236, 1
    %vm1239 = vcmp.eq.s32.totalorder %v1237, 1
    %v1240 = vsel %vm1238, %v1230, 0.0
    %v1241 = vsel %vm1239, %v1226, 0.0
    %v1242 = vsel %vm1238, %v1231, 0.0
    %v1243 = vsel %vm1239, %v1227, 0.0
    %v1244 = vsel %vm1238, %v1232, 0.0
    %v1245 = vsel %vm1239, %v1228, 0.0
    %v1246 = vsel %vm1238, %v1233, 0.0
    %v1247 = vsel %vm1239, %v1229, 0.0
    %1248 = vst [vmem:[#allocation4] sm:$0xff] %v1240
    %1249 = vst [vmem:[#allocation4 + $0x8] sm:$0xff] %v1241
    %1250 = vst [vmem:[#allocation4 + $0x10] sm:$0xff] %v1242
    %1251 = vst [vmem:[#allocation4 + $0x18] sm:$0xff] %v1243
    %1252 = vst [vmem:[#allocation4 + $0x20] sm:$0xff] %v1244
    %1253 = vst [vmem:[#allocation4 + $0x28] sm:$0xff] %v1245
    %1254 = vst [vmem:[#allocation4 + $0x30] sm:$0xff] %v1246
    %1255 = vst [vmem:[#allocation4 + $0x38] sm:$0xff] %v1247
    %1256 = vrot.lane.b32.xlu0 %v1201, 22
    %v1257 = vpop.permute.xlu0 %1256
    %1258 = vrot.lane.b32.xlu0 %v1203, 22
    %v1259 = vpop.permute.xlu0 %1258
    %1260 = vrot.lane.b32.xlu0 %v1205, 22
    %v1261 = vpop.permute.xlu0 %1260
    %1262 = vrot.lane.b32.xlu0 %v1207, 22
    %v1263 = vpop.permute.xlu0 %1262
    %1264 = vrot.lane.b32.xlu0 %v1202, 22
    %v1265 = vpop.permute.xlu0 %1264
    %1266 = vrot.lane.b32.xlu0 %v1204, 22
    %v1267 = vpop.permute.xlu0 %1266
    %1268 = vrot.lane.b32.xlu0 %v1206, 22
    %v1269 = vpop.permute.xlu0 %1268
    %1270 = vrot.lane.b32.xlu0 %v1208, 22
    %v1271 = vpop.permute.xlu0 %1270
    %vm1272 = vcmp.lt.s32.totalorder %v68, 22
    %v1273 = vsel %vm1272, %v1257, %v1265
    %v1274 = vsel %vm1272, %v1259, %v1267
    %v1275 = vsel %vm1272, %v1261, %v1269
    %v1276 = vsel %vm1272, %v1263, %v1271
    %v1277 = vsel %vm1272, %v1265, %v1257
    %v1278 = vsel %vm1272, %v1267, %v1259
    %v1279 = vsel %vm1272, %v1269, %v1261
    %v1280 = vsel %vm1272, %v1271, %v1263
    %vm1281 = vcmp.ge.s32.totalorder %v92, 22
    %vm1282 = vcmp.ge.s32.totalorder %v93, 22
    %v1283 = vsel %vm1281, 1, 0
    %v1284 = vsel %vm1282, 1, 0
    %vm1285 = vcmp.eq.s32.totalorder %v1283, 1
    %vm1286 = vcmp.eq.s32.totalorder %v1284, 1
    %v1287 = vsel %vm1285, %v1277, 0.0
    %v1288 = vsel %vm1286, %v1273, 0.0
    %v1289 = vsel %vm1285, %v1278, 0.0
    %v1290 = vsel %vm1286, %v1274, 0.0
    %v1291 = vsel %vm1285, %v1279, 0.0
    %v1292 = vsel %vm1286, %v1275, 0.0
    %v1293 = vsel %vm1285, %v1280, 0.0
    %v1294 = vsel %vm1286, %v1276, 0.0
    %1295 = vst [vmem:[#allocation4 + $0x40] sm:$0xff] %v1287
    %1296 = vst [vmem:[#allocation4 + $0x48] sm:$0xff] %v1288
    %1297 = vst [vmem:[#allocation4 + $0x50] sm:$0xff] %v1289
    %1298 = vst [vmem:[#allocation4 + $0x58] sm:$0xff] %v1290
    %1299 = vst [vmem:[#allocation4 + $0x60] sm:$0xff] %v1291
    %1300 = vst [vmem:[#allocation4 + $0x68] sm:$0xff] %v1292
    %1301 = vst [vmem:[#allocation4 + $0x70] sm:$0xff] %v1293
    %1302 = vst [vmem:[#allocation4 + $0x78] sm:$0xff] %v1294
    %1303 = vrot.lane.b32.xlu0 %v1201, 20
    %v1304 = vpop.permute.xlu0 %1303
    %1305 = vrot.lane.b32.xlu0 %v1203, 20
    %v1306 = vpop.permute.xlu0 %1305
    %1307 = vrot.lane.b32.xlu0 %v1205, 20
    %v1308 = vpop.permute.xlu0 %1307
    %1309 = vrot.lane.b32.xlu0 %v1207, 20
    %v1310 = vpop.permute.xlu0 %1309
    %1311 = vrot.lane.b32.xlu0 %v1202, 20
    %v1312 = vpop.permute.xlu0 %1311
    %1313 = vrot.lane.b32.xlu0 %v1204, 20
    %v1314 = vpop.permute.xlu0 %1313
    %1315 = vrot.lane.b32.xlu0 %v1206, 20
    %v1316 = vpop.permute.xlu0 %1315
    %1317 = vrot.lane.b32.xlu0 %v1208, 20
    %v1318 = vpop.permute.xlu0 %1317
    %vm1319 = vcmp.lt.s32.totalorder %v68, 20
    %v1320 = vsel %vm1319, %v1304, %v1312
    %v1321 = vsel %vm1319, %v1306, %v1314
    %v1322 = vsel %vm1319, %v1308, %v1316
    %v1323 = vsel %vm1319, %v1310, %v1318
    %v1324 = vsel %vm1319, %v1312, %v1304
    %v1325 = vsel %vm1319, %v1314, %v1306
    %v1326 = vsel %vm1319, %v1316, %v1308
    %v1327 = vsel %vm1319, %v1318, %v1310
    %vm1328 = vcmp.ge.s32.totalorder %v92, 20
    %vm1329 = vcmp.ge.s32.totalorder %v93, 20
    %v1330 = vsel %vm1328, 1, 0
    %v1331 = vsel %vm1329, 1, 0
    %vm1332 = vcmp.eq.s32.totalorder %v1330, 1
    %vm1333 = vcmp.eq.s32.totalorder %v1331, 1
    %v1334 = vsel %vm1332, %v1324, 0.0
    %v1335 = vsel %vm1333, %v1320, 0.0
    %v1336 = vsel %vm1332, %v1325, 0.0
    %v1337 = vsel %vm1333, %v1321, 0.0
    %v1338 = vsel %vm1332, %v1326, 0.0
    %v1339 = vsel %vm1333, %v1322, 0.0
    %v1340 = vsel %vm1332, %v1327, 0.0
    %v1341 = vsel %vm1333, %v1323, 0.0
    %1342 = vst [vmem:[#allocation4 + $0x80] sm:$0xff] %v1334
    %1343 = vst [vmem:[#allocation4 + $0x88] sm:$0xff] %v1335
    %1344 = vst [vmem:[#allocation4 + $0x90] sm:$0xff] %v1336
    %1345 = vst [vmem:[#allocation4 + $0x98] sm:$0xff] %v1337
    %1346 = vst [vmem:[#allocation4 + $0xa0] sm:$0xff] %v1338
    %1347 = vst [vmem:[#allocation4 + $0xa8] sm:$0xff] %v1339
    %1348 = vst [vmem:[#allocation4 + $0xb0] sm:$0xff] %v1340
    %1349 = vst [vmem:[#allocation4 + $0xb8] sm:$0xff] %v1341
    %1350 = vrot.lane.b32.xlu0 %v1201, 18
    %v1351 = vpop.permute.xlu0 %1350
    %1352 = vrot.lane.b32.xlu0 %v1203, 18
    %v1353 = vpop.permute.xlu0 %1352
    %1354 = vrot.lane.b32.xlu0 %v1205, 18
    %v1355 = vpop.permute.xlu0 %1354
    %1356 = vrot.lane.b32.xlu0 %v1207, 18
    %v1357 = vpop.permute.xlu0 %1356
    %1358 = vrot.lane.b32.xlu0 %v1202, 18
    %v1359 = vpop.permute.xlu0 %1358
    %1360 = vrot.lane.b32.xlu0 %v1204, 18
    %v1361 = vpop.permute.xlu0 %1360
    %1362 = vrot.lane.b32.xlu0 %v1206, 18
    %v1363 = vpop.permute.xlu0 %1362
    %1364 = vrot.lane.b32.xlu0 %v1208, 18
    %v1365 = vpop.permute.xlu0 %1364
    %vm1366 = vcmp.lt.s32.totalorder %v68, 18
    %v1367 = vsel %vm1366, %v1351, %v1359
    %v1368 = vsel %vm1366, %v1353, %v1361
    %v1369 = vsel %vm1366, %v1355, %v1363
    %v1370 = vsel %vm1366, %v1357, %v1365
    %v1371 = vsel %vm1366, %v1359, %v1351
    %v1372 = vsel %vm1366, %v1361, %v1353
    %v1373 = vsel %vm1366, %v1363, %v1355
    %v1374 = vsel %vm1366, %v1365, %v1357
    %vm1375 = vcmp.ge.s32.totalorder %v92, 18
    %vm1376 = vcmp.ge.s32.totalorder %v93, 18
    %v1377 = vsel %vm1375, 1, 0
    %v1378 = vsel %vm1376, 1, 0
    %vm1379 = vcmp.eq.s32.totalorder %v1377, 1
    %vm1380 = vcmp.eq.s32.totalorder %v1378, 1
    %v1381 = vsel %vm1379, %v1371, 0.0
    %v1382 = vsel %vm1380, %v1367, 0.0
    %v1383 = vsel %vm1379, %v1372, 0.0
    %v1384 = vsel %vm1380, %v1368, 0.0
    %v1385 = vsel %vm1379, %v1373, 0.0
    %v1386 = vsel %vm1380, %v1369, 0.0
    %v1387 = vsel %vm1379, %v1374, 0.0
    %v1388 = vsel %vm1380, %v1370, 0.0
    %1389 = vst [vmem:[#allocation4 + $0xc0] sm:$0xff] %v1381
    %1390 = vst [vmem:[#allocation4 + $0xc8] sm:$0xff] %v1382
    %1391 = vst [vmem:[#allocation4 + $0xd0] sm:$0xff] %v1383
    %1392 = vst [vmem:[#allocation4 + $0xd8] sm:$0xff] %v1384
    %1393 = vst [vmem:[#allocation4 + $0xe0] sm:$0xff] %v1385
    %1394 = vst [vmem:[#allocation4 + $0xe8] sm:$0xff] %v1386
    %1395 = vst [vmem:[#allocation4 + $0xf0] sm:$0xff] %v1387
    %1396 = vst [vmem:[#allocation4 + $0xf8] sm:$0xff] %v1388
    %1397 = vrot.lane.b32.xlu0 %v1201, 16
    %v1398 = vpop.permute.xlu0 %1397
    %1399 = vrot.lane.b32.xlu0 %v1203, 16
    %v1400 = vpop.permute.xlu0 %1399
    %1401 = vrot.lane.b32.xlu0 %v1205, 16
    %v1402 = vpop.permute.xlu0 %1401
    %1403 = vrot.lane.b32.xlu0 %v1207, 16
    %v1404 = vpop.permute.xlu0 %1403
    %1405 = vrot.lane.b32.xlu0 %v1202, 16
    %v1406 = vpop.permute.xlu0 %1405
    %1407 = vrot.lane.b32.xlu0 %v1204, 16
    %v1408 = vpop.permute.xlu0 %1407
    %1409 = vrot.lane.b32.xlu0 %v1206, 16
    %v1410 = vpop.permute.xlu0 %1409
    %1411 = vrot.lane.b32.xlu0 %v1208, 16
    %v1412 = vpop.permute.xlu0 %1411
    %vm1413 = vcmp.lt.s32.totalorder %v68, 16
    %v1414 = vsel %vm1413, %v1398, %v1406
    %v1415 = vsel %vm1413, %v1400, %v1408
    %v1416 = vsel %vm1413, %v1402, %v1410
    %v1417 = vsel %vm1413, %v1404, %v1412
    %v1418 = vsel %vm1413, %v1406, %v1398
    %v1419 = vsel %vm1413, %v1408, %v1400
    %v1420 = vsel %vm1413, %v1410, %v1402
    %v1421 = vsel %vm1413, %v1412, %v1404
    %vm1422 = vcmp.ge.s32.totalorder %v92, 16
    %vm1423 = vcmp.ge.s32.totalorder %v93, 16
    %v1424 = vsel %vm1422, 1, 0
    %v1425 = vsel %vm1423, 1, 0
    %vm1426 = vcmp.eq.s32.totalorder %v1424, 1
    %vm1427 = vcmp.eq.s32.totalorder %v1425, 1
    %v1428 = vsel %vm1426, %v1418, 0.0
    %v1429 = vsel %vm1427, %v1414, 0.0
    %v1430 = vsel %vm1426, %v1419, 0.0
    %v1431 = vsel %vm1427, %v1415, 0.0
    %v1432 = vsel %vm1426, %v1420, 0.0
    %v1433 = vsel %vm1427, %v1416, 0.0
    %v1434 = vsel %vm1426, %v1421, 0.0
    %v1435 = vsel %vm1427, %v1417, 0.0
    %1436 = vst [vmem:[#allocation4 + $0x100] sm:$0xff] %v1428
    %1437 = vst [vmem:[#allocation4 + $0x108] sm:$0xff] %v1429
    %1438 = vst [vmem:[#allocation4 + $0x110] sm:$0xff] %v1430
    %1439 = vst [vmem:[#allocation4 + $0x118] sm:$0xff] %v1431
    %1440 = vst [vmem:[#allocation4 + $0x120] sm:$0xff] %v1432
    %1441 = vst [vmem:[#allocation4 + $0x128] sm:$0xff] %v1433
    %1442 = vst [vmem:[#allocation4 + $0x130] sm:$0xff] %v1434
    %1443 = vst [vmem:[#allocation4 + $0x138] sm:$0xff] %v1435
    %1444 = vrot.lane.b32.xlu0 %v1201, 14
    %v1445 = vpop.permute.xlu0 %1444
    %1446 = vrot.lane.b32.xlu0 %v1203, 14
    %v1447 = vpop.permute.xlu0 %1446
    %1448 = vrot.lane.b32.xlu0 %v1205, 14
    %v1449 = vpop.permute.xlu0 %1448
    %1450 = vrot.lane.b32.xlu0 %v1207, 14
    %v1451 = vpop.permute.xlu0 %1450
    %1452 = vrot.lane.b32.xlu0 %v1202, 14
    %v1453 = vpop.permute.xlu0 %1452
    %1454 = vrot.lane.b32.xlu0 %v1204, 14
    %v1455 = vpop.permute.xlu0 %1454
    %1456 = vrot.lane.b32.xlu0 %v1206, 14
    %v1457 = vpop.permute.xlu0 %1456
    %1458 = vrot.lane.b32.xlu0 %v1208, 14
    %v1459 = vpop.permute.xlu0 %1458
    %vm1460 = vcmp.lt.s32.totalorder %v68, 14
    %v1461 = vsel %vm1460, %v1445, %v1453
    %v1462 = vsel %vm1460, %v1447, %v1455
    %v1463 = vsel %vm1460, %v1449, %v1457
    %v1464 = vsel %vm1460, %v1451, %v1459
    %v1465 = vsel %vm1460, %v1453, %v1445
    %v1466 = vsel %vm1460, %v1455, %v1447
    %v1467 = vsel %vm1460, %v1457, %v1449
    %v1468 = vsel %vm1460, %v1459, %v1451
    %vm1469 = vcmp.ge.s32.totalorder %v92, 14
    %vm1470 = vcmp.ge.s32.totalorder %v93, 14
    %v1471 = vsel %vm1469, 1, 0
    %v1472 = vsel %vm1470, 1, 0
    %vm1473 = vcmp.eq.s32.totalorder %v1471, 1
    %vm1474 = vcmp.eq.s32.totalorder %v1472, 1
    %v1475 = vsel %vm1473, %v1465, 0.0
    %v1476 = vsel %vm1474, %v1461, 0.0
    %v1477 = vsel %vm1473, %v1466, 0.0
    %v1478 = vsel %vm1474, %v1462, 0.0
    %v1479 = vsel %vm1473, %v1467, 0.0
    %v1480 = vsel %vm1474, %v1463, 0.0
    %v1481 = vsel %vm1473, %v1468, 0.0
    %v1482 = vsel %vm1474, %v1464, 0.0
    %1483 = vst [vmem:[#allocation4 + $0x140] sm:$0xff] %v1475
    %1484 = vst [vmem:[#allocation4 + $0x148] sm:$0xff] %v1476
    %1485 = vst [vmem:[#allocation4 + $0x150] sm:$0xff] %v1477
    %1486 = vst [vmem:[#allocation4 + $0x158] sm:$0xff] %v1478
    %1487 = vst [vmem:[#allocation4 + $0x160] sm:$0xff] %v1479
    %1488 = vst [vmem:[#allocation4 + $0x168] sm:$0xff] %v1480
    %1489 = vst [vmem:[#allocation4 + $0x170] sm:$0xff] %v1481
    %1490 = vst [vmem:[#allocation4 + $0x178] sm:$0xff] %v1482
    %1491 = vrot.lane.b32.xlu0 %v1201, 12
    %v1492 = vpop.permute.xlu0 %1491
    %1493 = vrot.lane.b32.xlu0 %v1203, 12
    %v1494 = vpop.permute.xlu0 %1493
    %1495 = vrot.lane.b32.xlu0 %v1205, 12
    %v1496 = vpop.permute.xlu0 %1495
    %1497 = vrot.lane.b32.xlu0 %v1207, 12
    %v1498 = vpop.permute.xlu0 %1497
    %1499 = vrot.lane.b32.xlu0 %v1202, 12
    %v1500 = vpop.permute.xlu0 %1499
    %1501 = vrot.lane.b32.xlu0 %v1204, 12
    %v1502 = vpop.permute.xlu0 %1501
    %1503 = vrot.lane.b32.xlu0 %v1206, 12
    %v1504 = vpop.permute.xlu0 %1503
    %1505 = vrot.lane.b32.xlu0 %v1208, 12
    %v1506 = vpop.permute.xlu0 %1505
    %v1507 = vsel %vm224, %v1492, %v1500
    %v1508 = vsel %vm224, %v1494, %v1502
    %v1509 = vsel %vm224, %v1496, %v1504
    %v1510 = vsel %vm224, %v1498, %v1506
    %v1511 = vsel %vm224, %v1500, %v1492
    %v1512 = vsel %vm224, %v1502, %v1494
    %v1513 = vsel %vm224, %v1504, %v1496
    %v1514 = vsel %vm224, %v1506, %v1498
    %v1515 = vsel %vm237, %v1511, 0.0
    %v1516 = vsel %vm238, %v1507, 0.0
    %v1517 = vsel %vm237, %v1512, 0.0
    %v1518 = vsel %vm238, %v1508, 0.0
    %v1519 = vsel %vm237, %v1513, 0.0
    %v1520 = vsel %vm238, %v1509, 0.0
    %v1521 = vsel %vm237, %v1514, 0.0
    %v1522 = vsel %vm238, %v1510, 0.0
    %1523 = vst [vmem:[#allocation4 + $0x180] sm:$0xff] %v1515
    %1524 = vst [vmem:[#allocation4 + $0x188] sm:$0xff] %v1516
    %1525 = vst [vmem:[#allocation4 + $0x190] sm:$0xff] %v1517
    %1526 = vst [vmem:[#allocation4 + $0x198] sm:$0xff] %v1518
    %1527 = vst [vmem:[#allocation4 + $0x1a0] sm:$0xff] %v1519
    %1528 = vst [vmem:[#allocation4 + $0x1a8] sm:$0xff] %v1520
    %1529 = vst [vmem:[#allocation4 + $0x1b0] sm:$0xff] %v1521
    %1530 = vst [vmem:[#allocation4 + $0x1b8] sm:$0xff] %v1522
    %1531 = vrot.lane.b32.xlu0 %v1201, 10
    %v1532 = vpop.permute.xlu0 %1531
    %1533 = vrot.lane.b32.xlu0 %v1203, 10
    %v1534 = vpop.permute.xlu0 %1533
    %1535 = vrot.lane.b32.xlu0 %v1205, 10
    %v1536 = vpop.permute.xlu0 %1535
    %1537 = vrot.lane.b32.xlu0 %v1207, 10
    %v1538 = vpop.permute.xlu0 %1537
    %1539 = vrot.lane.b32.xlu0 %v1202, 10
    %v1540 = vpop.permute.xlu0 %1539
    %1541 = vrot.lane.b32.xlu0 %v1204, 10
    %v1542 = vpop.permute.xlu0 %1541
    %1543 = vrot.lane.b32.xlu0 %v1206, 10
    %v1544 = vpop.permute.xlu0 %1543
    %1545 = vrot.lane.b32.xlu0 %v1208, 10
    %v1546 = vpop.permute.xlu0 %1545
    %v1547 = vsel %vm318, %v1532, %v1540
    %v1548 = vsel %vm318, %v1534, %v1542
    %v1549 = vsel %vm318, %v1536, %v1544
    %v1550 = vsel %vm318, %v1538, %v1546
    %v1551 = vsel %vm318, %v1540, %v1532
    %v1552 = vsel %vm318, %v1542, %v1534
    %v1553 = vsel %vm318, %v1544, %v1536
    %v1554 = vsel %vm318, %v1546, %v1538
    %v1555 = vsel %vm331, %v1551, 0.0
    %v1556 = vsel %vm332, %v1547, 0.0
    %v1557 = vsel %vm331, %v1552, 0.0
    %v1558 = vsel %vm332, %v1548, 0.0
    %v1559 = vsel %vm331, %v1553, 0.0
    %v1560 = vsel %vm332, %v1549, 0.0
    %v1561 = vsel %vm331, %v1554, 0.0
    %v1562 = vsel %vm332, %v1550, 0.0
    %1563 = vst [vmem:[#allocation4 + $0x1c0] sm:$0xff] %v1555
    %1564 = vst [vmem:[#allocation4 + $0x1c8] sm:$0xff] %v1556
    %1565 = vst [vmem:[#allocation4 + $0x1d0] sm:$0xff] %v1557
    %1566 = vst [vmem:[#allocation4 + $0x1d8] sm:$0xff] %v1558
    %1567 = vst [vmem:[#allocation4 + $0x1e0] sm:$0xff] %v1559
    %1568 = vst [vmem:[#allocation4 + $0x1e8] sm:$0xff] %v1560
    %1569 = vst [vmem:[#allocation4 + $0x1f0] sm:$0xff] %v1561
    %1570 = vst [vmem:[#allocation4 + $0x1f8] sm:$0xff] %v1562
    %1571 = vrot.lane.b32.xlu0 %v1201, 8
    %v1572 = vpop.permute.xlu0 %1571
    %1573 = vrot.lane.b32.xlu0 %v1203, 8
    %v1574 = vpop.permute.xlu0 %1573
    %1575 = vrot.lane.b32.xlu0 %v1205, 8
    %v1576 = vpop.permute.xlu0 %1575
    %1577 = vrot.lane.b32.xlu0 %v1207, 8
    %v1578 = vpop.permute.xlu0 %1577
    %1579 = vrot.lane.b32.xlu0 %v1202, 8
    %v1580 = vpop.permute.xlu0 %1579
    %1581 = vrot.lane.b32.xlu0 %v1204, 8
    %v1582 = vpop.permute.xlu0 %1581
    %1583 = vrot.lane.b32.xlu0 %v1206, 8
    %v1584 = vpop.permute.xlu0 %1583
    %1585 = vrot.lane.b32.xlu0 %v1208, 8
    %v1586 = vpop.permute.xlu0 %1585
    %v1587 = vsel %vm412, %v1572, %v1580
    %v1588 = vsel %vm412, %v1574, %v1582
    %v1589 = vsel %vm412, %v1576, %v1584
    %v1590 = vsel %vm412, %v1578, %v1586
    %v1591 = vsel %vm412, %v1580, %v1572
    %v1592 = vsel %vm412, %v1582, %v1574
    %v1593 = vsel %vm412, %v1584, %v1576
    %v1594 = vsel %vm412, %v1586, %v1578
    %v1595 = vsel %vm425, %v1591, 0.0
    %v1596 = vsel %vm426, %v1587, 0.0
    %v1597 = vsel %vm425, %v1592, 0.0
    %v1598 = vsel %vm426, %v1588, 0.0
    %v1599 = vsel %vm425, %v1593, 0.0
    %v1600 = vsel %vm426, %v1589, 0.0
    %v1601 = vsel %vm425, %v1594, 0.0
    %v1602 = vsel %vm426, %v1590, 0.0
    %1603 = vst [vmem:[#allocation4 + $0x200] sm:$0xff] %v1595
    %1604 = vst [vmem:[#allocation4 + $0x208] sm:$0xff] %v1596
    %1605 = vst [vmem:[#allocation4 + $0x210] sm:$0xff] %v1597
    %1606 = vst [vmem:[#allocation4 + $0x218] sm:$0xff] %v1598
    %1607 = vst [vmem:[#allocation4 + $0x220] sm:$0xff] %v1599
    %1608 = vst [vmem:[#allocation4 + $0x228] sm:$0xff] %v1600
    %1609 = vst [vmem:[#allocation4 + $0x230] sm:$0xff] %v1601
    %1610 = vst [vmem:[#allocation4 + $0x238] sm:$0xff] %v1602
    %1611 = vrot.lane.b32.xlu0 %v1201, 6
    %v1612 = vpop.permute.xlu0 %1611
    %1613 = vrot.lane.b32.xlu0 %v1203, 6
    %v1614 = vpop.permute.xlu0 %1613
    %1615 = vrot.lane.b32.xlu0 %v1205, 6
    %v1616 = vpop.permute.xlu0 %1615
    %1617 = vrot.lane.b32.xlu0 %v1207, 6
    %v1618 = vpop.permute.xlu0 %1617
    %1619 = vrot.lane.b32.xlu0 %v1202, 6
    %v1620 = vpop.permute.xlu0 %1619
    %1621 = vrot.lane.b32.xlu0 %v1204, 6
    %v1622 = vpop.permute.xlu0 %1621
    %1623 = vrot.lane.b32.xlu0 %v1206, 6
    %v1624 = vpop.permute.xlu0 %1623
    %1625 = vrot.lane.b32.xlu0 %v1208, 6
    %v1626 = vpop.permute.xlu0 %1625
    %v1627 = vsel %vm506, %v1612, %v1620
    %v1628 = vsel %vm506, %v1614, %v1622
    %v1629 = vsel %vm506, %v1616, %v1624
    %v1630 = vsel %vm506, %v1618, %v1626
    %v1631 = vsel %vm506, %v1620, %v1612
    %v1632 = vsel %vm506, %v1622, %v1614
    %v1633 = vsel %vm506, %v1624, %v1616
    %v1634 = vsel %vm506, %v1626, %v1618
    %v1635 = vsel %vm519, %v1631, 0.0
    %v1636 = vsel %vm520, %v1627, 0.0
    %v1637 = vsel %vm519, %v1632, 0.0
    %v1638 = vsel %vm520, %v1628, 0.0
    %v1639 = vsel %vm519, %v1633, 0.0
    %v1640 = vsel %vm520, %v1629, 0.0
    %v1641 = vsel %vm519, %v1634, 0.0
    %v1642 = vsel %vm520, %v1630, 0.0
    %1643 = vst [vmem:[#allocation4 + $0x240] sm:$0xff] %v1635
    %1644 = vst [vmem:[#allocation4 + $0x248] sm:$0xff] %v1636
    %1645 = vst [vmem:[#allocation4 + $0x250] sm:$0xff] %v1637
    %1646 = vst [vmem:[#allocation4 + $0x258] sm:$0xff] %v1638
    %1647 = vst [vmem:[#allocation4 + $0x260] sm:$0xff] %v1639
    %1648 = vst [vmem:[#allocation4 + $0x268] sm:$0xff] %v1640
    %1649 = vst [vmem:[#allocation4 + $0x270] sm:$0xff] %v1641
    %1650 = vst [vmem:[#allocation4 + $0x278] sm:$0xff] %v1642
    %1651 = vrot.lane.b32.xlu0 %v1201, 4
    %v1652 = vpop.permute.xlu0 %1651
    %1653 = vrot.lane.b32.xlu0 %v1203, 4
    %v1654 = vpop.permute.xlu0 %1653
    %1655 = vrot.lane.b32.xlu0 %v1205, 4
    %v1656 = vpop.permute.xlu0 %1655
    %1657 = vrot.lane.b32.xlu0 %v1207, 4
    %v1658 = vpop.permute.xlu0 %1657
    %1659 = vrot.lane.b32.xlu0 %v1202, 4
    %v1660 = vpop.permute.xlu0 %1659
    %1661 = vrot.lane.b32.xlu0 %v1204, 4
    %v1662 = vpop.permute.xlu0 %1661
    %1663 = vrot.lane.b32.xlu0 %v1206, 4
    %v1664 = vpop.permute.xlu0 %1663
    %1665 = vrot.lane.b32.xlu0 %v1208, 4
    %v1666 = vpop.permute.xlu0 %1665
    %v1667 = vsel %vm600, %v1652, %v1660
    %v1668 = vsel %vm600, %v1654, %v1662
    %v1669 = vsel %vm600, %v1656, %v1664
    %v1670 = vsel %vm600, %v1658, %v1666
    %v1671 = vsel %vm600, %v1660, %v1652
    %v1672 = vsel %vm600, %v1662, %v1654
    %v1673 = vsel %vm600, %v1664, %v1656
    %v1674 = vsel %vm600, %v1666, %v1658
    %v1675 = vsel %vm613, %v1671, 0.0
    %v1676 = vsel %vm614, %v1667, 0.0
    %v1677 = vsel %vm613, %v1672, 0.0
    %v1678 = vsel %vm614, %v1668, 0.0
    %v1679 = vsel %vm613, %v1673, 0.0
    %v1680 = vsel %vm614, %v1669, 0.0
    %v1681 = vsel %vm613, %v1674, 0.0
    %v1682 = vsel %vm614, %v1670, 0.0
    %1683 = vst [vmem:[#allocation4 + $0x280] sm:$0xff] %v1675
    %1684 = vst [vmem:[#allocation4 + $0x288] sm:$0xff] %v1676
    %1685 = vst [vmem:[#allocation4 + $0x290] sm:$0xff] %v1677
    %1686 = vst [vmem:[#allocation4 + $0x298] sm:$0xff] %v1678
    %1687 = vst [vmem:[#allocation4 + $0x2a0] sm:$0xff] %v1679
    %1688 = vst [vmem:[#allocation4 + $0x2a8] sm:$0xff] %v1680
    %1689 = vst [vmem:[#allocation4 + $0x2b0] sm:$0xff] %v1681
    %1690 = vst [vmem:[#allocation4 + $0x2b8] sm:$0xff] %v1682
    %1691 = vrot.lane.b32.xlu0 %v1201, 2
    %v1692 = vpop.permute.xlu0 %1691
    %1693 = vrot.lane.b32.xlu0 %v1203, 2
    %v1694 = vpop.permute.xlu0 %1693
    %1695 = vrot.lane.b32.xlu0 %v1205, 2
    %v1696 = vpop.permute.xlu0 %1695
    %1697 = vrot.lane.b32.xlu0 %v1207, 2
    %v1698 = vpop.permute.xlu0 %1697
    %1699 = vrot.lane.b32.xlu0 %v1202, 2
    %v1700 = vpop.permute.xlu0 %1699
    %1701 = vrot.lane.b32.xlu0 %v1204, 2
    %v1702 = vpop.permute.xlu0 %1701
    %1703 = vrot.lane.b32.xlu0 %v1206, 2
    %v1704 = vpop.permute.xlu0 %1703
    %1705 = vrot.lane.b32.xlu0 %v1208, 2
    %v1706 = vpop.permute.xlu0 %1705
    %v1707 = vsel %vm694, %v1692, %v1700
    %v1708 = vsel %vm694, %v1694, %v1702
    %v1709 = vsel %vm694, %v1696, %v1704
    %v1710 = vsel %vm694, %v1698, %v1706
    %v1711 = vsel %vm694, %v1700, %v1692
    %v1712 = vsel %vm694, %v1702, %v1694
    %v1713 = vsel %vm694, %v1704, %v1696
    %v1714 = vsel %vm694, %v1706, %v1698
    %v1715 = vsel %vm707, %v1711, 0.0
    %v1716 = vsel %vm708, %v1707, 0.0
    %v1717 = vsel %vm707, %v1712, 0.0
    %v1718 = vsel %vm708, %v1708, 0.0
    %v1719 = vsel %vm707, %v1713, 0.0
    %v1720 = vsel %vm708, %v1709, 0.0
    %v1721 = vsel %vm707, %v1714, 0.0
    %v1722 = vsel %vm708, %v1710, 0.0
    %1723 = vst [vmem:[#allocation4 + $0x2c0] sm:$0xff] %v1715
    %1724 = vst [vmem:[#allocation4 + $0x2c8] sm:$0xff] %v1716
    %1725 = vst [vmem:[#allocation4 + $0x2d0] sm:$0xff] %v1717
    %1726 = vst [vmem:[#allocation4 + $0x2d8] sm:$0xff] %v1718
    %1727 = vst [vmem:[#allocation4 + $0x2e0] sm:$0xff] %v1719
    %1728 = vst [vmem:[#allocation4 + $0x2e8] sm:$0xff] %v1720
    %1729 = vst [vmem:[#allocation4 + $0x2f0] sm:$0xff] %v1721
    %1730 = vst [vmem:[#allocation4 + $0x2f8] sm:$0xff] %v1722
    %1731 = vst [vmem:[#allocation4 + $0x300] sm:$0xff] %v1201
    %1732 = vst [vmem:[#allocation4 + $0x308] sm:$0xff] %v1202
    %1733 = vst [vmem:[#allocation4 + $0x310] sm:$0xff] %v1203
    %1734 = vst [vmem:[#allocation4 + $0x318] sm:$0xff] %v1204
    %1735 = vst [vmem:[#allocation4 + $0x320] sm:$0xff] %v1205
    %1736 = vst [vmem:[#allocation4 + $0x328] sm:$0xff] %v1206
    %1737 = vst [vmem:[#allocation4 + $0x330] sm:$0xff] %v1207
    %1738 = vst [vmem:[#allocation4 + $0x338] sm:$0xff] %v1208
    %s1739 = scalar_lea.vmem [#allocation9], 128
    %v1740 = vld [vmem:[%s1739] sm:$0xff]
    %v1741 = vld [vmem:[%s1739 + $0x8] sm:$0xff]
    %v1742 = vld [vmem:[%s1739 + $0x10] sm:$0xff]
    %v1743 = vld [vmem:[%s1739 + $0x18] sm:$0xff]
    %v1744 = vld [vmem:[%s1739 + $0x20] sm:$0xff]
    %v1745 = vld [vmem:[%s1739 + $0x28] sm:$0xff]
    %v1746 = vld [vmem:[%s1739 + $0x30] sm:$0xff]
    %v1747 = vld [vmem:[%s1739 + $0x38] sm:$0xff]
    %v1748 = vld [vmem:[%s1739 + $0x40] sm:$0xff]
    %v1749 = vld [vmem:[%s1739 + $0x48] sm:$0xff]
    %v1750 = vld [vmem:[%s1739 + $0x50] sm:$0xff]
    %v1751 = vld [vmem:[%s1739 + $0x58] sm:$0xff]
    %v1752 = vld [vmem:[%s1739 + $0x60] sm:$0xff]
    %v1753 = vld [vmem:[%s1739 + $0x68] sm:$0xff]
    %v1754 = vld [vmem:[%s1739 + $0x70] sm:$0xff]
    %v1755 = vld [vmem:[%s1739 + $0x78] sm:$0xff]
    %v1756 = vld [vmem:[#allocation4] sm:$0xff]
    %v1757 = vld [vmem:[#allocation4 + $0x8] sm:$0xff]
    %v1758 = vld [vmem:[#allocation4 + $0x10] sm:$0xff]
    %v1759 = vld [vmem:[#allocation4 + $0x18] sm:$0xff]
    %v1760 = vld [vmem:[#allocation4 + $0x20] sm:$0xff]
    %v1761 = vld [vmem:[#allocation4 + $0x28] sm:$0xff]
    %v1762 = vld [vmem:[#allocation4 + $0x30] sm:$0xff]
    %v1763 = vld [vmem:[#allocation4 + $0x38] sm:$0xff]
    %v1764 = vld [vmem:[#allocation4 + $0x40] sm:$0xff]
    %v1765 = vld [vmem:[#allocation4 + $0x48] sm:$0xff]
    %v1766 = vld [vmem:[#allocation4 + $0x50] sm:$0xff]
    %v1767 = vld [vmem:[#allocation4 + $0x58] sm:$0xff]
    %v1768 = vld [vmem:[#allocation4 + $0x60] sm:$0xff]
    %v1769 = vld [vmem:[#allocation4 + $0x68] sm:$0xff]
    %v1770 = vld [vmem:[#allocation4 + $0x70] sm:$0xff]
    %v1771 = vld [vmem:[#allocation4 + $0x78] sm:$0xff]
    %v1772 = vld [vmem:[#allocation4 + $0x80] sm:$0xff]
    %v1773 = vld [vmem:[#allocation4 + $0x88] sm:$0xff]
    %v1774 = vld [vmem:[#allocation4 + $0x90] sm:$0xff]
    %v1775 = vld [vmem:[#allocation4 + $0x98] sm:$0xff]
    %v1776 = vld [vmem:[#allocation4 + $0xa0] sm:$0xff]
    %v1777 = vld [vmem:[#allocation4 + $0xa8] sm:$0xff]
    %v1778 = vld [vmem:[#allocation4 + $0xb0] sm:$0xff]
    %v1779 = vld [vmem:[#allocation4 + $0xb8] sm:$0xff]
    %v1780 = vld [vmem:[#allocation4 + $0xc0] sm:$0xff]
    %v1781 = vld [vmem:[#allocation4 + $0xc8] sm:$0xff]
    %v1782 = vld [vmem:[#allocation4 + $0xd0] sm:$0xff]
    %v1783 = vld [vmem:[#allocation4 + $0xd8] sm:$0xff]
    %v1784 = vld [vmem:[#allocation4 + $0xe0] sm:$0xff]
    %v1785 = vld [vmem:[#allocation4 + $0xe8] sm:$0xff]
    %v1786 = vld [vmem:[#allocation4 + $0xf0] sm:$0xff]
    %v1787 = vld [vmem:[#allocation4 + $0xf8] sm:$0xff]
    %v1788 = vld [vmem:[#allocation4 + $0x100] sm:$0xff]
    %v1789 = vld [vmem:[#allocation4 + $0x108] sm:$0xff]
    %v1790 = vld [vmem:[#allocation4 + $0x110] sm:$0xff]
    %v1791 = vld [vmem:[#allocation4 + $0x118] sm:$0xff]
    %v1792 = vld [vmem:[#allocation4 + $0x120] sm:$0xff]
    %v1793 = vld [vmem:[#allocation4 + $0x128] sm:$0xff]
    %v1794 = vld [vmem:[#allocation4 + $0x130] sm:$0xff]
    %v1795 = vld [vmem:[#allocation4 + $0x138] sm:$0xff]
    %v1796 = vld [vmem:[#allocation4 + $0x140] sm:$0xff]
    %v1797 = vld [vmem:[#allocation4 + $0x148] sm:$0xff]
    %v1798 = vld [vmem:[#allocation4 + $0x150] sm:$0xff]
    %v1799 = vld [vmem:[#allocation4 + $0x158] sm:$0xff]
    %v1800 = vld [vmem:[#allocation4 + $0x160] sm:$0xff]
    %v1801 = vld [vmem:[#allocation4 + $0x168] sm:$0xff]
    %v1802 = vld [vmem:[#allocation4 + $0x170] sm:$0xff]
    %v1803 = vld [vmem:[#allocation4 + $0x178] sm:$0xff]
    %v1804 = vld [vmem:[#allocation4 + $0x180] sm:$0xff]
    %v1805 = vld [vmem:[#allocation4 + $0x188] sm:$0xff]
    %v1806 = vld [vmem:[#allocation4 + $0x190] sm:$0xff]
    %v1807 = vld [vmem:[#allocation4 + $0x198] sm:$0xff]
    %v1808 = vld [vmem:[#allocation4 + $0x1a0] sm:$0xff]
    %v1809 = vld [vmem:[#allocation4 + $0x1a8] sm:$0xff]
    %v1810 = vld [vmem:[#allocation4 + $0x1b0] sm:$0xff]
    %v1811 = vld [vmem:[#allocation4 + $0x1b8] sm:$0xff]
    %v1812 = vld [vmem:[#allocation4 + $0x1c0] sm:$0xff]
    %v1813 = vld [vmem:[#allocation4 + $0x1c8] sm:$0xff]
    %v1814 = vld [vmem:[#allocation4 + $0x1d0] sm:$0xff]
    %v1815 = vld [vmem:[#allocation4 + $0x1d8] sm:$0xff]
    %v1816 = vld [vmem:[#allocation4 + $0x1e0] sm:$0xff]
    %v1817 = vld [vmem:[#allocation4 + $0x1e8] sm:$0xff]
    %v1818 = vld [vmem:[#allocation4 + $0x1f0] sm:$0xff]
    %v1819 = vld [vmem:[#allocation4 + $0x1f8] sm:$0xff]
    %v1820 = vld [vmem:[#allocation4 + $0x200] sm:$0xff]
    %v1821 = vld [vmem:[#allocation4 + $0x208] sm:$0xff]
    %v1822 = vld [vmem:[#allocation4 + $0x210] sm:$0xff]
    %v1823 = vld [vmem:[#allocation4 + $0x218] sm:$0xff]
    %v1824 = vld [vmem:[#allocation4 + $0x220] sm:$0xff]
    %v1825 = vld [vmem:[#allocation4 + $0x228] sm:$0xff]
    %v1826 = vld [vmem:[#allocation4 + $0x230] sm:$0xff]
    %v1827 = vld [vmem:[#allocation4 + $0x238] sm:$0xff]
    %v1828 = vld [vmem:[#allocation4 + $0x240] sm:$0xff]
    %v1829 = vld [vmem:[#allocation4 + $0x248] sm:$0xff]
    %v1830 = vld [vmem:[#allocation4 + $0x250] sm:$0xff]
    %v1831 = vld [vmem:[#allocation4 + $0x258] sm:$0xff]
    %v1832 = vld [vmem:[#allocation4 + $0x260] sm:$0xff]
    %v1833 = vld [vmem:[#allocation4 + $0x268] sm:$0xff]
    %v1834 = vld [vmem:[#allocation4 + $0x270] sm:$0xff]
    %v1835 = vld [vmem:[#allocation4 + $0x278] sm:$0xff]
    %v1836 = vld [vmem:[#allocation4 + $0x280] sm:$0xff]
    %v1837 = vld [vmem:[#allocation4 + $0x288] sm:$0xff]
    %v1838 = vld [vmem:[#allocation4 + $0x290] sm:$0xff]
    %v1839 = vld [vmem:[#allocation4 + $0x298] sm:$0xff]
    %v1840 = vld [vmem:[#allocation4 + $0x2a0] sm:$0xff]
    %v1841 = vld [vmem:[#allocation4 + $0x2a8] sm:$0xff]
    %v1842 = vld [vmem:[#allocation4 + $0x2b0] sm:$0xff]
    %v1843 = vld [vmem:[#allocation4 + $0x2b8] sm:$0xff]
    %v1844 = vld [vmem:[#allocation4 + $0x2c0] sm:$0xff]
    %v1845 = vld [vmem:[#allocation4 + $0x2c8] sm:$0xff]
    %v1846 = vld [vmem:[#allocation4 + $0x2d0] sm:$0xff]
    %v1847 = vld [vmem:[#allocation4 + $0x2d8] sm:$0xff]
    %v1848 = vld [vmem:[#allocation4 + $0x2e0] sm:$0xff]
    %v1849 = vld [vmem:[#allocation4 + $0x2e8] sm:$0xff]
    %v1850 = vld [vmem:[#allocation4 + $0x2f0] sm:$0xff]
    %v1851 = vld [vmem:[#allocation4 + $0x2f8] sm:$0xff]
    %v1852 = vld [vmem:[#allocation4 + $0x300] sm:$0xff]
    %v1853 = vld [vmem:[#allocation4 + $0x308] sm:$0xff]
    %v1854 = vld [vmem:[#allocation4 + $0x310] sm:$0xff]
    %v1855 = vld [vmem:[#allocation4 + $0x318] sm:$0xff]
    %v1856 = vld [vmem:[#allocation4 + $0x320] sm:$0xff]
    %v1857 = vld [vmem:[#allocation4 + $0x328] sm:$0xff]
    %v1858 = vld [vmem:[#allocation4 + $0x330] sm:$0xff]
    %v1859 = vld [vmem:[#allocation4 + $0x338] sm:$0xff]
    %v1860 = vld [vmem:[#allocation3] sm:$0xff]
    %v1861 = vld [vmem:[#allocation3 + $0x8] sm:$0xff]
    %v1862 = vld [vmem:[#allocation3 + $0x10] sm:$0xff]
    %v1863 = vld [vmem:[#allocation3 + $0x18] sm:$0xff]
    %v1864 = vld [vmem:[#allocation3 + $0x20] sm:$0xff]
    %v1865 = vld [vmem:[#allocation3 + $0x28] sm:$0xff]
    %v1866 = vld [vmem:[#allocation3 + $0x30] sm:$0xff]
    %v1867 = vld [vmem:[#allocation3 + $0x38] sm:$0xff]
    %s1868 = scalar_lea.vmem %s6, 32
    %v1869 = vld [vmem:[%s1868] sm:$0xff]
    %v1870 = vld [vmem:[%s1868 + $0x8] sm:$0xff]
    %v1871 = vld [vmem:[%s1868 + $0x10] sm:$0xff]
    %v1872 = vld [vmem:[%s1868 + $0x18] sm:$0xff]
    %1874 = vset.pattern.permute.xlu0 0
    %1875 = vperm.xlu0 %1874, %v1869
    %v1876 = vpop.permute.xlu0 %1875
    %1879 = vset.pattern.permute.xlu0 0
    %1880 = vperm.xlu0 %1879, %v1870
    %v1881 = vpop.permute.xlu0 %1880
    %1884 = vset.pattern.permute.xlu0 0
    %1885 = vperm.xlu0 %1884, %v1871
    %v1886 = vpop.permute.xlu0 %1885
    %1889 = vset.pattern.permute.xlu0 0
    %1890 = vperm.xlu0 %1889, %v1872
    %v1891 = vpop.permute.xlu0 %1890
    %v1894 = vsel %vm932, %v1743, 0
    %v1897 = vsel %vm932, %v1747, 0
    %v1900 = vsel %vm932, %v1751, 0
    %v1903 = vsel %vm932, %v1755, 0
    %1905 = vmatpush.msra.mxu0 %v1786
    %1906 = vmatpush.msra.mxu0 %v1784
    %1907 = vmatpush.msra.mxu0 %v1782
    %1908 = vmatpush.msra.mxu0 %v1780
    %1909 = vmatpush.msra.mxu0 %v1778
    %1910 = vmatpush.msra.mxu0 %v1776
    %1911 = vmatpush.msra.mxu0 %v1774
    %1912 = vmatpush.msra.mxu0 %v1772
    %1913 = vmatpush.msra.mxu0 %v1770
    %1914 = vmatpush.msra.mxu0 %v1768
    %1915 = vmatpush.msra.mxu0 %v1766
    %1916 = vmatpush.msra.mxu0 %v1764
    %1917 = vmatpush.msra.mxu0 %v1762
    %1918 = vmatpush.msra.mxu0 %v1760
    %1919 = vmatpush.msra.mxu0 %v1758
    %1920 = vmatpush.msra.mxu0 %v1756
    %1921 = vmatmul.f32.gmra.mxu0 %v1740
    %v1922 = vpop.f32.mrf.mxu0
    %v1923 = vadd.f32 %v1876, %v1922
    %1924 = vmatmul.f32.gmra.mxu0 %v1744
    %v1925 = vpop.f32.mrf.mxu0
    %v1926 = vadd.f32 %v1881, %v1925
    %1927 = vmatmul.f32.gmra.mxu0 %v1748
    %v1928 = vpop.f32.mrf.mxu0
    %v1929 = vadd.f32 %v1886, %v1928
    %1930 = vmatmul.f32.gmra.mxu0 %v1752
    %v1931 = vpop.f32.mrf.mxu0
    %v1932 = vadd.f32 %v1891, %v1931
    %1933 = vdwg.mxu0
    %1934 = vmatpush.msra.mxu0 %v1818
    %1935 = vmatpush.msra.mxu0 %v1816
    %1936 = vmatpush.msra.mxu0 %v1814
    %1937 = vmatpush.msra.mxu0 %v1812
    %1938 = vmatpush.msra.mxu0 %v1810
    %1939 = vmatpush.msra.mxu0 %v1808
    %1940 = vmatpush.msra.mxu0 %v1806
    %1941 = vmatpush.msra.mxu0 %v1804
    %1942 = vmatpush.msra.mxu0 %v1802
    %1943 = vmatpush.msra.mxu0 %v1800
    %1944 = vmatpush.msra.mxu0 %v1798
    %1945 = vmatpush.msra.mxu0 %v1796
    %1946 = vmatpush.msra.mxu0 %v1794
    %1947 = vmatpush.msra.mxu0 %v1792
    %1948 = vmatpush.msra.mxu0 %v1790
    %1949 = vmatpush.msra.mxu0 %v1788
    %1950 = vmatmul.f32.gmra.mxu0 %v1741
    %v1951 = vpop.f32.mrf.mxu0
    %v1952 = vadd.f32 %v1923, %v1951
    %1953 = vmatmul.f32.gmra.mxu0 %v1745
    %v1954 = vpop.f32.mrf.mxu0
    %v1955 = vadd.f32 %v1926, %v1954
    %1956 = vmatmul.f32.gmra.mxu0 %v1749
    %v1957 = vpop.f32.mrf.mxu0
    %v1958 = vadd.f32 %v1929, %v1957
    %1959 = vmatmul.f32.gmra.mxu0 %v1753
    %v1960 = vpop.f32.mrf.mxu0
    %v1961 = vadd.f32 %v1932, %v1960
    %1962 = vdwg.mxu0
    %1963 = vmatpush.msra.mxu0 %v1850
    %1964 = vmatpush.msra.mxu0 %v1848
    %1965 = vmatpush.msra.mxu0 %v1846
    %1966 = vmatpush.msra.mxu0 %v1844
    %1967 = vmatpush.msra.mxu0 %v1842
    %1968 = vmatpush.msra.mxu0 %v1840
    %1969 = vmatpush.msra.mxu0 %v1838
    %1970 = vmatpush.msra.mxu0 %v1836
    %1971 = vmatpush.msra.mxu0 %v1834
    %1972 = vmatpush.msra.mxu0 %v1832
    %1973 = vmatpush.msra.mxu0 %v1830
    %1974 = vmatpush.msra.mxu0 %v1828
    %1975 = vmatpush.msra.mxu0 %v1826
    %1976 = vmatpush.msra.mxu0 %v1824
    %1977 = vmatpush.msra.mxu0 %v1822
    %1978 = vmatpush.msra.mxu0 %v1820
    %1979 = vmatmul.f32.gmra.mxu0 %v1742
    %v1980 = vpop.f32.mrf.mxu0
    %v1981 = vadd.f32 %v1952, %v1980
    %1982 = vmatmul.f32.gmra.mxu0 %v1746
    %v1983 = vpop.f32.mrf.mxu0
    %v1984 = vadd.f32 %v1955, %v1983
    %1985 = vmatmul.f32.gmra.mxu0 %v1750
    %v1986 = vpop.f32.mrf.mxu0
    %v1987 = vadd.f32 %v1958, %v1986
    %1988 = vmatmul.f32.gmra.mxu0 %v1754
    %v1989 = vpop.f32.mrf.mxu0
    %v1990 = vadd.f32 %v1961, %v1989
    %1991 = vdwg.mxu0
    %1992 = vmatpush.msra.mxu0 0.0
    %1993 = vmatpush.msra.mxu0 0.0
    %1994 = vmatpush.msra.mxu0 0.0
    %1995 = vmatpush.msra.mxu0 0.0
    %1996 = vmatpush.msra.mxu0 0.0
    %1997 = vmatpush.msra.mxu0 0.0
    %1998 = vmatpush.msra.mxu0 0.0
    %1999 = vmatpush.msra.mxu0 0.0
    %2000 = vmatpush.msra.mxu0 0.0
    %2001 = vmatpush.msra.mxu0 0.0
    %2002 = vmatpush.msra.mxu0 0.0
    %2003 = vmatpush.msra.mxu0 0.0
    %2004 = vmatpush.msra.mxu0 %v1858
    %2005 = vmatpush.msra.mxu0 %v1856
    %2006 = vmatpush.msra.mxu0 %v1854
    %2007 = vmatpush.msra.mxu0 %v1852
    %2008 = vmatmul.f32.gmra.mxu0 %v1894
    %v2009 = vpop.f32.mrf.mxu0
    %v2010 = vadd.f32 %v1981, %v2009
    %2011 = vmatmul.f32.gmra.mxu0 %v1897
    %v2012 = vpop.f32.mrf.mxu0
    %v2013 = vadd.f32 %v1984, %v2012
    %2014 = vmatmul.f32.gmra.mxu0 %v1900
    %v2015 = vpop.f32.mrf.mxu0
    %v2016 = vadd.f32 %v1987, %v2015
    %2017 = vmatmul.f32.gmra.mxu0 %v1903
    %v2018 = vpop.f32.mrf.mxu0
    %v2019 = vadd.f32 %v1990, %v2018
    %2020 = vdwg.mxu0
    %2021 = vmatpush.msra.mxu0 %v1787
    %2022 = vmatpush.msra.mxu0 %v1785
    %2023 = vmatpush.msra.mxu0 %v1783
    %2024 = vmatpush.msra.mxu0 %v1781
    %2025 = vmatpush.msra.mxu0 %v1779
    %2026 = vmatpush.msra.mxu0 %v1777
    %2027 = vmatpush.msra.mxu0 %v1775
    %2028 = vmatpush.msra.mxu0 %v1773
    %2029 = vmatpush.msra.mxu0 %v1771
    %2030 = vmatpush.msra.mxu0 %v1769
    %2031 = vmatpush.msra.mxu0 %v1767
    %2032 = vmatpush.msra.mxu0 %v1765
    %2033 = vmatpush.msra.mxu0 %v1763
    %2034 = vmatpush.msra.mxu0 %v1761
    %2035 = vmatpush.msra.mxu0 %v1759
    %2036 = vmatpush.msra.mxu0 %v1757
    %2037 = vmatmul.f32.gmra.mxu0 %v1740
    %v2038 = vpop.f32.mrf.mxu0
    %v2039 = vadd.f32 %v1876, %v2038
    %2040 = vmatmul.f32.gmra.mxu0 %v1744
    %v2041 = vpop.f32.mrf.mxu0
    %v2042 = vadd.f32 %v1881, %v2041
    %2043 = vmatmul.f32.gmra.mxu0 %v1748
    %v2044 = vpop.f32.mrf.mxu0
    %v2045 = vadd.f32 %v1886, %v2044
    %2046 = vmatmul.f32.gmra.mxu0 %v1752
    %v2047 = vpop.f32.mrf.mxu0
    %v2048 = vadd.f32 %v1891, %v2047
    %2049 = vdwg.mxu0
    %2050 = vmatpush.msra.mxu0 %v1819
    %2051 = vmatpush.msra.mxu0 %v1817
    %2052 = vmatpush.msra.mxu0 %v1815
    %2053 = vmatpush.msra.mxu0 %v1813
    %2054 = vmatpush.msra.mxu0 %v1811
    %2055 = vmatpush.msra.mxu0 %v1809
    %2056 = vmatpush.msra.mxu0 %v1807
    %2057 = vmatpush.msra.mxu0 %v1805
    %2058 = vmatpush.msra.mxu0 %v1803
    %2059 = vmatpush.msra.mxu0 %v1801
    %2060 = vmatpush.msra.mxu0 %v1799
    %2061 = vmatpush.msra.mxu0 %v1797
    %2062 = vmatpush.msra.mxu0 %v1795
    %2063 = vmatpush.msra.mxu0 %v1793
    %2064 = vmatpush.msra.mxu0 %v1791
    %2065 = vmatpush.msra.mxu0 %v1789
    %2066 = vmatmul.f32.gmra.mxu0 %v1741
    %v2067 = vpop.f32.mrf.mxu0
    %v2068 = vadd.f32 %v2039, %v2067
    %2069 = vmatmul.f32.gmra.mxu0 %v1745
    %v2070 = vpop.f32.mrf.mxu0
    %v2071 = vadd.f32 %v2042, %v2070
    %2072 = vmatmul.f32.gmra.mxu0 %v1749
    %v2073 = vpop.f32.mrf.mxu0
    %v2074 = vadd.f32 %v2045, %v2073
    %2075 = vmatmul.f32.gmra.mxu0 %v1753
    %v2076 = vpop.f32.mrf.mxu0
    %v2077 = vadd.f32 %v2048, %v2076
    %2078 = vdwg.mxu0
    %2079 = vmatpush.msra.mxu0 %v1851
    %2080 = vmatpush.msra.mxu0 %v1849
    %2081 = vmatpush.msra.mxu0 %v1847
    %2082 = vmatpush.msra.mxu0 %v1845
    %2083 = vmatpush.msra.mxu0 %v1843
    %2084 = vmatpush.msra.mxu0 %v1841
    %2085 = vmatpush.msra.mxu0 %v1839
    %2086 = vmatpush.msra.mxu0 %v1837
    %2087 = vmatpush.msra.mxu0 %v1835
    %2088 = vmatpush.msra.mxu0 %v1833
    %2089 = vmatpush.msra.mxu0 %v1831
    %2090 = vmatpush.msra.mxu0 %v1829
    %2091 = vmatpush.msra.mxu0 %v1827
    %2092 = vmatpush.msra.mxu0 %v1825
    %2093 = vmatpush.msra.mxu0 %v1823
    %2094 = vmatpush.msra.mxu0 %v1821
    %2095 = vmatmul.f32.gmra.mxu0 %v1742
    %v2096 = vpop.f32.mrf.mxu0
    %v2097 = vadd.f32 %v2068, %v2096
    %2098 = vmatmul.f32.gmra.mxu0 %v1746
    %v2099 = vpop.f32.mrf.mxu0
    %v2100 = vadd.f32 %v2071, %v2099
    %2101 = vmatmul.f32.gmra.mxu0 %v1750
    %v2102 = vpop.f32.mrf.mxu0
    %v2103 = vadd.f32 %v2074, %v2102
    %2104 = vmatmul.f32.gmra.mxu0 %v1754
    %v2105 = vpop.f32.mrf.mxu0
    %v2106 = vadd.f32 %v2077, %v2105
    %2107 = vdwg.mxu0
    %2108 = vmatpush.msra.mxu0 0.0
    %2109 = vmatpush.msra.mxu0 0.0
    %2110 = vmatpush.msra.mxu0 0.0
    %2111 = vmatpush.msra.mxu0 0.0
    %2112 = vmatpush.msra.mxu0 0.0
    %2113 = vmatpush.msra.mxu0 0.0
    %2114 = vmatpush.msra.mxu0 0.0
    %2115 = vmatpush.msra.mxu0 0.0
    %2116 = vmatpush.msra.mxu0 0.0
    %2117 = vmatpush.msra.mxu0 0.0
    %2118 = vmatpush.msra.mxu0 0.0
    %2119 = vmatpush.msra.mxu0 0.0
    %2120 = vmatpush.msra.mxu0 %v1859
    %2121 = vmatpush.msra.mxu0 %v1857
    %2122 = vmatpush.msra.mxu0 %v1855
    %2123 = vmatpush.msra.mxu0 %v1853
    %2124 = vmatmul.f32.gmra.mxu0 %v1894
    %v2125 = vpop.f32.mrf.mxu0
    %v2126 = vadd.f32 %v2097, %v2125
    %2127 = vmatmul.f32.gmra.mxu0 %v1897
    %v2128 = vpop.f32.mrf.mxu0
    %v2129 = vadd.f32 %v2100, %v2128
    %2130 = vmatmul.f32.gmra.mxu0 %v1900
    %v2131 = vpop.f32.mrf.mxu0
    %v2132 = vadd.f32 %v2103, %v2131
    %2133 = vmatmul.f32.gmra.mxu0 %v1903
    %v2134 = vpop.f32.mrf.mxu0
    %v2135 = vadd.f32 %v2106, %v2134
    %2136 = vdwg.mxu0
    %v2137 = vmax.f32 %v2010, 0.0
    %v2138 = vmax.f32 %v2126, 0.0
    %v2139 = vmax.f32 %v2013, 0.0
    %v2140 = vmax.f32 %v2129, 0.0
    %v2141 = vmax.f32 %v2016, 0.0
    %v2142 = vmax.f32 %v2132, 0.0
    %v2143 = vmax.f32 %v2019, 0.0
    %v2144 = vmax.f32 %v2135, 0.0
    %v2145 = vadd.f32 %v1860, %v2137
    %v2146 = vadd.f32 %v1861, %v2138
    %v2147 = vadd.f32 %v1862, %v2139
    %v2148 = vadd.f32 %v1863, %v2140
    %v2149 = vadd.f32 %v1864, %v2141
    %v2150 = vadd.f32 %v1865, %v2142
    %v2151 = vadd.f32 %v1866, %v2143
    %v2152 = vadd.f32 %v1867, %v2144
    %2153 = vst [vmem:[#allocation3] sm:$0xff] %v2145
    %2154 = vst [vmem:[#allocation3 + $0x8] sm:$0xff] %v2146
    %2155 = vst [vmem:[#allocation3 + $0x10] sm:$0xff] %v2147
    %2156 = vst [vmem:[#allocation3 + $0x18] sm:$0xff] %v2148
    %2157 = vst [vmem:[#allocation3 + $0x20] sm:$0xff] %v2149
    %2158 = vst [vmem:[#allocation3 + $0x28] sm:$0xff] %v2150
    %2159 = vst [vmem:[#allocation3 + $0x30] sm:$0xff] %v2151
    %2160 = vst [vmem:[#allocation3 + $0x38] sm:$0xff] %v2152
    %v2161 = vld [vmem:[#allocation3] sm:$0xff]
    %v2162 = vld [vmem:[#allocation3 + $0x8] sm:$0xff]
    %v2163 = vld [vmem:[#allocation3 + $0x10] sm:$0xff]
    %v2164 = vld [vmem:[#allocation3 + $0x18] sm:$0xff]
    %v2165 = vld [vmem:[#allocation3 + $0x20] sm:$0xff]
    %v2166 = vld [vmem:[#allocation3 + $0x28] sm:$0xff]
    %v2167 = vld [vmem:[#allocation3 + $0x30] sm:$0xff]
    %v2168 = vld [vmem:[#allocation3 + $0x38] sm:$0xff]
    %2169 = vrot.lane.b32.xlu0 %v2161, 48
    %v2170 = vpop.permute.xlu0 %2169
    %2171 = vrot.lane.b32.xlu0 %v2163, 48
    %v2172 = vpop.permute.xlu0 %2171
    %2173 = vrot.lane.b32.xlu0 %v2165, 48
    %v2174 = vpop.permute.xlu0 %2173
    %2175 = vrot.lane.b32.xlu0 %v2167, 48
    %v2176 = vpop.permute.xlu0 %2175
    %2177 = vrot.lane.b32.xlu0 %v2162, 48
    %v2178 = vpop.permute.xlu0 %2177
    %2179 = vrot.lane.b32.xlu0 %v2164, 48
    %v2180 = vpop.permute.xlu0 %2179
    %2181 = vrot.lane.b32.xlu0 %v2166, 48
    %v2182 = vpop.permute.xlu0 %2181
    %2183 = vrot.lane.b32.xlu0 %v2168, 48
    %v2184 = vpop.permute.xlu0 %2183
    %vm2185 = vcmp.lt.s32.totalorder %v68, 48
    %v2186 = vsel %vm2185, %v2170, %v2178
    %v2187 = vsel %vm2185, %v2172, %v2180
    %v2188 = vsel %vm2185, %v2174, %v2182
    %v2189 = vsel %vm2185, %v2176, %v2184
    %v2190 = vsel %vm2185, %v2178, %v2170
    %v2191 = vsel %vm2185, %v2180, %v2172
    %v2192 = vsel %vm2185, %v2182, %v2174
    %v2193 = vsel %vm2185, %v2184, %v2176
    %vm2194 = vcmp.ge.s32.totalorder %v92, 48
    %vm2195 = vcmp.ge.s32.totalorder %v93, 48
    %v2196 = vsel %vm2194, 1, 0
    %v2197 = vsel %vm2195, 1, 0
    %vm2198 = vcmp.eq.s32.totalorder %v2196, 1
    %vm2199 = vcmp.eq.s32.totalorder %v2197, 1
    %v2200 = vsel %vm2198, %v2190, 0.0
    %v2201 = vsel %vm2199, %v2186, 0.0
    %v2202 = vsel %vm2198, %v2191, 0.0
    %v2203 = vsel %vm2199, %v2187, 0.0
    %v2204 = vsel %vm2198, %v2192, 0.0
    %v2205 = vsel %vm2199, %v2188, 0.0
    %v2206 = vsel %vm2198, %v2193, 0.0
    %v2207 = vsel %vm2199, %v2189, 0.0
    %2208 = vst [vmem:[#allocation4] sm:$0xff] %v2200
    %2209 = vst [vmem:[#allocation4 + $0x8] sm:$0xff] %v2201
    %2210 = vst [vmem:[#allocation4 + $0x10] sm:$0xff] %v2202
    %2211 = vst [vmem:[#allocation4 + $0x18] sm:$0xff] %v2203
    %2212 = vst [vmem:[#allocation4 + $0x20] sm:$0xff] %v2204
    %2213 = vst [vmem:[#allocation4 + $0x28] sm:$0xff] %v2205
    %2214 = vst [vmem:[#allocation4 + $0x30] sm:$0xff] %v2206
    %2215 = vst [vmem:[#allocation4 + $0x38] sm:$0xff] %v2207
    %2216 = vrot.lane.b32.xlu0 %v2161, 44
    %v2217 = vpop.permute.xlu0 %2216
    %2218 = vrot.lane.b32.xlu0 %v2163, 44
    %v2219 = vpop.permute.xlu0 %2218
    %2220 = vrot.lane.b32.xlu0 %v2165, 44
    %v2221 = vpop.permute.xlu0 %2220
    %2222 = vrot.lane.b32.xlu0 %v2167, 44
    %v2223 = vpop.permute.xlu0 %2222
    %2224 = vrot.lane.b32.xlu0 %v2162, 44
    %v2225 = vpop.permute.xlu0 %2224
    %2226 = vrot.lane.b32.xlu0 %v2164, 44
    %v2227 = vpop.permute.xlu0 %2226
    %2228 = vrot.lane.b32.xlu0 %v2166, 44
    %v2229 = vpop.permute.xlu0 %2228
    %2230 = vrot.lane.b32.xlu0 %v2168, 44
    %v2231 = vpop.permute.xlu0 %2230
    %vm2232 = vcmp.lt.s32.totalorder %v68, 44
    %v2233 = vsel %vm2232, %v2217, %v2225
    %v2234 = vsel %vm2232, %v2219, %v2227
    %v2235 = vsel %vm2232, %v2221, %v2229
    %v2236 = vsel %vm2232, %v2223, %v2231
    %v2237 = vsel %vm2232, %v2225, %v2217
    %v2238 = vsel %vm2232, %v2227, %v2219
    %v2239 = vsel %vm2232, %v2229, %v2221
    %v2240 = vsel %vm2232, %v2231, %v2223
    %vm2241 = vcmp.ge.s32.totalorder %v92, 44
    %vm2242 = vcmp.ge.s32.totalorder %v93, 44
    %v2243 = vsel %vm2241, 1, 0
    %v2244 = vsel %vm2242, 1, 0
    %vm2245 = vcmp.eq.s32.totalorder %v2243, 1
    %vm2246 = vcmp.eq.s32.totalorder %v2244, 1
    %v2247 = vsel %vm2245, %v2237, 0.0
    %v2248 = vsel %vm2246, %v2233, 0.0
    %v2249 = vsel %vm2245, %v2238, 0.0
    %v2250 = vsel %vm2246, %v2234, 0.0
    %v2251 = vsel %vm2245, %v2239, 0.0
    %v2252 = vsel %vm2246, %v2235, 0.0
    %v2253 = vsel %vm2245, %v2240, 0.0
    %v2254 = vsel %vm2246, %v2236, 0.0
    %2255 = vst [vmem:[#allocation4 + $0x40] sm:$0xff] %v2247
    %2256 = vst [vmem:[#allocation4 + $0x48] sm:$0xff] %v2248
    %2257 = vst [vmem:[#allocation4 + $0x50] sm:$0xff] %v2249
    %2258 = vst [vmem:[#allocation4 + $0x58] sm:$0xff] %v2250
    %2259 = vst [vmem:[#allocation4 + $0x60] sm:$0xff] %v2251
    %2260 = vst [vmem:[#allocation4 + $0x68] sm:$0xff] %v2252
    %2261 = vst [vmem:[#allocation4 + $0x70] sm:$0xff] %v2253
    %2262 = vst [vmem:[#allocation4 + $0x78] sm:$0xff] %v2254
    %2263 = vrot.lane.b32.xlu0 %v2161, 40
    %v2264 = vpop.permute.xlu0 %2263
    %2265 = vrot.lane.b32.xlu0 %v2163, 40
    %v2266 = vpop.permute.xlu0 %2265
    %2267 = vrot.lane.b32.xlu0 %v2165, 40
    %v2268 = vpop.permute.xlu0 %2267
    %2269 = vrot.lane.b32.xlu0 %v2167, 40
    %v2270 = vpop.permute.xlu0 %2269
    %2271 = vrot.lane.b32.xlu0 %v2162, 40
    %v2272 = vpop.permute.xlu0 %2271
    %2273 = vrot.lane.b32.xlu0 %v2164, 40
    %v2274 = vpop.permute.xlu0 %2273
    %2275 = vrot.lane.b32.xlu0 %v2166, 40
    %v2276 = vpop.permute.xlu0 %2275
    %2277 = vrot.lane.b32.xlu0 %v2168, 40
    %v2278 = vpop.permute.xlu0 %2277
    %vm2279 = vcmp.lt.s32.totalorder %v68, 40
    %v2280 = vsel %vm2279, %v2264, %v2272
    %v2281 = vsel %vm2279, %v2266, %v2274
    %v2282 = vsel %vm2279, %v2268, %v2276
    %v2283 = vsel %vm2279, %v2270, %v2278
    %v2284 = vsel %vm2279, %v2272, %v2264
    %v2285 = vsel %vm2279, %v2274, %v2266
    %v2286 = vsel %vm2279, %v2276, %v2268
    %v2287 = vsel %vm2279, %v2278, %v2270
    %vm2288 = vcmp.ge.s32.totalorder %v92, 40
    %vm2289 = vcmp.ge.s32.totalorder %v93, 40
    %v2290 = vsel %vm2288, 1, 0
    %v2291 = vsel %vm2289, 1, 0
    %vm2292 = vcmp.eq.s32.totalorder %v2290, 1
    %vm2293 = vcmp.eq.s32.totalorder %v2291, 1
    %v2294 = vsel %vm2292, %v2284, 0.0
    %v2295 = vsel %vm2293, %v2280, 0.0
    %v2296 = vsel %vm2292, %v2285, 0.0
    %v2297 = vsel %vm2293, %v2281, 0.0
    %v2298 = vsel %vm2292, %v2286, 0.0
    %v2299 = vsel %vm2293, %v2282, 0.0
    %v2300 = vsel %vm2292, %v2287, 0.0
    %v2301 = vsel %vm2293, %v2283, 0.0
    %2302 = vst [vmem:[#allocation4 + $0x80] sm:$0xff] %v2294
    %2303 = vst [vmem:[#allocation4 + $0x88] sm:$0xff] %v2295
    %2304 = vst [vmem:[#allocation4 + $0x90] sm:$0xff] %v2296
    %2305 = vst [vmem:[#allocation4 + $0x98] sm:$0xff] %v2297
    %2306 = vst [vmem:[#allocation4 + $0xa0] sm:$0xff] %v2298
    %2307 = vst [vmem:[#allocation4 + $0xa8] sm:$0xff] %v2299
    %2308 = vst [vmem:[#allocation4 + $0xb0] sm:$0xff] %v2300
    %2309 = vst [vmem:[#allocation4 + $0xb8] sm:$0xff] %v2301
    %2310 = vrot.lane.b32.xlu0 %v2161, 36
    %v2311 = vpop.permute.xlu0 %2310
    %2312 = vrot.lane.b32.xlu0 %v2163, 36
    %v2313 = vpop.permute.xlu0 %2312
    %2314 = vrot.lane.b32.xlu0 %v2165, 36
    %v2315 = vpop.permute.xlu0 %2314
    %2316 = vrot.lane.b32.xlu0 %v2167, 36
    %v2317 = vpop.permute.xlu0 %2316
    %2318 = vrot.lane.b32.xlu0 %v2162, 36
    %v2319 = vpop.permute.xlu0 %2318
    %2320 = vrot.lane.b32.xlu0 %v2164, 36
    %v2321 = vpop.permute.xlu0 %2320
    %2322 = vrot.lane.b32.xlu0 %v2166, 36
    %v2323 = vpop.permute.xlu0 %2322
    %2324 = vrot.lane.b32.xlu0 %v2168, 36
    %v2325 = vpop.permute.xlu0 %2324
    %vm2326 = vcmp.lt.s32.totalorder %v68, 36
    %v2327 = vsel %vm2326, %v2311, %v2319
    %v2328 = vsel %vm2326, %v2313, %v2321
    %v2329 = vsel %vm2326, %v2315, %v2323
    %v2330 = vsel %vm2326, %v2317, %v2325
    %v2331 = vsel %vm2326, %v2319, %v2311
    %v2332 = vsel %vm2326, %v2321, %v2313
    %v2333 = vsel %vm2326, %v2323, %v2315
    %v2334 = vsel %vm2326, %v2325, %v2317
    %vm2335 = vcmp.ge.s32.totalorder %v92, 36
    %vm2336 = vcmp.ge.s32.totalorder %v93, 36
    %v2337 = vsel %vm2335, 1, 0
    %v2338 = vsel %vm2336, 1, 0
    %vm2339 = vcmp.eq.s32.totalorder %v2337, 1
    %vm2340 = vcmp.eq.s32.totalorder %v2338, 1
    %v2341 = vsel %vm2339, %v2331, 0.0
    %v2342 = vsel %vm2340, %v2327, 0.0
    %v2343 = vsel %vm2339, %v2332, 0.0
    %v2344 = vsel %vm2340, %v2328, 0.0
    %v2345 = vsel %vm2339, %v2333, 0.0
    %v2346 = vsel %vm2340, %v2329, 0.0
    %v2347 = vsel %vm2339, %v2334, 0.0
    %v2348 = vsel %vm2340, %v2330, 0.0
    %2349 = vst [vmem:[#allocation4 + $0xc0] sm:$0xff] %v2341
    %2350 = vst [vmem:[#allocation4 + $0xc8] sm:$0xff] %v2342
    %2351 = vst [vmem:[#allocation4 + $0xd0] sm:$0xff] %v2343
    %2352 = vst [vmem:[#allocation4 + $0xd8] sm:$0xff] %v2344
    %2353 = vst [vmem:[#allocation4 + $0xe0] sm:$0xff] %v2345
    %2354 = vst [vmem:[#allocation4 + $0xe8] sm:$0xff] %v2346
    %2355 = vst [vmem:[#allocation4 + $0xf0] sm:$0xff] %v2347
    %2356 = vst [vmem:[#allocation4 + $0xf8] sm:$0xff] %v2348
    %2357 = vrot.lane.b32.xlu0 %v2161, 32
    %v2358 = vpop.permute.xlu0 %2357
    %2359 = vrot.lane.b32.xlu0 %v2163, 32
    %v2360 = vpop.permute.xlu0 %2359
    %2361 = vrot.lane.b32.xlu0 %v2165, 32
    %v2362 = vpop.permute.xlu0 %2361
    %2363 = vrot.lane.b32.xlu0 %v2167, 32
    %v2364 = vpop.permute.xlu0 %2363
    %2365 = vrot.lane.b32.xlu0 %v2162, 32
    %v2366 = vpop.permute.xlu0 %2365
    %2367 = vrot.lane.b32.xlu0 %v2164, 32
    %v2368 = vpop.permute.xlu0 %2367
    %2369 = vrot.lane.b32.xlu0 %v2166, 32
    %v2370 = vpop.permute.xlu0 %2369
    %2371 = vrot.lane.b32.xlu0 %v2168, 32
    %v2372 = vpop.permute.xlu0 %2371
    %vm2373 = vcmp.lt.s32.totalorder %v68, 32
    %v2374 = vsel %vm2373, %v2358, %v2366
    %v2375 = vsel %vm2373, %v2360, %v2368
    %v2376 = vsel %vm2373, %v2362, %v2370
    %v2377 = vsel %vm2373, %v2364, %v2372
    %v2378 = vsel %vm2373, %v2366, %v2358
    %v2379 = vsel %vm2373, %v2368, %v2360
    %v2380 = vsel %vm2373, %v2370, %v2362
    %v2381 = vsel %vm2373, %v2372, %v2364
    %vm2382 = vcmp.ge.s32.totalorder %v92, 32
    %vm2383 = vcmp.ge.s32.totalorder %v93, 32
    %v2384 = vsel %vm2382, 1, 0
    %v2385 = vsel %vm2383, 1, 0
    %vm2386 = vcmp.eq.s32.totalorder %v2384, 1
    %vm2387 = vcmp.eq.s32.totalorder %v2385, 1
    %v2388 = vsel %vm2386, %v2378, 0.0
    %v2389 = vsel %vm2387, %v2374, 0.0
    %v2390 = vsel %vm2386, %v2379, 0.0
    %v2391 = vsel %vm2387, %v2375, 0.0
    %v2392 = vsel %vm2386, %v2380, 0.0
    %v2393 = vsel %vm2387, %v2376, 0.0
    %v2394 = vsel %vm2386, %v2381, 0.0
    %v2395 = vsel %vm2387, %v2377, 0.0
    %2396 = vst [vmem:[#allocation4 + $0x100] sm:$0xff] %v2388
    %2397 = vst [vmem:[#allocation4 + $0x108] sm:$0xff] %v2389
    %2398 = vst [vmem:[#allocation4 + $0x110] sm:$0xff] %v2390
    %2399 = vst [vmem:[#allocation4 + $0x118] sm:$0xff] %v2391
    %2400 = vst [vmem:[#allocation4 + $0x120] sm:$0xff] %v2392
    %2401 = vst [vmem:[#allocation4 + $0x128] sm:$0xff] %v2393
    %2402 = vst [vmem:[#allocation4 + $0x130] sm:$0xff] %v2394
    %2403 = vst [vmem:[#allocation4 + $0x138] sm:$0xff] %v2395
    %2404 = vrot.lane.b32.xlu0 %v2161, 28
    %v2405 = vpop.permute.xlu0 %2404
    %2406 = vrot.lane.b32.xlu0 %v2163, 28
    %v2407 = vpop.permute.xlu0 %2406
    %2408 = vrot.lane.b32.xlu0 %v2165, 28
    %v2409 = vpop.permute.xlu0 %2408
    %2410 = vrot.lane.b32.xlu0 %v2167, 28
    %v2411 = vpop.permute.xlu0 %2410
    %2412 = vrot.lane.b32.xlu0 %v2162, 28
    %v2413 = vpop.permute.xlu0 %2412
    %2414 = vrot.lane.b32.xlu0 %v2164, 28
    %v2415 = vpop.permute.xlu0 %2414
    %2416 = vrot.lane.b32.xlu0 %v2166, 28
    %v2417 = vpop.permute.xlu0 %2416
    %2418 = vrot.lane.b32.xlu0 %v2168, 28
    %v2419 = vpop.permute.xlu0 %2418
    %vm2420 = vcmp.lt.s32.totalorder %v68, 28
    %v2421 = vsel %vm2420, %v2405, %v2413
    %v2422 = vsel %vm2420, %v2407, %v2415
    %v2423 = vsel %vm2420, %v2409, %v2417
    %v2424 = vsel %vm2420, %v2411, %v2419
    %v2425 = vsel %vm2420, %v2413, %v2405
    %v2426 = vsel %vm2420, %v2415, %v2407
    %v2427 = vsel %vm2420, %v2417, %v2409
    %v2428 = vsel %vm2420, %v2419, %v2411
    %vm2429 = vcmp.ge.s32.totalorder %v92, 28
    %vm2430 = vcmp.ge.s32.totalorder %v93, 28
    %v2431 = vsel %vm2429, 1, 0
    %v2432 = vsel %vm2430, 1, 0
    %vm2433 = vcmp.eq.s32.totalorder %v2431, 1
    %vm2434 = vcmp.eq.s32.totalorder %v2432, 1
    %v2435 = vsel %vm2433, %v2425, 0.0
    %v2436 = vsel %vm2434, %v2421, 0.0
    %v2437 = vsel %vm2433, %v2426, 0.0
    %v2438 = vsel %vm2434, %v2422, 0.0
    %v2439 = vsel %vm2433, %v2427, 0.0
    %v2440 = vsel %vm2434, %v2423, 0.0
    %v2441 = vsel %vm2433, %v2428, 0.0
    %v2442 = vsel %vm2434, %v2424, 0.0
    %2443 = vst [vmem:[#allocation4 + $0x140] sm:$0xff] %v2435
    %2444 = vst [vmem:[#allocation4 + $0x148] sm:$0xff] %v2436
    %2445 = vst [vmem:[#allocation4 + $0x150] sm:$0xff] %v2437
    %2446 = vst [vmem:[#allocation4 + $0x158] sm:$0xff] %v2438
    %2447 = vst [vmem:[#allocation4 + $0x160] sm:$0xff] %v2439
    %2448 = vst [vmem:[#allocation4 + $0x168] sm:$0xff] %v2440
    %2449 = vst [vmem:[#allocation4 + $0x170] sm:$0xff] %v2441
    %2450 = vst [vmem:[#allocation4 + $0x178] sm:$0xff] %v2442
    %2451 = vrot.lane.b32.xlu0 %v2161, 24
    %v2452 = vpop.permute.xlu0 %2451
    %2453 = vrot.lane.b32.xlu0 %v2163, 24
    %v2454 = vpop.permute.xlu0 %2453
    %2455 = vrot.lane.b32.xlu0 %v2165, 24
    %v2456 = vpop.permute.xlu0 %2455
    %2457 = vrot.lane.b32.xlu0 %v2167, 24
    %v2458 = vpop.permute.xlu0 %2457
    %2459 = vrot.lane.b32.xlu0 %v2162, 24
    %v2460 = vpop.permute.xlu0 %2459
    %2461 = vrot.lane.b32.xlu0 %v2164, 24
    %v2462 = vpop.permute.xlu0 %2461
    %2463 = vrot.lane.b32.xlu0 %v2166, 24
    %v2464 = vpop.permute.xlu0 %2463
    %2465 = vrot.lane.b32.xlu0 %v2168, 24
    %v2466 = vpop.permute.xlu0 %2465
    %v2467 = vsel %vm1225, %v2452, %v2460
    %v2468 = vsel %vm1225, %v2454, %v2462
    %v2469 = vsel %vm1225, %v2456, %v2464
    %v2470 = vsel %vm1225, %v2458, %v2466
    %v2471 = vsel %vm1225, %v2460, %v2452
    %v2472 = vsel %vm1225, %v2462, %v2454
    %v2473 = vsel %vm1225, %v2464, %v2456
    %v2474 = vsel %vm1225, %v2466, %v2458
    %v2475 = vsel %vm1238, %v2471, 0.0
    %v2476 = vsel %vm1239, %v2467, 0.0
    %v2477 = vsel %vm1238, %v2472, 0.0
    %v2478 = vsel %vm1239, %v2468, 0.0
    %v2479 = vsel %vm1238, %v2473, 0.0
    %v2480 = vsel %vm1239, %v2469, 0.0
    %v2481 = vsel %vm1238, %v2474, 0.0
    %v2482 = vsel %vm1239, %v2470, 0.0
    %2483 = vst [vmem:[#allocation4 + $0x180] sm:$0xff] %v2475
    %2484 = vst [vmem:[#allocation4 + $0x188] sm:$0xff] %v2476
    %2485 = vst [vmem:[#allocation4 + $0x190] sm:$0xff] %v2477
    %2486 = vst [vmem:[#allocation4 + $0x198] sm:$0xff] %v2478
    %2487 = vst [vmem:[#allocation4 + $0x1a0] sm:$0xff] %v2479
    %2488 = vst [vmem:[#allocation4 + $0x1a8] sm:$0xff] %v2480
    %2489 = vst [vmem:[#allocation4 + $0x1b0] sm:$0xff] %v2481
    %2490 = vst [vmem:[#allocation4 + $0x1b8] sm:$0xff] %v2482
    %2491 = vrot.lane.b32.xlu0 %v2161, 20
    %v2492 = vpop.permute.xlu0 %2491
    %2493 = vrot.lane.b32.xlu0 %v2163, 20
    %v2494 = vpop.permute.xlu0 %2493
    %2495 = vrot.lane.b32.xlu0 %v2165, 20
    %v2496 = vpop.permute.xlu0 %2495
    %2497 = vrot.lane.b32.xlu0 %v2167, 20
    %v2498 = vpop.permute.xlu0 %2497
    %2499 = vrot.lane.b32.xlu0 %v2162, 20
    %v2500 = vpop.permute.xlu0 %2499
    %2501 = vrot.lane.b32.xlu0 %v2164, 20
    %v2502 = vpop.permute.xlu0 %2501
    %2503 = vrot.lane.b32.xlu0 %v2166, 20
    %v2504 = vpop.permute.xlu0 %2503
    %2505 = vrot.lane.b32.xlu0 %v2168, 20
    %v2506 = vpop.permute.xlu0 %2505
    %v2507 = vsel %vm1319, %v2492, %v2500
    %v2508 = vsel %vm1319, %v2494, %v2502
    %v2509 = vsel %vm1319, %v2496, %v2504
    %v2510 = vsel %vm1319, %v2498, %v2506
    %v2511 = vsel %vm1319, %v2500, %v2492
    %v2512 = vsel %vm1319, %v2502, %v2494
    %v2513 = vsel %vm1319, %v2504, %v2496
    %v2514 = vsel %vm1319, %v2506, %v2498
    %v2515 = vsel %vm1332, %v2511, 0.0
    %v2516 = vsel %vm1333, %v2507, 0.0
    %v2517 = vsel %vm1332, %v2512, 0.0
    %v2518 = vsel %vm1333, %v2508, 0.0
    %v2519 = vsel %vm1332, %v2513, 0.0
    %v2520 = vsel %vm1333, %v2509, 0.0
    %v2521 = vsel %vm1332, %v2514, 0.0
    %v2522 = vsel %vm1333, %v2510, 0.0
    %2523 = vst [vmem:[#allocation4 + $0x1c0] sm:$0xff] %v2515
    %2524 = vst [vmem:[#allocation4 + $0x1c8] sm:$0xff] %v2516
    %2525 = vst [vmem:[#allocation4 + $0x1d0] sm:$0xff] %v2517
    %2526 = vst [vmem:[#allocation4 + $0x1d8] sm:$0xff] %v2518
    %2527 = vst [vmem:[#allocation4 + $0x1e0] sm:$0xff] %v2519
    %2528 = vst [vmem:[#allocation4 + $0x1e8] sm:$0xff] %v2520
    %2529 = vst [vmem:[#allocation4 + $0x1f0] sm:$0xff] %v2521
    %2530 = vst [vmem:[#allocation4 + $0x1f8] sm:$0xff] %v2522
    %2531 = vrot.lane.b32.xlu0 %v2161, 16
    %v2532 = vpop.permute.xlu0 %2531
    %2533 = vrot.lane.b32.xlu0 %v2163, 16
    %v2534 = vpop.permute.xlu0 %2533
    %2535 = vrot.lane.b32.xlu0 %v2165, 16
    %v2536 = vpop.permute.xlu0 %2535
    %2537 = vrot.lane.b32.xlu0 %v2167, 16
    %v2538 = vpop.permute.xlu0 %2537
    %2539 = vrot.lane.b32.xlu0 %v2162, 16
    %v2540 = vpop.permute.xlu0 %2539
    %2541 = vrot.lane.b32.xlu0 %v2164, 16
    %v2542 = vpop.permute.xlu0 %2541
    %2543 = vrot.lane.b32.xlu0 %v2166, 16
    %v2544 = vpop.permute.xlu0 %2543
    %2545 = vrot.lane.b32.xlu0 %v2168, 16
    %v2546 = vpop.permute.xlu0 %2545
    %v2547 = vsel %vm1413, %v2532, %v2540
    %v2548 = vsel %vm1413, %v2534, %v2542
    %v2549 = vsel %vm1413, %v2536, %v2544
    %v2550 = vsel %vm1413, %v2538, %v2546
    %v2551 = vsel %vm1413, %v2540, %v2532
    %v2552 = vsel %vm1413, %v2542, %v2534
    %v2553 = vsel %vm1413, %v2544, %v2536
    %v2554 = vsel %vm1413, %v2546, %v2538
    %v2555 = vsel %vm1426, %v2551, 0.0
    %v2556 = vsel %vm1427, %v2547, 0.0
    %v2557 = vsel %vm1426, %v2552, 0.0
    %v2558 = vsel %vm1427, %v2548, 0.0
    %v2559 = vsel %vm1426, %v2553, 0.0
    %v2560 = vsel %vm1427, %v2549, 0.0
    %v2561 = vsel %vm1426, %v2554, 0.0
    %v2562 = vsel %vm1427, %v2550, 0.0
    %2563 = vst [vmem:[#allocation4 + $0x200] sm:$0xff] %v2555
    %2564 = vst [vmem:[#allocation4 + $0x208] sm:$0xff] %v2556
    %2565 = vst [vmem:[#allocation4 + $0x210] sm:$0xff] %v2557
    %2566 = vst [vmem:[#allocation4 + $0x218] sm:$0xff] %v2558
    %2567 = vst [vmem:[#allocation4 + $0x220] sm:$0xff] %v2559
    %2568 = vst [vmem:[#allocation4 + $0x228] sm:$0xff] %v2560
    %2569 = vst [vmem:[#allocation4 + $0x230] sm:$0xff] %v2561
    %2570 = vst [vmem:[#allocation4 + $0x238] sm:$0xff] %v2562
    %2571 = vrot.lane.b32.xlu0 %v2161, 12
    %v2572 = vpop.permute.xlu0 %2571
    %2573 = vrot.lane.b32.xlu0 %v2163, 12
    %v2574 = vpop.permute.xlu0 %2573
    %2575 = vrot.lane.b32.xlu0 %v2165, 12
    %v2576 = vpop.permute.xlu0 %2575
    %2577 = vrot.lane.b32.xlu0 %v2167, 12
    %v2578 = vpop.permute.xlu0 %2577
    %2579 = vrot.lane.b32.xlu0 %v2162, 12
    %v2580 = vpop.permute.xlu0 %2579
    %2581 = vrot.lane.b32.xlu0 %v2164, 12
    %v2582 = vpop.permute.xlu0 %2581
    %2583 = vrot.lane.b32.xlu0 %v2166, 12
    %v2584 = vpop.permute.xlu0 %2583
    %2585 = vrot.lane.b32.xlu0 %v2168, 12
    %v2586 = vpop.permute.xlu0 %2585
    %v2587 = vsel %vm224, %v2572, %v2580
    %v2588 = vsel %vm224, %v2574, %v2582
    %v2589 = vsel %vm224, %v2576, %v2584
    %v2590 = vsel %vm224, %v2578, %v2586
    %v2591 = vsel %vm224, %v2580, %v2572
    %v2592 = vsel %vm224, %v2582, %v2574
    %v2593 = vsel %vm224, %v2584, %v2576
    %v2594 = vsel %vm224, %v2586, %v2578
    %v2595 = vsel %vm237, %v2591, 0.0
    %v2596 = vsel %vm238, %v2587, 0.0
    %v2597 = vsel %vm237, %v2592, 0.0
    %v2598 = vsel %vm238, %v2588, 0.0
    %v2599 = vsel %vm237, %v2593, 0.0
    %v2600 = vsel %vm238, %v2589, 0.0
    %v2601 = vsel %vm237, %v2594, 0.0
    %v2602 = vsel %vm238, %v2590, 0.0
    %2603 = vst [vmem:[#allocation4 + $0x240] sm:$0xff] %v2595
    %2604 = vst [vmem:[#allocation4 + $0x248] sm:$0xff] %v2596
    %2605 = vst [vmem:[#allocation4 + $0x250] sm:$0xff] %v2597
    %2606 = vst [vmem:[#allocation4 + $0x258] sm:$0xff] %v2598
    %2607 = vst [vmem:[#allocation4 + $0x260] sm:$0xff] %v2599
    %2608 = vst [vmem:[#allocation4 + $0x268] sm:$0xff] %v2600
    %2609 = vst [vmem:[#allocation4 + $0x270] sm:$0xff] %v2601
    %2610 = vst [vmem:[#allocation4 + $0x278] sm:$0xff] %v2602
    %2611 = vrot.lane.b32.xlu0 %v2161, 8
    %v2612 = vpop.permute.xlu0 %2611
    %2613 = vrot.lane.b32.xlu0 %v2163, 8
    %v2614 = vpop.permute.xlu0 %2613
    %2615 = vrot.lane.b32.xlu0 %v2165, 8
    %v2616 = vpop.permute.xlu0 %2615
    %2617 = vrot.lane.b32.xlu0 %v2167, 8
    %v2618 = vpop.permute.xlu0 %2617
    %2619 = vrot.lane.b32.xlu0 %v2162, 8
    %v2620 = vpop.permute.xlu0 %2619
    %2621 = vrot.lane.b32.xlu0 %v2164, 8
    %v2622 = vpop.permute.xlu0 %2621
    %2623 = vrot.lane.b32.xlu0 %v2166, 8
    %v2624 = vpop.permute.xlu0 %2623
    %2625 = vrot.lane.b32.xlu0 %v2168, 8
    %v2626 = vpop.permute.xlu0 %2625
    %v2627 = vsel %vm412, %v2612, %v2620
    %v2628 = vsel %vm412, %v2614, %v2622
    %v2629 = vsel %vm412, %v2616, %v2624
    %v2630 = vsel %vm412, %v2618, %v2626
    %v2631 = vsel %vm412, %v2620, %v2612
    %v2632 = vsel %vm412, %v2622, %v2614
    %v2633 = vsel %vm412, %v2624, %v2616
    %v2634 = vsel %vm412, %v2626, %v2618
    %v2635 = vsel %vm425, %v2631, 0.0
    %v2636 = vsel %vm426, %v2627, 0.0
    %v2637 = vsel %vm425, %v2632, 0.0
    %v2638 = vsel %vm426, %v2628, 0.0
    %v2639 = vsel %vm425, %v2633, 0.0
    %v2640 = vsel %vm426, %v2629, 0.0
    %v2641 = vsel %vm425, %v2634, 0.0
    %v2642 = vsel %vm426, %v2630, 0.0
    %2643 = vst [vmem:[#allocation4 + $0x280] sm:$0xff] %v2635
    %2644 = vst [vmem:[#allocation4 + $0x288] sm:$0xff] %v2636
    %2645 = vst [vmem:[#allocation4 + $0x290] sm:$0xff] %v2637
    %2646 = vst [vmem:[#allocation4 + $0x298] sm:$0xff] %v2638
    %2647 = vst [vmem:[#allocation4 + $0x2a0] sm:$0xff] %v2639
    %2648 = vst [vmem:[#allocation4 + $0x2a8] sm:$0xff] %v2640
    %2649 = vst [vmem:[#allocation4 + $0x2b0] sm:$0xff] %v2641
    %2650 = vst [vmem:[#allocation4 + $0x2b8] sm:$0xff] %v2642
    %2651 = vrot.lane.b32.xlu0 %v2161, 4
    %v2652 = vpop.permute.xlu0 %2651
    %2653 = vrot.lane.b32.xlu0 %v2163, 4
    %v2654 = vpop.permute.xlu0 %2653
    %2655 = vrot.lane.b32.xlu0 %v2165, 4
    %v2656 = vpop.permute.xlu0 %2655
    %2657 = vrot.lane.b32.xlu0 %v2167, 4
    %v2658 = vpop.permute.xlu0 %2657
    %2659 = vrot.lane.b32.xlu0 %v2162, 4
    %v2660 = vpop.permute.xlu0 %2659
    %2661 = vrot.lane.b32.xlu0 %v2164, 4
    %v2662 = vpop.permute.xlu0 %2661
    %2663 = vrot.lane.b32.xlu0 %v2166, 4
    %v2664 = vpop.permute.xlu0 %2663
    %2665 = vrot.lane.b32.xlu0 %v2168, 4
    %v2666 = vpop.permute.xlu0 %2665
    %v2667 = vsel %vm600, %v2652, %v2660
    %v2668 = vsel %vm600, %v2654, %v2662
    %v2669 = vsel %vm600, %v2656, %v2664
    %v2670 = vsel %vm600, %v2658, %v2666
    %v2671 = vsel %vm600, %v2660, %v2652
    %v2672 = vsel %vm600, %v2662, %v2654
    %v2673 = vsel %vm600, %v2664, %v2656
    %v2674 = vsel %vm600, %v2666, %v2658
    %v2675 = vsel %vm613, %v2671, 0.0
    %v2676 = vsel %vm614, %v2667, 0.0
    %v2677 = vsel %vm613, %v2672, 0.0
    %v2678 = vsel %vm614, %v2668, 0.0
    %v2679 = vsel %vm613, %v2673, 0.0
    %v2680 = vsel %vm614, %v2669, 0.0
    %v2681 = vsel %vm613, %v2674, 0.0
    %v2682 = vsel %vm614, %v2670, 0.0
    %2683 = vst [vmem:[#allocation4 + $0x2c0] sm:$0xff] %v2675
    %2684 = vst [vmem:[#allocation4 + $0x2c8] sm:$0xff] %v2676
    %2685 = vst [vmem:[#allocation4 + $0x2d0] sm:$0xff] %v2677
    %2686 = vst [vmem:[#allocation4 + $0x2d8] sm:$0xff] %v2678
    %2687 = vst [vmem:[#allocation4 + $0x2e0] sm:$0xff] %v2679
    %2688 = vst [vmem:[#allocation4 + $0x2e8] sm:$0xff] %v2680
    %2689 = vst [vmem:[#allocation4 + $0x2f0] sm:$0xff] %v2681
    %2690 = vst [vmem:[#allocation4 + $0x2f8] sm:$0xff] %v2682
    %2691 = vst [vmem:[#allocation4 + $0x300] sm:$0xff] %v2161
    %2692 = vst [vmem:[#allocation4 + $0x308] sm:$0xff] %v2162
    %2693 = vst [vmem:[#allocation4 + $0x310] sm:$0xff] %v2163
    %2694 = vst [vmem:[#allocation4 + $0x318] sm:$0xff] %v2164
    %2695 = vst [vmem:[#allocation4 + $0x320] sm:$0xff] %v2165
    %2696 = vst [vmem:[#allocation4 + $0x328] sm:$0xff] %v2166
    %2697 = vst [vmem:[#allocation4 + $0x330] sm:$0xff] %v2167
    %2698 = vst [vmem:[#allocation4 + $0x338] sm:$0xff] %v2168
    %s2699 = scalar_lea.vmem [#allocation9], 256
    %v2700 = vld [vmem:[%s2699] sm:$0xff]
    %v2701 = vld [vmem:[%s2699 + $0x8] sm:$0xff]
    %v2702 = vld [vmem:[%s2699 + $0x10] sm:$0xff]
    %v2703 = vld [vmem:[%s2699 + $0x18] sm:$0xff]
    %v2704 = vld [vmem:[%s2699 + $0x20] sm:$0xff]
    %v2705 = vld [vmem:[%s2699 + $0x28] sm:$0xff]
    %v2706 = vld [vmem:[%s2699 + $0x30] sm:$0xff]
    %v2707 = vld [vmem:[%s2699 + $0x38] sm:$0xff]
    %v2708 = vld [vmem:[%s2699 + $0x40] sm:$0xff]
    %v2709 = vld [vmem:[%s2699 + $0x48] sm:$0xff]
    %v2710 = vld [vmem:[%s2699 + $0x50] sm:$0xff]
    %v2711 = vld [vmem:[%s2699 + $0x58] sm:$0xff]
    %v2712 = vld [vmem:[%s2699 + $0x60] sm:$0xff]
    %v2713 = vld [vmem:[%s2699 + $0x68] sm:$0xff]
    %v2714 = vld [vmem:[%s2699 + $0x70] sm:$0xff]
    %v2715 = vld [vmem:[%s2699 + $0x78] sm:$0xff]
    %v2716 = vld [vmem:[#allocation4] sm:$0xff]
    %v2717 = vld [vmem:[#allocation4 + $0x8] sm:$0xff]
    %v2718 = vld [vmem:[#allocation4 + $0x10] sm:$0xff]
    %v2719 = vld [vmem:[#allocation4 + $0x18] sm:$0xff]
    %v2720 = vld [vmem:[#allocation4 + $0x20] sm:$0xff]
    %v2721 = vld [vmem:[#allocation4 + $0x28] sm:$0xff]
    %v2722 = vld [vmem:[#allocation4 + $0x30] sm:$0xff]
    %v2723 = vld [vmem:[#allocation4 + $0x38] sm:$0xff]
    %v2724 = vld [vmem:[#allocation4 + $0x40] sm:$0xff]
    %v2725 = vld [vmem:[#allocation4 + $0x48] sm:$0xff]
    %v2726 = vld [vmem:[#allocation4 + $0x50] sm:$0xff]
    %v2727 = vld [vmem:[#allocation4 + $0x58] sm:$0xff]
    %v2728 = vld [vmem:[#allocation4 + $0x60] sm:$0xff]
    %v2729 = vld [vmem:[#allocation4 + $0x68] sm:$0xff]
    %v2730 = vld [vmem:[#allocation4 + $0x70] sm:$0xff]
    %v2731 = vld [vmem:[#allocation4 + $0x78] sm:$0xff]
    %v2732 = vld [vmem:[#allocation4 + $0x80] sm:$0xff]
    %v2733 = vld [vmem:[#allocation4 + $0x88] sm:$0xff]
    %v2734 = vld [vmem:[#allocation4 + $0x90] sm:$0xff]
    %v2735 = vld [vmem:[#allocation4 + $0x98] sm:$0xff]
    %v2736 = vld [vmem:[#allocation4 + $0xa0] sm:$0xff]
    %v2737 = vld [vmem:[#allocation4 + $0xa8] sm:$0xff]
    %v2738 = vld [vmem:[#allocation4 + $0xb0] sm:$0xff]
    %v2739 = vld [vmem:[#allocation4 + $0xb8] sm:$0xff]
    %v2740 = vld [vmem:[#allocation4 + $0xc0] sm:$0xff]
    %v2741 = vld [vmem:[#allocation4 + $0xc8] sm:$0xff]
    %v2742 = vld [vmem:[#allocation4 + $0xd0] sm:$0xff]
    %v2743 = vld [vmem:[#allocation4 + $0xd8] sm:$0xff]
    %v2744 = vld [vmem:[#allocation4 + $0xe0] sm:$0xff]
    %v2745 = vld [vmem:[#allocation4 + $0xe8] sm:$0xff]
    %v2746 = vld [vmem:[#allocation4 + $0xf0] sm:$0xff]
    %v2747 = vld [vmem:[#allocation4 + $0xf8] sm:$0xff]
    %v2748 = vld [vmem:[#allocation4 + $0x100] sm:$0xff]
    %v2749 = vld [vmem:[#allocation4 + $0x108] sm:$0xff]
    %v2750 = vld [vmem:[#allocation4 + $0x110] sm:$0xff]
    %v2751 = vld [vmem:[#allocation4 + $0x118] sm:$0xff]
    %v2752 = vld [vmem:[#allocation4 + $0x120] sm:$0xff]
    %v2753 = vld [vmem:[#allocation4 + $0x128] sm:$0xff]
    %v2754 = vld [vmem:[#allocation4 + $0x130] sm:$0xff]
    %v2755 = vld [vmem:[#allocation4 + $0x138] sm:$0xff]
    %v2756 = vld [vmem:[#allocation4 + $0x140] sm:$0xff]
    %v2757 = vld [vmem:[#allocation4 + $0x148] sm:$0xff]
    %v2758 = vld [vmem:[#allocation4 + $0x150] sm:$0xff]
    %v2759 = vld [vmem:[#allocation4 + $0x158] sm:$0xff]
    %v2760 = vld [vmem:[#allocation4 + $0x160] sm:$0xff]
    %v2761 = vld [vmem:[#allocation4 + $0x168] sm:$0xff]
    %v2762 = vld [vmem:[#allocation4 + $0x170] sm:$0xff]
    %v2763 = vld [vmem:[#allocation4 + $0x178] sm:$0xff]
    %v2764 = vld [vmem:[#allocation4 + $0x180] sm:$0xff]
    %v2765 = vld [vmem:[#allocation4 + $0x188] sm:$0xff]
    %v2766 = vld [vmem:[#allocation4 + $0x190] sm:$0xff]
    %v2767 = vld [vmem:[#allocation4 + $0x198] sm:$0xff]
    %v2768 = vld [vmem:[#allocation4 + $0x1a0] sm:$0xff]
    %v2769 = vld [vmem:[#allocation4 + $0x1a8] sm:$0xff]
    %v2770 = vld [vmem:[#allocation4 + $0x1b0] sm:$0xff]
    %v2771 = vld [vmem:[#allocation4 + $0x1b8] sm:$0xff]
    %v2772 = vld [vmem:[#allocation4 + $0x1c0] sm:$0xff]
    %v2773 = vld [vmem:[#allocation4 + $0x1c8] sm:$0xff]
    %v2774 = vld [vmem:[#allocation4 + $0x1d0] sm:$0xff]
    %v2775 = vld [vmem:[#allocation4 + $0x1d8] sm:$0xff]
    %v2776 = vld [vmem:[#allocation4 + $0x1e0] sm:$0xff]
    %v2777 = vld [vmem:[#allocation4 + $0x1e8] sm:$0xff]
    %v2778 = vld [vmem:[#allocation4 + $0x1f0] sm:$0xff]
    %v2779 = vld [vmem:[#allocation4 + $0x1f8] sm:$0xff]
    %v2780 = vld [vmem:[#allocation4 + $0x200] sm:$0xff]
    %v2781 = vld [vmem:[#allocation4 + $0x208] sm:$0xff]
    %v2782 = vld [vmem:[#allocation4 + $0x210] sm:$0xff]
    %v2783 = vld [vmem:[#allocation4 + $0x218] sm:$0xff]
    %v2784 = vld [vmem:[#allocation4 + $0x220] sm:$0xff]
    %v2785 = vld [vmem:[#allocation4 + $0x228] sm:$0xff]
    %v2786 = vld [vmem:[#allocation4 + $0x230] sm:$0xff]
    %v2787 = vld [vmem:[#allocation4 + $0x238] sm:$0xff]
    %v2788 = vld [vmem:[#allocation4 + $0x240] sm:$0xff]
    %v2789 = vld [vmem:[#allocation4 + $0x248] sm:$0xff]
    %v2790 = vld [vmem:[#allocation4 + $0x250] sm:$0xff]
    %v2791 = vld [vmem:[#allocation4 + $0x258] sm:$0xff]
    %v2792 = vld [vmem:[#allocation4 + $0x260] sm:$0xff]
    %v2793 = vld [vmem:[#allocation4 + $0x268] sm:$0xff]
    %v2794 = vld [vmem:[#allocation4 + $0x270] sm:$0xff]
    %v2795 = vld [vmem:[#allocation4 + $0x278] sm:$0xff]
    %v2796 = vld [vmem:[#allocation4 + $0x280] sm:$0xff]
    %v2797 = vld [vmem:[#allocation4 + $0x288] sm:$0xff]
    %v2798 = vld [vmem:[#allocation4 + $0x290] sm:$0xff]
    %v2799 = vld [vmem:[#allocation4 + $0x298] sm:$0xff]
    %v2800 = vld [vmem:[#allocation4 + $0x2a0] sm:$0xff]
    %v2801 = vld [vmem:[#allocation4 + $0x2a8] sm:$0xff]
    %v2802 = vld [vmem:[#allocation4 + $0x2b0] sm:$0xff]
    %v2803 = vld [vmem:[#allocation4 + $0x2b8] sm:$0xff]
    %v2804 = vld [vmem:[#allocation4 + $0x2c0] sm:$0xff]
    %v2805 = vld [vmem:[#allocation4 + $0x2c8] sm:$0xff]
    %v2806 = vld [vmem:[#allocation4 + $0x2d0] sm:$0xff]
    %v2807 = vld [vmem:[#allocation4 + $0x2d8] sm:$0xff]
    %v2808 = vld [vmem:[#allocation4 + $0x2e0] sm:$0xff]
    %v2809 = vld [vmem:[#allocation4 + $0x2e8] sm:$0xff]
    %v2810 = vld [vmem:[#allocation4 + $0x2f0] sm:$0xff]
    %v2811 = vld [vmem:[#allocation4 + $0x2f8] sm:$0xff]
    %v2812 = vld [vmem:[#allocation4 + $0x300] sm:$0xff]
    %v2813 = vld [vmem:[#allocation4 + $0x308] sm:$0xff]
    %v2814 = vld [vmem:[#allocation4 + $0x310] sm:$0xff]
    %v2815 = vld [vmem:[#allocation4 + $0x318] sm:$0xff]
    %v2816 = vld [vmem:[#allocation4 + $0x320] sm:$0xff]
    %v2817 = vld [vmem:[#allocation4 + $0x328] sm:$0xff]
    %v2818 = vld [vmem:[#allocation4 + $0x330] sm:$0xff]
    %v2819 = vld [vmem:[#allocation4 + $0x338] sm:$0xff]
    %v2820 = vld [vmem:[#allocation3] sm:$0xff]
    %v2821 = vld [vmem:[#allocation3 + $0x8] sm:$0xff]
    %v2822 = vld [vmem:[#allocation3 + $0x10] sm:$0xff]
    %v2823 = vld [vmem:[#allocation3 + $0x18] sm:$0xff]
    %v2824 = vld [vmem:[#allocation3 + $0x20] sm:$0xff]
    %v2825 = vld [vmem:[#allocation3 + $0x28] sm:$0xff]
    %v2826 = vld [vmem:[#allocation3 + $0x30] sm:$0xff]
    %v2827 = vld [vmem:[#allocation3 + $0x38] sm:$0xff]
    %s2828 = scalar_lea.vmem %s6, 64
    %v2829 = vld [vmem:[%s2828] sm:$0xff]
    %v2830 = vld [vmem:[%s2828 + $0x8] sm:$0xff]
    %v2831 = vld [vmem:[%s2828 + $0x10] sm:$0xff]
    %v2832 = vld [vmem:[%s2828 + $0x18] sm:$0xff]
    %2834 = vset.pattern.permute.xlu0 0
    %2835 = vperm.xlu0 %2834, %v2829
    %v2836 = vpop.permute.xlu0 %2835
    %2839 = vset.pattern.permute.xlu0 0
    %2840 = vperm.xlu0 %2839, %v2830
    %v2841 = vpop.permute.xlu0 %2840
    %2844 = vset.pattern.permute.xlu0 0
    %2845 = vperm.xlu0 %2844, %v2831
    %v2846 = vpop.permute.xlu0 %2845
    %2849 = vset.pattern.permute.xlu0 0
    %2850 = vperm.xlu0 %2849, %v2832
    %v2851 = vpop.permute.xlu0 %2850
    %v2854 = vsel %vm932, %v2703, 0
    %v2857 = vsel %vm932, %v2707, 0
    %v2860 = vsel %vm932, %v2711, 0
    %v2863 = vsel %vm932, %v2715, 0
    %2865 = vmatpush.msra.mxu0 %v2746
    %2866 = vmatpush.msra.mxu0 %v2744
    %2867 = vmatpush.msra.mxu0 %v2742
    %2868 = vmatpush.msra.mxu0 %v2740
    %2869 = vmatpush.msra.mxu0 %v2738
    %2870 = vmatpush.msra.mxu0 %v2736
    %2871 = vmatpush.msra.mxu0 %v2734
    %2872 = vmatpush.msra.mxu0 %v2732
    %2873 = vmatpush.msra.mxu0 %v2730
    %2874 = vmatpush.msra.mxu0 %v2728
    %2875 = vmatpush.msra.mxu0 %v2726
    %2876 = vmatpush.msra.mxu0 %v2724
    %2877 = vmatpush.msra.mxu0 %v2722
    %2878 = vmatpush.msra.mxu0 %v2720
    %2879 = vmatpush.msra.mxu0 %v2718
    %2880 = vmatpush.msra.mxu0 %v2716
    %2881 = vmatmul.f32.gmra.mxu0 %v2700
    %v2882 = vpop.f32.mrf.mxu0
    %v2883 = vadd.f32 %v2836, %v2882
    %2884 = vmatmul.f32.gmra.mxu0 %v2704
    %v2885 = vpop.f32.mrf.mxu0
    %v2886 = vadd.f32 %v2841, %v2885
    %2887 = vmatmul.f32.gmra.mxu0 %v2708
    %v2888 = vpop.f32.mrf.mxu0
    %v2889 = vadd.f32 %v2846, %v2888
    %2890 = vmatmul.f32.gmra.mxu0 %v2712
    %v2891 = vpop.f32.mrf.mxu0
    %v2892 = vadd.f32 %v2851, %v2891
    %2893 = vdwg.mxu0
    %2894 = vmatpush.msra.mxu0 %v2778
    %2895 = vmatpush.msra.mxu0 %v2776
    %2896 = vmatpush.msra.mxu0 %v2774
    %2897 = vmatpush.msra.mxu0 %v2772
    %2898 = vmatpush.msra.mxu0 %v2770
    %2899 = vmatpush.msra.mxu0 %v2768
    %2900 = vmatpush.msra.mxu0 %v2766
    %2901 = vmatpush.msra.mxu0 %v2764
    %2902 = vmatpush.msra.mxu0 %v2762
    %2903 = vmatpush.msra.mxu0 %v2760
    %2904 = vmatpush.msra.mxu0 %v2758
    %2905 = vmatpush.msra.mxu0 %v2756
    %2906 = vmatpush.msra.mxu0 %v2754
    %2907 = vmatpush.msra.mxu0 %v2752
    %2908 = vmatpush.msra.mxu0 %v2750
    %2909 = vmatpush.msra.mxu0 %v2748
    %2910 = vmatmul.f32.gmra.mxu0 %v2701
    %v2911 = vpop.f32.mrf.mxu0
    %v2912 = vadd.f32 %v2883, %v2911
    %2913 = vmatmul.f32.gmra.mxu0 %v2705
    %v2914 = vpop.f32.mrf.mxu0
    %v2915 = vadd.f32 %v2886, %v2914
    %2916 = vmatmul.f32.gmra.mxu0 %v2709
    %v2917 = vpop.f32.mrf.mxu0
    %v2918 = vadd.f32 %v2889, %v2917
    %2919 = vmatmul.f32.gmra.mxu0 %v2713
    %v2920 = vpop.f32.mrf.mxu0
    %v2921 = vadd.f32 %v2892, %v2920
    %2922 = vdwg.mxu0
    %2923 = vmatpush.msra.mxu0 %v2810
    %2924 = vmatpush.msra.mxu0 %v2808
    %2925 = vmatpush.msra.mxu0 %v2806
    %2926 = vmatpush.msra.mxu0 %v2804
    %2927 = vmatpush.msra.mxu0 %v2802
    %2928 = vmatpush.msra.mxu0 %v2800
    %2929 = vmatpush.msra.mxu0 %v2798
    %2930 = vmatpush.msra.mxu0 %v2796
    %2931 = vmatpush.msra.mxu0 %v2794
    %2932 = vmatpush.msra.mxu0 %v2792
    %2933 = vmatpush.msra.mxu0 %v2790
    %2934 = vmatpush.msra.mxu0 %v2788
    %2935 = vmatpush.msra.mxu0 %v2786
    %2936 = vmatpush.msra.mxu0 %v2784
    %2937 = vmatpush.msra.mxu0 %v2782
    %2938 = vmatpush.msra.mxu0 %v2780
    %2939 = vmatmul.f32.gmra.mxu0 %v2702
    %v2940 = vpop.f32.mrf.mxu0
    %v2941 = vadd.f32 %v2912, %v2940
    %2942 = vmatmul.f32.gmra.mxu0 %v2706
    %v2943 = vpop.f32.mrf.mxu0
    %v2944 = vadd.f32 %v2915, %v2943
    %2945 = vmatmul.f32.gmra.mxu0 %v2710
    %v2946 = vpop.f32.mrf.mxu0
    %v2947 = vadd.f32 %v2918, %v2946
    %2948 = vmatmul.f32.gmra.mxu0 %v2714
    %v2949 = vpop.f32.mrf.mxu0
    %v2950 = vadd.f32 %v2921, %v2949
    %2951 = vdwg.mxu0
    %2952 = vmatpush.msra.mxu0 0.0
    %2953 = vmatpush.msra.mxu0 0.0
    %2954 = vmatpush.msra.mxu0 0.0
    %2955 = vmatpush.msra.mxu0 0.0
    %2956 = vmatpush.msra.mxu0 0.0
    %2957 = vmatpush.msra.mxu0 0.0
    %2958 = vmatpush.msra.mxu0 0.0
    %2959 = vmatpush.msra.mxu0 0.0
    %2960 = vmatpush.msra.mxu0 0.0
    %2961 = vmatpush.msra.mxu0 0.0
    %2962 = vmatpush.msra.mxu0 0.0
    %2963 = vmatpush.msra.mxu0 0.0
    %2964 = vmatpush.msra.mxu0 %v2818
    %2965 = vmatpush.msra.mxu0 %v2816
    %2966 = vmatpush.msra.mxu0 %v2814
    %2967 = vmatpush.msra.mxu0 %v2812
    %2968 = vmatmul.f32.gmra.mxu0 %v2854
    %v2969 = vpop.f32.mrf.mxu0
    %v2970 = vadd.f32 %v2941, %v2969
    %2971 = vmatmul.f32.gmra.mxu0 %v2857
    %v2972 = vpop.f32.mrf.mxu0
    %v2973 = vadd.f32 %v2944, %v2972
    %2974 = vmatmul.f32.gmra.mxu0 %v2860
    %v2975 = vpop.f32.mrf.mxu0
    %v2976 = vadd.f32 %v2947, %v2975
    %2977 = vmatmul.f32.gmra.mxu0 %v2863
    %v2978 = vpop.f32.mrf.mxu0
    %v2979 = vadd.f32 %v2950, %v2978
    %2980 = vdwg.mxu0
    %2981 = vmatpush.msra.mxu0 %v2747
    %2982 = vmatpush.msra.mxu0 %v2745
    %2983 = vmatpush.msra.mxu0 %v2743
    %2984 = vmatpush.msra.mxu0 %v2741
    %2985 = vmatpush.msra.mxu0 %v2739
    %2986 = vmatpush.msra.mxu0 %v2737
    %2987 = vmatpush.msra.mxu0 %v2735
    %2988 = vmatpush.msra.mxu0 %v2733
    %2989 = vmatpush.msra.mxu0 %v2731
    %2990 = vmatpush.msra.mxu0 %v2729
    %2991 = vmatpush.msra.mxu0 %v2727
    %2992 = vmatpush.msra.mxu0 %v2725
    %2993 = vmatpush.msra.mxu0 %v2723
    %2994 = vmatpush.msra.mxu0 %v2721
    %2995 = vmatpush.msra.mxu0 %v2719
    %2996 = vmatpush.msra.mxu0 %v2717
    %2997 = vmatmul.f32.gmra.mxu0 %v2700
    %v2998 = vpop.f32.mrf.mxu0
    %v2999 = vadd.f32 %v2836, %v2998
    %3000 = vmatmul.f32.gmra.mxu0 %v2704
    %v3001 = vpop.f32.mrf.mxu0
    %v3002 = vadd.f32 %v2841, %v3001
    %3003 = vmatmul.f32.gmra.mxu0 %v2708
    %v3004 = vpop.f32.mrf.mxu0
    %v3005 = vadd.f32 %v2846, %v3004
    %3006 = vmatmul.f32.gmra.mxu0 %v2712
    %v3007 = vpop.f32.mrf.mxu0
    %v3008 = vadd.f32 %v2851, %v3007
    %3009 = vdwg.mxu0
    %3010 = vmatpush.msra.mxu0 %v2779
    %3011 = vmatpush.msra.mxu0 %v2777
    %3012 = vmatpush.msra.mxu0 %v2775
    %3013 = vmatpush.msra.mxu0 %v2773
    %3014 = vmatpush.msra.mxu0 %v2771
    %3015 = vmatpush.msra.mxu0 %v2769
    %3016 = vmatpush.msra.mxu0 %v2767
    %3017 = vmatpush.msra.mxu0 %v2765
    %3018 = vmatpush.msra.mxu0 %v2763
    %3019 = vmatpush.msra.mxu0 %v2761
    %3020 = vmatpush.msra.mxu0 %v2759
    %3021 = vmatpush.msra.mxu0 %v2757
    %3022 = vmatpush.msra.mxu0 %v2755
    %3023 = vmatpush.msra.mxu0 %v2753
    %3024 = vmatpush.msra.mxu0 %v2751
    %3025 = vmatpush.msra.mxu0 %v2749
    %3026 = vmatmul.f32.gmra.mxu0 %v2701
    %v3027 = vpop.f32.mrf.mxu0
    %v3028 = vadd.f32 %v2999, %v3027
    %3029 = vmatmul.f32.gmra.mxu0 %v2705
    %v3030 = vpop.f32.mrf.mxu0
    %v3031 = vadd.f32 %v3002, %v3030
    %3032 = vmatmul.f32.gmra.mxu0 %v2709
    %v3033 = vpop.f32.mrf.mxu0
    %v3034 = vadd.f32 %v3005, %v3033
    %3035 = vmatmul.f32.gmra.mxu0 %v2713
    %v3036 = vpop.f32.mrf.mxu0
    %v3037 = vadd.f32 %v3008, %v3036
    %3038 = vdwg.mxu0
    %3039 = vmatpush.msra.mxu0 %v2811
    %3040 = vmatpush.msra.mxu0 %v2809
    %3041 = vmatpush.msra.mxu0 %v2807
    %3042 = vmatpush.msra.mxu0 %v2805
    %3043 = vmatpush.msra.mxu0 %v2803
    %3044 = vmatpush.msra.mxu0 %v2801
    %3045 = vmatpush.msra.mxu0 %v2799
    %3046 = vmatpush.msra.mxu0 %v2797
    %3047 = vmatpush.msra.mxu0 %v2795
    %3048 = vmatpush.msra.mxu0 %v2793
    %3049 = vmatpush.msra.mxu0 %v2791
    %3050 = vmatpush.msra.mxu0 %v2789
    %3051 = vmatpush.msra.mxu0 %v2787
    %3052 = vmatpush.msra.mxu0 %v2785
    %3053 = vmatpush.msra.mxu0 %v2783
    %3054 = vmatpush.msra.mxu0 %v2781
    %3055 = vmatmul.f32.gmra.mxu0 %v2702
    %v3056 = vpop.f32.mrf.mxu0
    %v3057 = vadd.f32 %v3028, %v3056
    %3058 = vmatmul.f32.gmra.mxu0 %v2706
    %v3059 = vpop.f32.mrf.mxu0
    %v3060 = vadd.f32 %v3031, %v3059
    %3061 = vmatmul.f32.gmra.mxu0 %v2710
    %v3062 = vpop.f32.mrf.mxu0
    %v3063 = vadd.f32 %v3034, %v3062
    %3064 = vmatmul.f32.gmra.mxu0 %v2714
    %v3065 = vpop.f32.mrf.mxu0
    %v3066 = vadd.f32 %v3037, %v3065
    %3067 = vdwg.mxu0
    %3068 = vmatpush.msra.mxu0 0.0
    %3069 = vmatpush.msra.mxu0 0.0
    %3070 = vmatpush.msra.mxu0 0.0
    %3071 = vmatpush.msra.mxu0 0.0
    %3072 = vmatpush.msra.mxu0 0.0
    %3073 = vmatpush.msra.mxu0 0.0
    %3074 = vmatpush.msra.mxu0 0.0
    %3075 = vmatpush.msra.mxu0 0.0
    %3076 = vmatpush.msra.mxu0 0.0
    %3077 = vmatpush.msra.mxu0 0.0
    %3078 = vmatpush.msra.mxu0 0.0
    %3079 = vmatpush.msra.mxu0 0.0
    %3080 = vmatpush.msra.mxu0 %v2819
    %3081 = vmatpush.msra.mxu0 %v2817
    %3082 = vmatpush.msra.mxu0 %v2815
    %3083 = vmatpush.msra.mxu0 %v2813
    %3084 = vmatmul.f32.gmra.mxu0 %v2854
    %v3085 = vpop.f32.mrf.mxu0
    %v3086 = vadd.f32 %v3057, %v3085
    %3087 = vmatmul.f32.gmra.mxu0 %v2857
    %v3088 = vpop.f32.mrf.mxu0
    %v3089 = vadd.f32 %v3060, %v3088
    %3090 = vmatmul.f32.gmra.mxu0 %v2860
    %v3091 = vpop.f32.mrf.mxu0
    %v3092 = vadd.f32 %v3063, %v3091
    %3093 = vmatmul.f32.gmra.mxu0 %v2863
    %v3094 = vpop.f32.mrf.mxu0
    %v3095 = vadd.f32 %v3066, %v3094
    %3096 = vdwg.mxu0
    %v3097 = vmax.f32 %v2970, 0.0
    %v3098 = vmax.f32 %v3086, 0.0
    %v3099 = vmax.f32 %v2973, 0.0
    %v3100 = vmax.f32 %v3089, 0.0
    %v3101 = vmax.f32 %v2976, 0.0
    %v3102 = vmax.f32 %v3092, 0.0
    %v3103 = vmax.f32 %v2979, 0.0
    %v3104 = vmax.f32 %v3095, 0.0
    %v3105 = vadd.f32 %v2820, %v3097
    %v3106 = vadd.f32 %v2821, %v3098
    %v3107 = vadd.f32 %v2822, %v3099
    %v3108 = vadd.f32 %v2823, %v3100
    %v3109 = vadd.f32 %v2824, %v3101
    %v3110 = vadd.f32 %v2825, %v3102
    %v3111 = vadd.f32 %v2826, %v3103
    %v3112 = vadd.f32 %v2827, %v3104
    %3113 = vst [vmem:[#allocation3] sm:$0xff] %v3105
    %3114 = vst [vmem:[#allocation3 + $0x8] sm:$0xff] %v3106
    %3115 = vst [vmem:[#allocation3 + $0x10] sm:$0xff] %v3107
    %3116 = vst [vmem:[#allocation3 + $0x18] sm:$0xff] %v3108
    %3117 = vst [vmem:[#allocation3 + $0x20] sm:$0xff] %v3109
    %3118 = vst [vmem:[#allocation3 + $0x28] sm:$0xff] %v3110
    %3119 = vst [vmem:[#allocation3 + $0x30] sm:$0xff] %v3111
    %3120 = vst [vmem:[#allocation3 + $0x38] sm:$0xff] %v3112
    %v3121 = vld [vmem:[#allocation3] sm:$0xff]
    %v3122 = vld [vmem:[#allocation3 + $0x8] sm:$0xff]
    %v3123 = vld [vmem:[#allocation3 + $0x10] sm:$0xff]
    %v3124 = vld [vmem:[#allocation3 + $0x18] sm:$0xff]
    %v3125 = vld [vmem:[#allocation3 + $0x20] sm:$0xff]
    %v3126 = vld [vmem:[#allocation3 + $0x28] sm:$0xff]
    %v3127 = vld [vmem:[#allocation3 + $0x30] sm:$0xff]
    %v3128 = vld [vmem:[#allocation3 + $0x38] sm:$0xff]
    %3129 = vrot.lane.b32.xlu0 %v3121, 96
    %v3130 = vpop.permute.xlu0 %3129
    %3131 = vrot.lane.b32.xlu0 %v3123, 96
    %v3132 = vpop.permute.xlu0 %3131
    %3133 = vrot.lane.b32.xlu0 %v3125, 96
    %v3134 = vpop.permute.xlu0 %3133
    %3135 = vrot.lane.b32.xlu0 %v3127, 96
    %v3136 = vpop.permute.xlu0 %3135
    %3137 = vrot.lane.b32.xlu0 %v3122, 96
    %v3138 = vpop.permute.xlu0 %3137
    %3139 = vrot.lane.b32.xlu0 %v3124, 96
    %v3140 = vpop.permute.xlu0 %3139
    %3141 = vrot.lane.b32.xlu0 %v3126, 96
    %v3142 = vpop.permute.xlu0 %3141
    %3143 = vrot.lane.b32.xlu0 %v3128, 96
    %v3144 = vpop.permute.xlu0 %3143
    %vm3145 = vcmp.lt.s32.totalorder %v68, 96
    %v3146 = vsel %vm3145, %v3130, %v3138
    %v3147 = vsel %vm3145, %v3132, %v3140
    %v3148 = vsel %vm3145, %v3134, %v3142
    %v3149 = vsel %vm3145, %v3136, %v3144
    %v3150 = vsel %vm3145, %v3138, %v3130
    %v3151 = vsel %vm3145, %v3140, %v3132
    %v3152 = vsel %vm3145, %v3142, %v3134
    %v3153 = vsel %vm3145, %v3144, %v3136
    %vm3154 = vcmp.ge.s32.totalorder %v92, 96
    %vm3155 = vcmp.ge.s32.totalorder %v93, 96
    %v3156 = vsel %vm3154, 1, 0
    %v3157 = vsel %vm3155, 1, 0
    %vm3158 = vcmp.eq.s32.totalorder %v3156, 1
    %vm3159 = vcmp.eq.s32.totalorder %v3157, 1
    %v3160 = vsel %vm3158, %v3150, 0.0
    %v3161 = vsel %vm3159, %v3146, 0.0
    %v3162 = vsel %vm3158, %v3151, 0.0
    %v3163 = vsel %vm3159, %v3147, 0.0
    %v3164 = vsel %vm3158, %v3152, 0.0
    %v3165 = vsel %vm3159, %v3148, 0.0
    %v3166 = vsel %vm3158, %v3153, 0.0
    %v3167 = vsel %vm3159, %v3149, 0.0
    %3168 = vst [vmem:[#allocation4] sm:$0xff] %v3160
    %3169 = vst [vmem:[#allocation4 + $0x8] sm:$0xff] %v3161
    %3170 = vst [vmem:[#allocation4 + $0x10] sm:$0xff] %v3162
    %3171 = vst [vmem:[#allocation4 + $0x18] sm:$0xff] %v3163
    %3172 = vst [vmem:[#allocation4 + $0x20] sm:$0xff] %v3164
    %3173 = vst [vmem:[#allocation4 + $0x28] sm:$0xff] %v3165
    %3174 = vst [vmem:[#allocation4 + $0x30] sm:$0xff] %v3166
    %3175 = vst [vmem:[#allocation4 + $0x38] sm:$0xff] %v3167
    %3176 = vrot.lane.b32.xlu0 %v3121, 88
    %v3177 = vpop.permute.xlu0 %3176
    %3178 = vrot.lane.b32.xlu0 %v3123, 88
    %v3179 = vpop.permute.xlu0 %3178
    %3180 = vrot.lane.b32.xlu0 %v3125, 88
    %v3181 = vpop.permute.xlu0 %3180
    %3182 = vrot.lane.b32.xlu0 %v3127, 88
    %v3183 = vpop.permute.xlu0 %3182
    %3184 = vrot.lane.b32.xlu0 %v3122, 88
    %v3185 = vpop.permute.xlu0 %3184
    %3186 = vrot.lane.b32.xlu0 %v3124, 88
    %v3187 = vpop.permute.xlu0 %3186
    %3188 = vrot.lane.b32.xlu0 %v3126, 88
    %v3189 = vpop.permute.xlu0 %3188
    %3190 = vrot.lane.b32.xlu0 %v3128, 88
    %v3191 = vpop.permute.xlu0 %3190
    %vm3192 = vcmp.lt.s32.totalorder %v68, 88
    %v3193 = vsel %vm3192, %v3177, %v3185
    %v3194 = vsel %vm3192, %v3179, %v3187
    %v3195 = vsel %vm3192, %v3181, %v3189
    %v3196 = vsel %vm3192, %v3183, %v3191
    %v3197 = vsel %vm3192, %v3185, %v3177
    %v3198 = vsel %vm3192, %v3187, %v3179
    %v3199 = vsel %vm3192, %v3189, %v3181
    %v3200 = vsel %vm3192, %v3191, %v3183
    %vm3201 = vcmp.ge.s32.totalorder %v92, 88
    %vm3202 = vcmp.ge.s32.totalorder %v93, 88
    %v3203 = vsel %vm3201, 1, 0
    %v3204 = vsel %vm3202, 1, 0
    %vm3205 = vcmp.eq.s32.totalorder %v3203, 1
    %vm3206 = vcmp.eq.s32.totalorder %v3204, 1
    %v3207 = vsel %vm3205, %v3197, 0.0
    %v3208 = vsel %vm3206, %v3193, 0.0
    %v3209 = vsel %vm3205, %v3198, 0.0
    %v3210 = vsel %vm3206, %v3194, 0.0
    %v3211 = vsel %vm3205, %v3199, 0.0
    %v3212 = vsel %vm3206, %v3195, 0.0
    %v3213 = vsel %vm3205, %v3200, 0.0
    %v3214 = vsel %vm3206, %v3196, 0.0
    %3215 = vst [vmem:[#allocation4 + $0x40] sm:$0xff] %v3207
    %3216 = vst [vmem:[#allocation4 + $0x48] sm:$0xff] %v3208
    %3217 = vst [vmem:[#allocation4 + $0x50] sm:$0xff] %v3209
    %3218 = vst [vmem:[#allocation4 + $0x58] sm:$0xff] %v3210
    %3219 = vst [vmem:[#allocation4 + $0x60] sm:$0xff] %v3211
    %3220 = vst [vmem:[#allocation4 + $0x68] sm:$0xff] %v3212
    %3221 = vst [vmem:[#allocation4 + $0x70] sm:$0xff] %v3213
    %3222 = vst [vmem:[#allocation4 + $0x78] sm:$0xff] %v3214
    %3223 = vrot.lane.b32.xlu0 %v3121, 80
    %v3224 = vpop.permute.xlu0 %3223
    %3225 = vrot.lane.b32.xlu0 %v3123, 80
    %v3226 = vpop.permute.xlu0 %3225
    %3227 = vrot.lane.b32.xlu0 %v3125, 80
    %v3228 = vpop.permute.xlu0 %3227
    %3229 = vrot.lane.b32.xlu0 %v3127, 80
    %v3230 = vpop.permute.xlu0 %3229
    %3231 = vrot.lane.b32.xlu0 %v3122, 80
    %v3232 = vpop.permute.xlu0 %3231
    %3233 = vrot.lane.b32.xlu0 %v3124, 80
    %v3234 = vpop.permute.xlu0 %3233
    %3235 = vrot.lane.b32.xlu0 %v3126, 80
    %v3236 = vpop.permute.xlu0 %3235
    %3237 = vrot.lane.b32.xlu0 %v3128, 80
    %v3238 = vpop.permute.xlu0 %3237
    %vm3239 = vcmp.lt.s32.totalorder %v68, 80
    %v3240 = vsel %vm3239, %v3224, %v3232
    %v3241 = vsel %vm3239, %v3226, %v3234
    %v3242 = vsel %vm3239, %v3228, %v3236
    %v3243 = vsel %vm3239, %v3230, %v3238
    %v3244 = vsel %vm3239, %v3232, %v3224
    %v3245 = vsel %vm3239, %v3234, %v3226
    %v3246 = vsel %vm3239, %v3236, %v3228
    %v3247 = vsel %vm3239, %v3238, %v3230
    %vm3248 = vcmp.ge.s32.totalorder %v92, 80
    %vm3249 = vcmp.ge.s32.totalorder %v93, 80
    %v3250 = vsel %vm3248, 1, 0
    %v3251 = vsel %vm3249, 1, 0
    %vm3252 = vcmp.eq.s32.totalorder %v3250, 1
    %vm3253 = vcmp.eq.s32.totalorder %v3251, 1
    %v3254 = vsel %vm3252, %v3244, 0.0
    %v3255 = vsel %vm3253, %v3240, 0.0
    %v3256 = vsel %vm3252, %v3245, 0.0
    %v3257 = vsel %vm3253, %v3241, 0.0
    %v3258 = vsel %vm3252, %v3246, 0.0
    %v3259 = vsel %vm3253, %v3242, 0.0
    %v3260 = vsel %vm3252, %v3247, 0.0
    %v3261 = vsel %vm3253, %v3243, 0.0
    %3262 = vst [vmem:[#allocation4 + $0x80] sm:$0xff] %v3254
    %3263 = vst [vmem:[#allocation4 + $0x88] sm:$0xff] %v3255
    %3264 = vst [vmem:[#allocation4 + $0x90] sm:$0xff] %v3256
    %3265 = vst [vmem:[#allocation4 + $0x98] sm:$0xff] %v3257
    %3266 = vst [vmem:[#allocation4 + $0xa0] sm:$0xff] %v3258
    %3267 = vst [vmem:[#allocation4 + $0xa8] sm:$0xff] %v3259
    %3268 = vst [vmem:[#allocation4 + $0xb0] sm:$0xff] %v3260
    %3269 = vst [vmem:[#allocation4 + $0xb8] sm:$0xff] %v3261
    %3270 = vrot.lane.b32.xlu0 %v3121, 72
    %v3271 = vpop.permute.xlu0 %3270
    %3272 = vrot.lane.b32.xlu0 %v3123, 72
    %v3273 = vpop.permute.xlu0 %3272
    %3274 = vrot.lane.b32.xlu0 %v3125, 72
    %v3275 = vpop.permute.xlu0 %3274
    %3276 = vrot.lane.b32.xlu0 %v3127, 72
    %v3277 = vpop.permute.xlu0 %3276
    %3278 = vrot.lane.b32.xlu0 %v3122, 72
    %v3279 = vpop.permute.xlu0 %3278
    %3280 = vrot.lane.b32.xlu0 %v3124, 72
    %v3281 = vpop.permute.xlu0 %3280
    %3282 = vrot.lane.b32.xlu0 %v3126, 72
    %v3283 = vpop.permute.xlu0 %3282
    %3284 = vrot.lane.b32.xlu0 %v3128, 72
    %v3285 = vpop.permute.xlu0 %3284
    %vm3286 = vcmp.lt.s32.totalorder %v68, 72
    %v3287 = vsel %vm3286, %v3271, %v3279
    %v3288 = vsel %vm3286, %v3273, %v3281
    %v3289 = vsel %vm3286, %v3275, %v3283
    %v3290 = vsel %vm3286, %v3277, %v3285
    %v3291 = vsel %vm3286, %v3279, %v3271
    %v3292 = vsel %vm3286, %v3281, %v3273
    %v3293 = vsel %vm3286, %v3283, %v3275
    %v3294 = vsel %vm3286, %v3285, %v3277
    %vm3295 = vcmp.ge.s32.totalorder %v92, 72
    %vm3296 = vcmp.ge.s32.totalorder %v93, 72
    %v3297 = vsel %vm3295, 1, 0
    %v3298 = vsel %vm3296, 1, 0
    %vm3299 = vcmp.eq.s32.totalorder %v3297, 1
    %vm3300 = vcmp.eq.s32.totalorder %v3298, 1
    %v3301 = vsel %vm3299, %v3291, 0.0
    %v3302 = vsel %vm3300, %v3287, 0.0
    %v3303 = vsel %vm3299, %v3292, 0.0
    %v3304 = vsel %vm3300, %v3288, 0.0
    %v3305 = vsel %vm3299, %v3293, 0.0
    %v3306 = vsel %vm3300, %v3289, 0.0
    %v3307 = vsel %vm3299, %v3294, 0.0
    %v3308 = vsel %vm3300, %v3290, 0.0
    %3309 = vst [vmem:[#allocation4 + $0xc0] sm:$0xff] %v3301
    %3310 = vst [vmem:[#allocation4 + $0xc8] sm:$0xff] %v3302
    %3311 = vst [vmem:[#allocation4 + $0xd0] sm:$0xff] %v3303
    %3312 = vst [vmem:[#allocation4 + $0xd8] sm:$0xff] %v3304
    %3313 = vst [vmem:[#allocation4 + $0xe0] sm:$0xff] %v3305
    %3314 = vst [vmem:[#allocation4 + $0xe8] sm:$0xff] %v3306
    %3315 = vst [vmem:[#allocation4 + $0xf0] sm:$0xff] %v3307
    %3316 = vst [vmem:[#allocation4 + $0xf8] sm:$0xff] %v3308
    %3317 = vrot.lane.b32.xlu0 %v3121, 64
    %v3318 = vpop.permute.xlu0 %3317
    %3319 = vrot.lane.b32.xlu0 %v3123, 64
    %v3320 = vpop.permute.xlu0 %3319
    %3321 = vrot.lane.b32.xlu0 %v3125, 64
    %v3322 = vpop.permute.xlu0 %3321
    %3323 = vrot.lane.b32.xlu0 %v3127, 64
    %v3324 = vpop.permute.xlu0 %3323
    %3325 = vrot.lane.b32.xlu0 %v3122, 64
    %v3326 = vpop.permute.xlu0 %3325
    %3327 = vrot.lane.b32.xlu0 %v3124, 64
    %v3328 = vpop.permute.xlu0 %3327
    %3329 = vrot.lane.b32.xlu0 %v3126, 64
    %v3330 = vpop.permute.xlu0 %3329
    %3331 = vrot.lane.b32.xlu0 %v3128, 64
    %v3332 = vpop.permute.xlu0 %3331
    %vm3333 = vcmp.lt.s32.totalorder %v68, 64
    %v3334 = vsel %vm3333, %v3318, %v3326
    %v3335 = vsel %vm3333, %v3320, %v3328
    %v3336 = vsel %vm3333, %v3322, %v3330
    %v3337 = vsel %vm3333, %v3324, %v3332
    %v3338 = vsel %vm3333, %v3326, %v3318
    %v3339 = vsel %vm3333, %v3328, %v3320
    %v3340 = vsel %vm3333, %v3330, %v3322
    %v3341 = vsel %vm3333, %v3332, %v3324
    %vm3342 = vcmp.ge.s32.totalorder %v92, 64
    %vm3343 = vcmp.ge.s32.totalorder %v93, 64
    %v3344 = vsel %vm3342, 1, 0
    %v3345 = vsel %vm3343, 1, 0
    %vm3346 = vcmp.eq.s32.totalorder %v3344, 1
    %vm3347 = vcmp.eq.s32.totalorder %v3345, 1
    %v3348 = vsel %vm3346, %v3338, 0.0
    %v3349 = vsel %vm3347, %v3334, 0.0
    %v3350 = vsel %vm3346, %v3339, 0.0
    %v3351 = vsel %vm3347, %v3335, 0.0
    %v3352 = vsel %vm3346, %v3340, 0.0
    %v3353 = vsel %vm3347, %v3336, 0.0
    %v3354 = vsel %vm3346, %v3341, 0.0
    %v3355 = vsel %vm3347, %v3337, 0.0
    %3356 = vst [vmem:[#allocation4 + $0x100] sm:$0xff] %v3348
    %3357 = vst [vmem:[#allocation4 + $0x108] sm:$0xff] %v3349
    %3358 = vst [vmem:[#allocation4 + $0x110] sm:$0xff] %v3350
    %3359 = vst [vmem:[#allocation4 + $0x118] sm:$0xff] %v3351
    %3360 = vst [vmem:[#allocation4 + $0x120] sm:$0xff] %v3352
    %3361 = vst [vmem:[#allocation4 + $0x128] sm:$0xff] %v3353
    %3362 = vst [vmem:[#allocation4 + $0x130] sm:$0xff] %v3354
    %3363 = vst [vmem:[#allocation4 + $0x138] sm:$0xff] %v3355
    %3364 = vrot.lane.b32.xlu0 %v3121, 56
    %v3365 = vpop.permute.xlu0 %3364
    %3366 = vrot.lane.b32.xlu0 %v3123, 56
    %v3367 = vpop.permute.xlu0 %3366
    %3368 = vrot.lane.b32.xlu0 %v3125, 56
    %v3369 = vpop.permute.xlu0 %3368
    %3370 = vrot.lane.b32.xlu0 %v3127, 56
    %v3371 = vpop.permute.xlu0 %3370
    %3372 = vrot.lane.b32.xlu0 %v3122, 56
    %v3373 = vpop.permute.xlu0 %3372
    %3374 = vrot.lane.b32.xlu0 %v3124, 56
    %v3375 = vpop.permute.xlu0 %3374
    %3376 = vrot.lane.b32.xlu0 %v3126, 56
    %v3377 = vpop.permute.xlu0 %3376
    %3378 = vrot.lane.b32.xlu0 %v3128, 56
    %v3379 = vpop.permute.xlu0 %3378
    %vm3380 = vcmp.lt.s32.totalorder %v68, 56
    %v3381 = vsel %vm3380, %v3365, %v3373
    %v3382 = vsel %vm3380, %v3367, %v3375
    %v3383 = vsel %vm3380, %v3369, %v3377
    %v3384 = vsel %vm3380, %v3371, %v3379
    %v3385 = vsel %vm3380, %v3373, %v3365
    %v3386 = vsel %vm3380, %v3375, %v3367
    %v3387 = vsel %vm3380, %v3377, %v3369
    %v3388 = vsel %vm3380, %v3379, %v3371
    %vm3389 = vcmp.ge.s32.totalorder %v92, 56
    %vm3390 = vcmp.ge.s32.totalorder %v93, 56
    %v3391 = vsel %vm3389, 1, 0
    %v3392 = vsel %vm3390, 1, 0
    %vm3393 = vcmp.eq.s32.totalorder %v3391, 1
    %vm3394 = vcmp.eq.s32.totalorder %v3392, 1
    %v3395 = vsel %vm3393, %v3385, 0.0
    %v3396 = vsel %vm3394, %v3381, 0.0
    %v3397 = vsel %vm3393, %v3386, 0.0
    %v3398 = vsel %vm3394, %v3382, 0.0
    %v3399 = vsel %vm3393, %v3387, 0.0
    %v3400 = vsel %vm3394, %v3383, 0.0
    %v3401 = vsel %vm3393, %v3388, 0.0
    %v3402 = vsel %vm3394, %v3384, 0.0
    %3403 = vst [vmem:[#allocation4 + $0x140] sm:$0xff] %v3395
    %3404 = vst [vmem:[#allocation4 + $0x148] sm:$0xff] %v3396
    %3405 = vst [vmem:[#allocation4 + $0x150] sm:$0xff] %v3397
    %3406 = vst [vmem:[#allocation4 + $0x158] sm:$0xff] %v3398
    %3407 = vst [vmem:[#allocation4 + $0x160] sm:$0xff] %v3399
    %3408 = vst [vmem:[#allocation4 + $0x168] sm:$0xff] %v3400
    %3409 = vst [vmem:[#allocation4 + $0x170] sm:$0xff] %v3401
    %3410 = vst [vmem:[#allocation4 + $0x178] sm:$0xff] %v3402
    %3411 = vrot.lane.b32.xlu0 %v3121, 48
    %v3412 = vpop.permute.xlu0 %3411
    %3413 = vrot.lane.b32.xlu0 %v3123, 48
    %v3414 = vpop.permute.xlu0 %3413
    %3415 = vrot.lane.b32.xlu0 %v3125, 48
    %v3416 = vpop.permute.xlu0 %3415
    %3417 = vrot.lane.b32.xlu0 %v3127, 48
    %v3418 = vpop.permute.xlu0 %3417
    %3419 = vrot.lane.b32.xlu0 %v3122, 48
    %v3420 = vpop.permute.xlu0 %3419
    %3421 = vrot.lane.b32.xlu0 %v3124, 48
    %v3422 = vpop.permute.xlu0 %3421
    %3423 = vrot.lane.b32.xlu0 %v3126, 48
    %v3424 = vpop.permute.xlu0 %3423
    %3425 = vrot.lane.b32.xlu0 %v3128, 48
    %v3426 = vpop.permute.xlu0 %3425
    %v3427 = vsel %vm2185, %v3412, %v3420
    %v3428 = vsel %vm2185, %v3414, %v3422
    %v3429 = vsel %vm2185, %v3416, %v3424
    %v3430 = vsel %vm2185, %v3418, %v3426
    %v3431 = vsel %vm2185, %v3420, %v3412
    %v3432 = vsel %vm2185, %v3422, %v3414
    %v3433 = vsel %vm2185, %v3424, %v3416
    %v3434 = vsel %vm2185, %v3426, %v3418
    %v3435 = vsel %vm2198, %v3431, 0.0
    %v3436 = vsel %vm2199, %v3427, 0.0
    %v3437 = vsel %vm2198, %v3432, 0.0
    %v3438 = vsel %vm2199, %v3428, 0.0
    %v3439 = vsel %vm2198, %v3433, 0.0
    %v3440 = vsel %vm2199, %v3429, 0.0
    %v3441 = vsel %vm2198, %v3434, 0.0
    %v3442 = vsel %vm2199, %v3430, 0.0
    %3443 = vst [vmem:[#allocation4 + $0x180] sm:$0xff] %v3435
    %3444 = vst [vmem:[#allocation4 + $0x188] sm:$0xff] %v3436
    %3445 = vst [vmem:[#allocation4 + $0x190] sm:$0xff] %v3437
    %3446 = vst [vmem:[#allocation4 + $0x198] sm:$0xff] %v3438
    %3447 = vst [vmem:[#allocation4 + $0x1a0] sm:$0xff] %v3439
    %3448 = vst [vmem:[#allocation4 + $0x1a8] sm:$0xff] %v3440
    %3449 = vst [vmem:[#allocation4 + $0x1b0] sm:$0xff] %v3441
    %3450 = vst [vmem:[#allocation4 + $0x1b8] sm:$0xff] %v3442
    %3451 = vrot.lane.b32.xlu0 %v3121, 40
    %v3452 = vpop.permute.xlu0 %3451
    %3453 = vrot.lane.b32.xlu0 %v3123, 40
    %v3454 = vpop.permute.xlu0 %3453
    %3455 = vrot.lane.b32.xlu0 %v3125, 40
    %v3456 = vpop.permute.xlu0 %3455
    %3457 = vrot.lane.b32.xlu0 %v3127, 40
    %v3458 = vpop.permute.xlu0 %3457
    %3459 = vrot.lane.b32.xlu0 %v3122, 40
    %v3460 = vpop.permute.xlu0 %3459
    %3461 = vrot.lane.b32.xlu0 %v3124, 40
    %v3462 = vpop.permute.xlu0 %3461
    %3463 = vrot.lane.b32.xlu0 %v3126, 40
    %v3464 = vpop.permute.xlu0 %3463
    %3465 = vrot.lane.b32.xlu0 %v3128, 40
    %v3466 = vpop.permute.xlu0 %3465
    %v3467 = vsel %vm2279, %v3452, %v3460
    %v3468 = vsel %vm2279, %v3454, %v3462
    %v3469 = vsel %vm2279, %v3456, %v3464
    %v3470 = vsel %vm2279, %v3458, %v3466
    %v3471 = vsel %vm2279, %v3460, %v3452
    %v3472 = vsel %vm2279, %v3462, %v3454
    %v3473 = vsel %vm2279, %v3464, %v3456
    %v3474 = vsel %vm2279, %v3466, %v3458
    %v3475 = vsel %vm2292, %v3471, 0.0
    %v3476 = vsel %vm2293, %v3467, 0.0
    %v3477 = vsel %vm2292, %v3472, 0.0
    %v3478 = vsel %vm2293, %v3468, 0.0
    %v3479 = vsel %vm2292, %v3473, 0.0
    %v3480 = vsel %vm2293, %v3469, 0.0
    %v3481 = vsel %vm2292, %v3474, 0.0
    %v3482 = vsel %vm2293, %v3470, 0.0
    %3483 = vst [vmem:[#allocation4 + $0x1c0] sm:$0xff] %v3475
    %3484 = vst [vmem:[#allocation4 + $0x1c8] sm:$0xff] %v3476
    %3485 = vst [vmem:[#allocation4 + $0x1d0] sm:$0xff] %v3477
    %3486 = vst [vmem:[#allocation4 + $0x1d8] sm:$0xff] %v3478
    %3487 = vst [vmem:[#allocation4 + $0x1e0] sm:$0xff] %v3479
    %3488 = vst [vmem:[#allocation4 + $0x1e8] sm:$0xff] %v3480
    %3489 = vst [vmem:[#allocation4 + $0x1f0] sm:$0xff] %v3481
    %3490 = vst [vmem:[#allocation4 + $0x1f8] sm:$0xff] %v3482
    %3491 = vrot.lane.b32.xlu0 %v3121, 32
    %v3492 = vpop.permute.xlu0 %3491
    %3493 = vrot.lane.b32.xlu0 %v3123, 32
    %v3494 = vpop.permute.xlu0 %3493
    %3495 = vrot.lane.b32.xlu0 %v3125, 32
    %v3496 = vpop.permute.xlu0 %3495
    %3497 = vrot.lane.b32.xlu0 %v3127, 32
    %v3498 = vpop.permute.xlu0 %3497
    %3499 = vrot.lane.b32.xlu0 %v3122, 32
    %v3500 = vpop.permute.xlu0 %3499
    %3501 = vrot.lane.b32.xlu0 %v3124, 32
    %v3502 = vpop.permute.xlu0 %3501
    %3503 = vrot.lane.b32.xlu0 %v3126, 32
    %v3504 = vpop.permute.xlu0 %3503
    %3505 = vrot.lane.b32.xlu0 %v3128, 32
    %v3506 = vpop.permute.xlu0 %3505
    %v3507 = vsel %vm2373, %v3492, %v3500
    %v3508 = vsel %vm2373, %v3494, %v3502
    %v3509 = vsel %vm2373, %v3496, %v3504
    %v3510 = vsel %vm2373, %v3498, %v3506
    %v3511 = vsel %vm2373, %v3500, %v3492
    %v3512 = vsel %vm2373, %v3502, %v3494
    %v3513 = vsel %vm2373, %v3504, %v3496
    %v3514 = vsel %vm2373, %v3506, %v3498
    %v3515 = vsel %vm2386, %v3511, 0.0
    %v3516 = vsel %vm2387, %v3507, 0.0
    %v3517 = vsel %vm2386, %v3512, 0.0
    %v3518 = vsel %vm2387, %v3508, 0.0
    %v3519 = vsel %vm2386, %v3513, 0.0
    %v3520 = vsel %vm2387, %v3509, 0.0
    %v3521 = vsel %vm2386, %v3514, 0.0
    %v3522 = vsel %vm2387, %v3510, 0.0
    %3523 = vst [vmem:[#allocation4 + $0x200] sm:$0xff] %v3515
    %3524 = vst [vmem:[#allocation4 + $0x208] sm:$0xff] %v3516
    %3525 = vst [vmem:[#allocation4 + $0x210] sm:$0xff] %v3517
    %3526 = vst [vmem:[#allocation4 + $0x218] sm:$0xff] %v3518
    %3527 = vst [vmem:[#allocation4 + $0x220] sm:$0xff] %v3519
    %3528 = vst [vmem:[#allocation4 + $0x228] sm:$0xff] %v3520
    %3529 = vst [vmem:[#allocation4 + $0x230] sm:$0xff] %v3521
    %3530 = vst [vmem:[#allocation4 + $0x238] sm:$0xff] %v3522
    %3531 = vrot.lane.b32.xlu0 %v3121, 24
    %v3532 = vpop.permute.xlu0 %3531
    %3533 = vrot.lane.b32.xlu0 %v3123, 24
    %v3534 = vpop.permute.xlu0 %3533
    %3535 = vrot.lane.b32.xlu0 %v3125, 24
    %v3536 = vpop.permute.xlu0 %3535
    %3537 = vrot.lane.b32.xlu0 %v3127, 24
    %v3538 = vpop.permute.xlu0 %3537
    %3539 = vrot.lane.b32.xlu0 %v3122, 24
    %v3540 = vpop.permute.xlu0 %3539
    %3541 = vrot.lane.b32.xlu0 %v3124, 24
    %v3542 = vpop.permute.xlu0 %3541
    %3543 = vrot.lane.b32.xlu0 %v3126, 24
    %v3544 = vpop.permute.xlu0 %3543
    %3545 = vrot.lane.b32.xlu0 %v3128, 24
    %v3546 = vpop.permute.xlu0 %3545
    %v3547 = vsel %vm1225, %v3532, %v3540
    %v3548 = vsel %vm1225, %v3534, %v3542
    %v3549 = vsel %vm1225, %v3536, %v3544
    %v3550 = vsel %vm1225, %v3538, %v3546
    %v3551 = vsel %vm1225, %v3540, %v3532
    %v3552 = vsel %vm1225, %v3542, %v3534
    %v3553 = vsel %vm1225, %v3544, %v3536
    %v3554 = vsel %vm1225, %v3546, %v3538
    %v3555 = vsel %vm1238, %v3551, 0.0
    %v3556 = vsel %vm1239, %v3547, 0.0
    %v3557 = vsel %vm1238, %v3552, 0.0
    %v3558 = vsel %vm1239, %v3548, 0.0
    %v3559 = vsel %vm1238, %v3553, 0.0
    %v3560 = vsel %vm1239, %v3549, 0.0
    %v3561 = vsel %vm1238, %v3554, 0.0
    %v3562 = vsel %vm1239, %v3550, 0.0
    %3563 = vst [vmem:[#allocation4 + $0x240] sm:$0xff] %v3555
    %3564 = vst [vmem:[#allocation4 + $0x248] sm:$0xff] %v3556
    %3565 = vst [vmem:[#allocation4 + $0x250] sm:$0xff] %v3557
    %3566 = vst [vmem:[#allocation4 + $0x258] sm:$0xff] %v3558
    %3567 = vst [vmem:[#allocation4 + $0x260] sm:$0xff] %v3559
    %3568 = vst [vmem:[#allocation4 + $0x268] sm:$0xff] %v3560
    %3569 = vst [vmem:[#allocation4 + $0x270] sm:$0xff] %v3561
    %3570 = vst [vmem:[#allocation4 + $0x278] sm:$0xff] %v3562
    %3571 = vrot.lane.b32.xlu0 %v3121, 16
    %v3572 = vpop.permute.xlu0 %3571
    %3573 = vrot.lane.b32.xlu0 %v3123, 16
    %v3574 = vpop.permute.xlu0 %3573
    %3575 = vrot.lane.b32.xlu0 %v3125, 16
    %v3576 = vpop.permute.xlu0 %3575
    %3577 = vrot.lane.b32.xlu0 %v3127, 16
    %v3578 = vpop.permute.xlu0 %3577
    %3579 = vrot.lane.b32.xlu0 %v3122, 16
    %v3580 = vpop.permute.xlu0 %3579
    %3581 = vrot.lane.b32.xlu0 %v3124, 16
    %v3582 = vpop.permute.xlu0 %3581
    %3583 = vrot.lane.b32.xlu0 %v3126, 16
    %v3584 = vpop.permute.xlu0 %3583
    %3585 = vrot.lane.b32.xlu0 %v3128, 16
    %v3586 = vpop.permute.xlu0 %3585
    %v3587 = vsel %vm1413, %v3572, %v3580
    %v3588 = vsel %vm1413, %v3574, %v3582
    %v3589 = vsel %vm1413, %v3576, %v3584
    %v3590 = vsel %vm1413, %v3578, %v3586
    %v3591 = vsel %vm1413, %v3580, %v3572
    %v3592 = vsel %vm1413, %v3582, %v3574
    %v3593 = vsel %vm1413, %v3584, %v3576
    %v3594 = vsel %vm1413, %v3586, %v3578
    %v3595 = vsel %vm1426, %v3591, 0.0
    %v3596 = vsel %vm1427, %v3587, 0.0
    %v3597 = vsel %vm1426, %v3592, 0.0
    %v3598 = vsel %vm1427, %v3588, 0.0
    %v3599 = vsel %vm1426, %v3593, 0.0
    %v3600 = vsel %vm1427, %v3589, 0.0
    %v3601 = vsel %vm1426, %v3594, 0.0
    %v3602 = vsel %vm1427, %v3590, 0.0
    %3603 = vst [vmem:[#allocation4 + $0x280] sm:$0xff] %v3595
    %3604 = vst [vmem:[#allocation4 + $0x288] sm:$0xff] %v3596
    %3605 = vst [vmem:[#allocation4 + $0x290] sm:$0xff] %v3597
    %3606 = vst [vmem:[#allocation4 + $0x298] sm:$0xff] %v3598
    %3607 = vst [vmem:[#allocation4 + $0x2a0] sm:$0xff] %v3599
    %3608 = vst [vmem:[#allocation4 + $0x2a8] sm:$0xff] %v3600
    %3609 = vst [vmem:[#allocation4 + $0x2b0] sm:$0xff] %v3601
    %3610 = vst [vmem:[#allocation4 + $0x2b8] sm:$0xff] %v3602
    %3611 = vrot.lane.b32.xlu0 %v3121, 8
    %v3612 = vpop.permute.xlu0 %3611
    %3613 = vrot.lane.b32.xlu0 %v3123, 8
    %v3614 = vpop.permute.xlu0 %3613
    %3615 = vrot.lane.b32.xlu0 %v3125, 8
    %v3616 = vpop.permute.xlu0 %3615
    %3617 = vrot.lane.b32.xlu0 %v3127, 8
    %v3618 = vpop.permute.xlu0 %3617
    %3619 = vrot.lane.b32.xlu0 %v3122, 8
    %v3620 = vpop.permute.xlu0 %3619
    %3621 = vrot.lane.b32.xlu0 %v3124, 8
    %v3622 = vpop.permute.xlu0 %3621
    %3623 = vrot.lane.b32.xlu0 %v3126, 8
    %v3624 = vpop.permute.xlu0 %3623
    %3625 = vrot.lane.b32.xlu0 %v3128, 8
    %v3626 = vpop.permute.xlu0 %3625
    %v3627 = vsel %vm412, %v3612, %v3620
    %v3628 = vsel %vm412, %v3614, %v3622
    %v3629 = vsel %vm412, %v3616, %v3624
    %v3630 = vsel %vm412, %v3618, %v3626
    %v3631 = vsel %vm412, %v3620, %v3612
    %v3632 = vsel %vm412, %v3622, %v3614
    %v3633 = vsel %vm412, %v3624, %v3616
    %v3634 = vsel %vm412, %v3626, %v3618
    %v3635 = vsel %vm425, %v3631, 0.0
    %v3636 = vsel %vm426, %v3627, 0.0
    %v3637 = vsel %vm425, %v3632, 0.0
    %v3638 = vsel %vm426, %v3628, 0.0
    %v3639 = vsel %vm425, %v3633, 0.0
    %v3640 = vsel %vm426, %v3629, 0.0
    %v3641 = vsel %vm425, %v3634, 0.0
    %v3642 = vsel %vm426, %v3630, 0.0
    %3643 = vst [vmem:[#allocation4 + $0x2c0] sm:$0xff] %v3635
    %3644 = vst [vmem:[#allocation4 + $0x2c8] sm:$0xff] %v3636
    %3645 = vst [vmem:[#allocation4 + $0x2d0] sm:$0xff] %v3637
    %3646 = vst [vmem:[#allocation4 + $0x2d8] sm:$0xff] %v3638
    %3647 = vst [vmem:[#allocation4 + $0x2e0] sm:$0xff] %v3639
    %3648 = vst [vmem:[#allocation4 + $0x2e8] sm:$0xff] %v3640
    %3649 = vst [vmem:[#allocation4 + $0x2f0] sm:$0xff] %v3641
    %3650 = vst [vmem:[#allocation4 + $0x2f8] sm:$0xff] %v3642
    %3651 = vst [vmem:[#allocation4 + $0x300] sm:$0xff] %v3121
    %3652 = vst [vmem:[#allocation4 + $0x308] sm:$0xff] %v3122
    %3653 = vst [vmem:[#allocation4 + $0x310] sm:$0xff] %v3123
    %3654 = vst [vmem:[#allocation4 + $0x318] sm:$0xff] %v3124
    %3655 = vst [vmem:[#allocation4 + $0x320] sm:$0xff] %v3125
    %3656 = vst [vmem:[#allocation4 + $0x328] sm:$0xff] %v3126
    %3657 = vst [vmem:[#allocation4 + $0x330] sm:$0xff] %v3127
    %3658 = vst [vmem:[#allocation4 + $0x338] sm:$0xff] %v3128
    %s3659 = scalar_lea.vmem [#allocation9], 384
    %v3660 = vld [vmem:[%s3659] sm:$0xff]
    %v3661 = vld [vmem:[%s3659 + $0x8] sm:$0xff]
    %v3662 = vld [vmem:[%s3659 + $0x10] sm:$0xff]
    %v3663 = vld [vmem:[%s3659 + $0x18] sm:$0xff]
    %v3664 = vld [vmem:[%s3659 + $0x20] sm:$0xff]
    %v3665 = vld [vmem:[%s3659 + $0x28] sm:$0xff]
    %v3666 = vld [vmem:[%s3659 + $0x30] sm:$0xff]
    %v3667 = vld [vmem:[%s3659 + $0x38] sm:$0xff]
    %v3668 = vld [vmem:[%s3659 + $0x40] sm:$0xff]
    %v3669 = vld [vmem:[%s3659 + $0x48] sm:$0xff]
    %v3670 = vld [vmem:[%s3659 + $0x50] sm:$0xff]
    %v3671 = vld [vmem:[%s3659 + $0x58] sm:$0xff]
    %v3672 = vld [vmem:[%s3659 + $0x60] sm:$0xff]
    %v3673 = vld [vmem:[%s3659 + $0x68] sm:$0xff]
    %v3674 = vld [vmem:[%s3659 + $0x70] sm:$0xff]
    %v3675 = vld [vmem:[%s3659 + $0x78] sm:$0xff]
    %v3676 = vld [vmem:[#allocation4] sm:$0xff]
    %v3677 = vld [vmem:[#allocation4 + $0x8] sm:$0xff]
    %v3678 = vld [vmem:[#allocation4 + $0x10] sm:$0xff]
    %v3679 = vld [vmem:[#allocation4 + $0x18] sm:$0xff]
    %v3680 = vld [vmem:[#allocation4 + $0x20] sm:$0xff]
    %v3681 = vld [vmem:[#allocation4 + $0x28] sm:$0xff]
    %v3682 = vld [vmem:[#allocation4 + $0x30] sm:$0xff]
    %v3683 = vld [vmem:[#allocation4 + $0x38] sm:$0xff]
    %v3684 = vld [vmem:[#allocation4 + $0x40] sm:$0xff]
    %v3685 = vld [vmem:[#allocation4 + $0x48] sm:$0xff]
    %v3686 = vld [vmem:[#allocation4 + $0x50] sm:$0xff]
    %v3687 = vld [vmem:[#allocation4 + $0x58] sm:$0xff]
    %v3688 = vld [vmem:[#allocation4 + $0x60] sm:$0xff]
    %v3689 = vld [vmem:[#allocation4 + $0x68] sm:$0xff]
    %v3690 = vld [vmem:[#allocation4 + $0x70] sm:$0xff]
    %v3691 = vld [vmem:[#allocation4 + $0x78] sm:$0xff]
    %v3692 = vld [vmem:[#allocation4 + $0x80] sm:$0xff]
    %v3693 = vld [vmem:[#allocation4 + $0x88] sm:$0xff]
    %v3694 = vld [vmem:[#allocation4 + $0x90] sm:$0xff]
    %v3695 = vld [vmem:[#allocation4 + $0x98] sm:$0xff]
    %v3696 = vld [vmem:[#allocation4 + $0xa0] sm:$0xff]
    %v3697 = vld [vmem:[#allocation4 + $0xa8] sm:$0xff]
    %v3698 = vld [vmem:[#allocation4 + $0xb0] sm:$0xff]
    %v3699 = vld [vmem:[#allocation4 + $0xb8] sm:$0xff]
    %v3700 = vld [vmem:[#allocation4 + $0xc0] sm:$0xff]
    %v3701 = vld [vmem:[#allocation4 + $0xc8] sm:$0xff]
    %v3702 = vld [vmem:[#allocation4 + $0xd0] sm:$0xff]
    %v3703 = vld [vmem:[#allocation4 + $0xd8] sm:$0xff]
    %v3704 = vld [vmem:[#allocation4 + $0xe0] sm:$0xff]
    %v3705 = vld [vmem:[#allocation4 + $0xe8] sm:$0xff]
    %v3706 = vld [vmem:[#allocation4 + $0xf0] sm:$0xff]
    %v3707 = vld [vmem:[#allocation4 + $0xf8] sm:$0xff]
    %v3708 = vld [vmem:[#allocation4 + $0x100] sm:$0xff]
    %v3709 = vld [vmem:[#allocation4 + $0x108] sm:$0xff]
    %v3710 = vld [vmem:[#allocation4 + $0x110] sm:$0xff]
    %v3711 = vld [vmem:[#allocation4 + $0x118] sm:$0xff]
    %v3712 = vld [vmem:[#allocation4 + $0x120] sm:$0xff]
    %v3713 = vld [vmem:[#allocation4 + $0x128] sm:$0xff]
    %v3714 = vld [vmem:[#allocation4 + $0x130] sm:$0xff]
    %v3715 = vld [vmem:[#allocation4 + $0x138] sm:$0xff]
    %v3716 = vld [vmem:[#allocation4 + $0x140] sm:$0xff]
    %v3717 = vld [vmem:[#allocation4 + $0x148] sm:$0xff]
    %v3718 = vld [vmem:[#allocation4 + $0x150] sm:$0xff]
    %v3719 = vld [vmem:[#allocation4 + $0x158] sm:$0xff]
    %v3720 = vld [vmem:[#allocation4 + $0x160] sm:$0xff]
    %v3721 = vld [vmem:[#allocation4 + $0x168] sm:$0xff]
    %v3722 = vld [vmem:[#allocation4 + $0x170] sm:$0xff]
    %v3723 = vld [vmem:[#allocation4 + $0x178] sm:$0xff]
    %v3724 = vld [vmem:[#allocation4 + $0x180] sm:$0xff]
    %v3725 = vld [vmem:[#allocation4 + $0x188] sm:$0xff]
    %v3726 = vld [vmem:[#allocation4 + $0x190] sm:$0xff]
    %v3727 = vld [vmem:[#allocation4 + $0x198] sm:$0xff]
    %v3728 = vld [vmem:[#allocation4 + $0x1a0] sm:$0xff]
    %v3729 = vld [vmem:[#allocation4 + $0x1a8] sm:$0xff]
    %v3730 = vld [vmem:[#allocation4 + $0x1b0] sm:$0xff]
    %v3731 = vld [vmem:[#allocation4 + $0x1b8] sm:$0xff]
    %v3732 = vld [vmem:[#allocation4 + $0x1c0] sm:$0xff]
    %v3733 = vld [vmem:[#allocation4 + $0x1c8] sm:$0xff]
    %v3734 = vld [vmem:[#allocation4 + $0x1d0] sm:$0xff]
    %v3735 = vld [vmem:[#allocation4 + $0x1d8] sm:$0xff]
    %v3736 = vld [vmem:[#allocation4 + $0x1e0] sm:$0xff]
    %v3737 = vld [vmem:[#allocation4 + $0x1e8] sm:$0xff]
    %v3738 = vld [vmem:[#allocation4 + $0x1f0] sm:$0xff]
    %v3739 = vld [vmem:[#allocation4 + $0x1f8] sm:$0xff]
    %v3740 = vld [vmem:[#allocation4 + $0x200] sm:$0xff]
    %v3741 = vld [vmem:[#allocation4 + $0x208] sm:$0xff]
    %v3742 = vld [vmem:[#allocation4 + $0x210] sm:$0xff]
    %v3743 = vld [vmem:[#allocation4 + $0x218] sm:$0xff]
    %v3744 = vld [vmem:[#allocation4 + $0x220] sm:$0xff]
    %v3745 = vld [vmem:[#allocation4 + $0x228] sm:$0xff]
    %v3746 = vld [vmem:[#allocation4 + $0x230] sm:$0xff]
    %v3747 = vld [vmem:[#allocation4 + $0x238] sm:$0xff]
    %v3748 = vld [vmem:[#allocation4 + $0x240] sm:$0xff]
    %v3749 = vld [vmem:[#allocation4 + $0x248] sm:$0xff]
    %v3750 = vld [vmem:[#allocation4 + $0x250] sm:$0xff]
    %v3751 = vld [vmem:[#allocation4 + $0x258] sm:$0xff]
    %v3752 = vld [vmem:[#allocation4 + $0x260] sm:$0xff]
    %v3753 = vld [vmem:[#allocation4 + $0x268] sm:$0xff]
    %v3754 = vld [vmem:[#allocation4 + $0x270] sm:$0xff]
    %v3755 = vld [vmem:[#allocation4 + $0x278] sm:$0xff]
    %v3756 = vld [vmem:[#allocation4 + $0x280] sm:$0xff]
    %v3757 = vld [vmem:[#allocation4 + $0x288] sm:$0xff]
    %v3758 = vld [vmem:[#allocation4 + $0x290] sm:$0xff]
    %v3759 = vld [vmem:[#allocation4 + $0x298] sm:$0xff]
    %v3760 = vld [vmem:[#allocation4 + $0x2a0] sm:$0xff]
    %v3761 = vld [vmem:[#allocation4 + $0x2a8] sm:$0xff]
    %v3762 = vld [vmem:[#allocation4 + $0x2b0] sm:$0xff]
    %v3763 = vld [vmem:[#allocation4 + $0x2b8] sm:$0xff]
    %v3764 = vld [vmem:[#allocation4 + $0x2c0] sm:$0xff]
    %v3765 = vld [vmem:[#allocation4 + $0x2c8] sm:$0xff]
    %v3766 = vld [vmem:[#allocation4 + $0x2d0] sm:$0xff]
    %v3767 = vld [vmem:[#allocation4 + $0x2d8] sm:$0xff]
    %v3768 = vld [vmem:[#allocation4 + $0x2e0] sm:$0xff]
    %v3769 = vld [vmem:[#allocation4 + $0x2e8] sm:$0xff]
    %v3770 = vld [vmem:[#allocation4 + $0x2f0] sm:$0xff]
    %v3771 = vld [vmem:[#allocation4 + $0x2f8] sm:$0xff]
    %v3772 = vld [vmem:[#allocation4 + $0x300] sm:$0xff]
    %v3773 = vld [vmem:[#allocation4 + $0x308] sm:$0xff]
    %v3774 = vld [vmem:[#allocation4 + $0x310] sm:$0xff]
    %v3775 = vld [vmem:[#allocation4 + $0x318] sm:$0xff]
    %v3776 = vld [vmem:[#allocation4 + $0x320] sm:$0xff]
    %v3777 = vld [vmem:[#allocation4 + $0x328] sm:$0xff]
    %v3778 = vld [vmem:[#allocation4 + $0x330] sm:$0xff]
    %v3779 = vld [vmem:[#allocation4 + $0x338] sm:$0xff]
    %v3780 = vld [vmem:[#allocation3] sm:$0xff]
    %v3781 = vld [vmem:[#allocation3 + $0x8] sm:$0xff]
    %v3782 = vld [vmem:[#allocation3 + $0x10] sm:$0xff]
    %v3783 = vld [vmem:[#allocation3 + $0x18] sm:$0xff]
    %v3784 = vld [vmem:[#allocation3 + $0x20] sm:$0xff]
    %v3785 = vld [vmem:[#allocation3 + $0x28] sm:$0xff]
    %v3786 = vld [vmem:[#allocation3 + $0x30] sm:$0xff]
    %v3787 = vld [vmem:[#allocation3 + $0x38] sm:$0xff]
    %s3788 = scalar_lea.vmem %s6, 96
    %v3789 = vld [vmem:[%s3788] sm:$0xff]
    %v3790 = vld [vmem:[%s3788 + $0x8] sm:$0xff]
    %v3791 = vld [vmem:[%s3788 + $0x10] sm:$0xff]
    %v3792 = vld [vmem:[%s3788 + $0x18] sm:$0xff]
    %3794 = vset.pattern.permute.xlu0 0
    %3795 = vperm.xlu0 %3794, %v3789
    %v3796 = vpop.permute.xlu0 %3795
    %3799 = vset.pattern.permute.xlu0 0
    %3800 = vperm.xlu0 %3799, %v3790
    %v3801 = vpop.permute.xlu0 %3800
    %3804 = vset.pattern.permute.xlu0 0
    %3805 = vperm.xlu0 %3804, %v3791
    %v3806 = vpop.permute.xlu0 %3805
    %3809 = vset.pattern.permute.xlu0 0
    %3810 = vperm.xlu0 %3809, %v3792
    %v3811 = vpop.permute.xlu0 %3810
    %v3814 = vsel %vm932, %v3663, 0
    %v3817 = vsel %vm932, %v3667, 0
    %v3820 = vsel %vm932, %v3671, 0
    %v3823 = vsel %vm932, %v3675, 0
    %3825 = vmatpush.msra.mxu0 %v3706
    %3826 = vmatpush.msra.mxu0 %v3704
    %3827 = vmatpush.msra.mxu0 %v3702
    %3828 = vmatpush.msra.mxu0 %v3700
    %3829 = vmatpush.msra.mxu0 %v3698
    %3830 = vmatpush.msra.mxu0 %v3696
    %3831 = vmatpush.msra.mxu0 %v3694
    %3832 = vmatpush.msra.mxu0 %v3692
    %3833 = vmatpush.msra.mxu0 %v3690
    %3834 = vmatpush.msra.mxu0 %v3688
    %3835 = vmatpush.msra.mxu0 %v3686
    %3836 = vmatpush.msra.mxu0 %v3684
    %3837 = vmatpush.msra.mxu0 %v3682
    %3838 = vmatpush.msra.mxu0 %v3680
    %3839 = vmatpush.msra.mxu0 %v3678
    %3840 = vmatpush.msra.mxu0 %v3676
    %3841 = vmatmul.f32.gmra.mxu0 %v3660
    %v3842 = vpop.f32.mrf.mxu0
    %v3843 = vadd.f32 %v3796, %v3842
    %3844 = vmatmul.f32.gmra.mxu0 %v3664
    %v3845 = vpop.f32.mrf.mxu0
    %v3846 = vadd.f32 %v3801, %v3845
    %3847 = vmatmul.f32.gmra.mxu0 %v3668
    %v3848 = vpop.f32.mrf.mxu0
    %v3849 = vadd.f32 %v3806, %v3848
    %3850 = vmatmul.f32.gmra.mxu0 %v3672
    %v3851 = vpop.f32.mrf.mxu0
    %v3852 = vadd.f32 %v3811, %v3851
    %3853 = vdwg.mxu0
    %3854 = vmatpush.msra.mxu0 %v3738
    %3855 = vmatpush.msra.mxu0 %v3736
    %3856 = vmatpush.msra.mxu0 %v3734
    %3857 = vmatpush.msra.mxu0 %v3732
    %3858 = vmatpush.msra.mxu0 %v3730
    %3859 = vmatpush.msra.mxu0 %v3728
    %3860 = vmatpush.msra.mxu0 %v3726
    %3861 = vmatpush.msra.mxu0 %v3724
    %3862 = vmatpush.msra.mxu0 %v3722
    %3863 = vmatpush.msra.mxu0 %v3720
    %3864 = vmatpush.msra.mxu0 %v3718
    %3865 = vmatpush.msra.mxu0 %v3716
    %3866 = vmatpush.msra.mxu0 %v3714
    %3867 = vmatpush.msra.mxu0 %v3712
    %3868 = vmatpush.msra.mxu0 %v3710
    %3869 = vmatpush.msra.mxu0 %v3708
    %3870 = vmatmul.f32.gmra.mxu0 %v3661
    %v3871 = vpop.f32.mrf.mxu0
    %v3872 = vadd.f32 %v3843, %v3871
    %3873 = vmatmul.f32.gmra.mxu0 %v3665
    %v3874 = vpop.f32.mrf.mxu0
    %v3875 = vadd.f32 %v3846, %v3874
    %3876 = vmatmul.f32.gmra.mxu0 %v3669
    %v3877 = vpop.f32.mrf.mxu0
    %v3878 = vadd.f32 %v3849, %v3877
    %3879 = vmatmul.f32.gmra.mxu0 %v3673
    %v3880 = vpop.f32.mrf.mxu0
    %v3881 = vadd.f32 %v3852, %v3880
    %3882 = vdwg.mxu0
    %3883 = vmatpush.msra.mxu0 %v3770
    %3884 = vmatpush.msra.mxu0 %v3768
    %3885 = vmatpush.msra.mxu0 %v3766
    %3886 = vmatpush.msra.mxu0 %v3764
    %3887 = vmatpush.msra.mxu0 %v3762
    %3888 = vmatpush.msra.mxu0 %v3760
    %3889 = vmatpush.msra.mxu0 %v3758
    %3890 = vmatpush.msra.mxu0 %v3756
    %3891 = vmatpush.msra.mxu0 %v3754
    %3892 = vmatpush.msra.mxu0 %v3752
    %3893 = vmatpush.msra.mxu0 %v3750
    %3894 = vmatpush.msra.mxu0 %v3748
    %3895 = vmatpush.msra.mxu0 %v3746
    %3896 = vmatpush.msra.mxu0 %v3744
    %3897 = vmatpush.msra.mxu0 %v3742
    %3898 = vmatpush.msra.mxu0 %v3740
    %3899 = vmatmul.f32.gmra.mxu0 %v3662
    %v3900 = vpop.f32.mrf.mxu0
    %v3901 = vadd.f32 %v3872, %v3900
    %3902 = vmatmul.f32.gmra.mxu0 %v3666
    %v3903 = vpop.f32.mrf.mxu0
    %v3904 = vadd.f32 %v3875, %v3903
    %3905 = vmatmul.f32.gmra.mxu0 %v3670
    %v3906 = vpop.f32.mrf.mxu0
    %v3907 = vadd.f32 %v3878, %v3906
    %3908 = vmatmul.f32.gmra.mxu0 %v3674
    %v3909 = vpop.f32.mrf.mxu0
    %v3910 = vadd.f32 %v3881, %v3909
    %3911 = vdwg.mxu0
    %3912 = vmatpush.msra.mxu0 0.0
    %3913 = vmatpush.msra.mxu0 0.0
    %3914 = vmatpush.msra.mxu0 0.0
    %3915 = vmatpush.msra.mxu0 0.0
    %3916 = vmatpush.msra.mxu0 0.0
    %3917 = vmatpush.msra.mxu0 0.0
    %3918 = vmatpush.msra.mxu0 0.0
    %3919 = vmatpush.msra.mxu0 0.0
    %3920 = vmatpush.msra.mxu0 0.0
    %3921 = vmatpush.msra.mxu0 0.0
    %3922 = vmatpush.msra.mxu0 0.0
    %3923 = vmatpush.msra.mxu0 0.0
    %3924 = vmatpush.msra.mxu0 %v3778
    %3925 = vmatpush.msra.mxu0 %v3776
    %3926 = vmatpush.msra.mxu0 %v3774
    %3927 = vmatpush.msra.mxu0 %v3772
    %3928 = vmatmul.f32.gmra.mxu0 %v3814
    %v3929 = vpop.f32.mrf.mxu0
    %v3930 = vadd.f32 %v3901, %v3929
    %3931 = vmatmul.f32.gmra.mxu0 %v3817
    %v3932 = vpop.f32.mrf.mxu0
    %v3933 = vadd.f32 %v3904, %v3932
    %3934 = vmatmul.f32.gmra.mxu0 %v3820
    %v3935 = vpop.f32.mrf.mxu0
    %v3936 = vadd.f32 %v3907, %v3935
    %3937 = vmatmul.f32.gmra.mxu0 %v3823
    %v3938 = vpop.f32.mrf.mxu0
    %v3939 = vadd.f32 %v3910, %v3938
    %3940 = vdwg.mxu0
    %3941 = vmatpush.msra.mxu0 %v3707
    %3942 = vmatpush.msra.mxu0 %v3705
    %3943 = vmatpush.msra.mxu0 %v3703
    %3944 = vmatpush.msra.mxu0 %v3701
    %3945 = vmatpush.msra.mxu0 %v3699
    %3946 = vmatpush.msra.mxu0 %v3697
    %3947 = vmatpush.msra.mxu0 %v3695
    %3948 = vmatpush.msra.mxu0 %v3693
    %3949 = vmatpush.msra.mxu0 %v3691
    %3950 = vmatpush.msra.mxu0 %v3689
    %3951 = vmatpush.msra.mxu0 %v3687
    %3952 = vmatpush.msra.mxu0 %v3685
    %3953 = vmatpush.msra.mxu0 %v3683
    %3954 = vmatpush.msra.mxu0 %v3681
    %3955 = vmatpush.msra.mxu0 %v3679
    %3956 = vmatpush.msra.mxu0 %v3677
    %3957 = vmatmul.f32.gmra.mxu0 %v3660
    %v3958 = vpop.f32.mrf.mxu0
    %v3959 = vadd.f32 %v3796, %v3958
    %3960 = vmatmul.f32.gmra.mxu0 %v3664
    %v3961 = vpop.f32.mrf.mxu0
    %v3962 = vadd.f32 %v3801, %v3961
    %3963 = vmatmul.f32.gmra.mxu0 %v3668
    %v3964 = vpop.f32.mrf.mxu0
    %v3965 = vadd.f32 %v3806, %v3964
    %3966 = vmatmul.f32.gmra.mxu0 %v3672
    %v3967 = vpop.f32.mrf.mxu0
    %v3968 = vadd.f32 %v3811, %v3967
    %3969 = vdwg.mxu0
    %3970 = vmatpush.msra.mxu0 %v3739
    %3971 = vmatpush.msra.mxu0 %v3737
    %3972 = vmatpush.msra.mxu0 %v3735
    %3973 = vmatpush.msra.mxu0 %v3733
    %3974 = vmatpush.msra.mxu0 %v3731
    %3975 = vmatpush.msra.mxu0 %v3729
    %3976 = vmatpush.msra.mxu0 %v3727
    %3977 = vmatpush.msra.mxu0 %v3725
    %3978 = vmatpush.msra.mxu0 %v3723
    %3979 = vmatpush.msra.mxu0 %v3721
    %3980 = vmatpush.msra.mxu0 %v3719
    %3981 = vmatpush.msra.mxu0 %v3717
    %3982 = vmatpush.msra.mxu0 %v3715
    %3983 = vmatpush.msra.mxu0 %v3713
    %3984 = vmatpush.msra.mxu0 %v3711
    %3985 = vmatpush.msra.mxu0 %v3709
    %3986 = vmatmul.f32.gmra.mxu0 %v3661
    %v3987 = vpop.f32.mrf.mxu0
    %v3988 = vadd.f32 %v3959, %v3987
    %3989 = vmatmul.f32.gmra.mxu0 %v3665
    %v3990 = vpop.f32.mrf.mxu0
    %v3991 = vadd.f32 %v3962, %v3990
    %3992 = vmatmul.f32.gmra.mxu0 %v3669
    %v3993 = vpop.f32.mrf.mxu0
    %v3994 = vadd.f32 %v3965, %v3993
    %3995 = vmatmul.f32.gmra.mxu0 %v3673
    %v3996 = vpop.f32.mrf.mxu0
    %v3997 = vadd.f32 %v3968, %v3996
    %3998 = vdwg.mxu0
    %3999 = vmatpush.msra.mxu0 %v3771
    %4000 = vmatpush.msra.mxu0 %v3769
    %4001 = vmatpush.msra.mxu0 %v3767
    %4002 = vmatpush.msra.mxu0 %v3765
    %4003 = vmatpush.msra.mxu0 %v3763
    %4004 = vmatpush.msra.mxu0 %v3761
    %4005 = vmatpush.msra.mxu0 %v3759
    %4006 = vmatpush.msra.mxu0 %v3757
    %4007 = vmatpush.msra.mxu0 %v3755
    %4008 = vmatpush.msra.mxu0 %v3753
    %4009 = vmatpush.msra.mxu0 %v3751
    %4010 = vmatpush.msra.mxu0 %v3749
    %4011 = vmatpush.msra.mxu0 %v3747
    %4012 = vmatpush.msra.mxu0 %v3745
    %4013 = vmatpush.msra.mxu0 %v3743
    %4014 = vmatpush.msra.mxu0 %v3741
    %4015 = vmatmul.f32.gmra.mxu0 %v3662
    %v4016 = vpop.f32.mrf.mxu0
    %v4017 = vadd.f32 %v3988, %v4016
    %4018 = vmatmul.f32.gmra.mxu0 %v3666
    %v4019 = vpop.f32.mrf.mxu0
    %v4020 = vadd.f32 %v3991, %v4019
    %4021 = vmatmul.f32.gmra.mxu0 %v3670
    %v4022 = vpop.f32.mrf.mxu0
    %v4023 = vadd.f32 %v3994, %v4022
    %4024 = vmatmul.f32.gmra.mxu0 %v3674
    %v4025 = vpop.f32.mrf.mxu0
    %v4026 = vadd.f32 %v3997, %v4025
    %4027 = vdwg.mxu0
    %4028 = vmatpush.msra.mxu0 0.0
    %4029 = vmatpush.msra.mxu0 0.0
    %4030 = vmatpush.msra.mxu0 0.0
    %4031 = vmatpush.msra.mxu0 0.0
    %4032 = vmatpush.msra.mxu0 0.0
    %4033 = vmatpush.msra.mxu0 0.0
    %4034 = vmatpush.msra.mxu0 0.0
    %4035 = vmatpush.msra.mxu0 0.0
    %4036 = vmatpush.msra.mxu0 0.0
    %4037 = vmatpush.msra.mxu0 0.0
    %4038 = vmatpush.msra.mxu0 0.0
    %4039 = vmatpush.msra.mxu0 0.0
    %4040 = vmatpush.msra.mxu0 %v3779
    %4041 = vmatpush.msra.mxu0 %v3777
    %4042 = vmatpush.msra.mxu0 %v3775
    %4043 = vmatpush.msra.mxu0 %v3773
    %4044 = vmatmul.f32.gmra.mxu0 %v3814
    %v4045 = vpop.f32.mrf.mxu0
    %v4046 = vadd.f32 %v4017, %v4045
    %4047 = vmatmul.f32.gmra.mxu0 %v3817
    %v4048 = vpop.f32.mrf.mxu0
    %v4049 = vadd.f32 %v4020, %v4048
    %4050 = vmatmul.f32.gmra.mxu0 %v3820
    %v4051 = vpop.f32.mrf.mxu0
    %v4052 = vadd.f32 %v4023, %v4051
    %4053 = vmatmul.f32.gmra.mxu0 %v3823
    %v4054 = vpop.f32.mrf.mxu0
    %v4055 = vadd.f32 %v4026, %v4054
    %4056 = vdwg.mxu0
    %v4057 = vmax.f32 %v3930, 0.0
    %v4058 = vmax.f32 %v4046, 0.0
    %v4059 = vmax.f32 %v3933, 0.0
    %v4060 = vmax.f32 %v4049, 0.0
    %v4061 = vmax.f32 %v3936, 0.0
    %v4062 = vmax.f32 %v4052, 0.0
    %v4063 = vmax.f32 %v3939, 0.0
    %v4064 = vmax.f32 %v4055, 0.0
    %v4065 = vadd.f32 %v3780, %v4057
    %v4066 = vadd.f32 %v3781, %v4058
    %v4067 = vadd.f32 %v3782, %v4059
    %v4068 = vadd.f32 %v3783, %v4060
    %v4069 = vadd.f32 %v3784, %v4061
    %v4070 = vadd.f32 %v3785, %v4062
    %v4071 = vadd.f32 %v3786, %v4063
    %v4072 = vadd.f32 %v3787, %v4064
    %4073 = vst [vmem:[#allocation3] sm:$0xff] %v4065
    %4074 = vst [vmem:[#allocation3 + $0x8] sm:$0xff] %v4066
    %4075 = vst [vmem:[#allocation3 + $0x10] sm:$0xff] %v4067
    %4076 = vst [vmem:[#allocation3 + $0x18] sm:$0xff] %v4068
    %4077 = vst [vmem:[#allocation3 + $0x20] sm:$0xff] %v4069
    %4078 = vst [vmem:[#allocation3 + $0x28] sm:$0xff] %v4070
    %4079 = vst [vmem:[#allocation3 + $0x30] sm:$0xff] %v4071
    %4080 = vst [vmem:[#allocation3 + $0x38] sm:$0xff] %v4072
    %v4081 = vld [vmem:[%s7] sm:$0xff]
    %v4082 = vld [vmem:[#allocation3] sm:$0xff]
    %v4083 = vld [vmem:[#allocation3 + $0x8] sm:$0xff]
    %v4084 = vld [vmem:[#allocation3 + $0x10] sm:$0xff]
    %v4085 = vld [vmem:[#allocation3 + $0x18] sm:$0xff]
    %v4086 = vld [vmem:[#allocation3 + $0x20] sm:$0xff]
    %v4087 = vld [vmem:[#allocation3 + $0x28] sm:$0xff]
    %v4088 = vld [vmem:[#allocation3 + $0x30] sm:$0xff]
    %v4089 = vld [vmem:[#allocation3 + $0x38] sm:$0xff]
    %v4090 = vld [vmem:[%s8] sm:$0xff]
    %4092 = vset.pattern.permute.xlu0 0
    %4093 = vperm.xlu0 %4092, %v4090
    %v4094 = vpop.permute.xlu0 %4093
    %v4097 = vsel %vm932, %v4081, 0
    %4099 = vmatpush.msra.mxu0 0.0
    %4100 = vmatpush.msra.mxu0 0.0
    %4101 = vmatpush.msra.mxu0 0.0
    %4102 = vmatpush.msra.mxu0 0.0
    %4103 = vmatpush.msra.mxu0 0.0
    %4104 = vmatpush.msra.mxu0 0.0
    %4105 = vmatpush.msra.mxu0 0.0
    %4106 = vmatpush.msra.mxu0 0.0
    %4107 = vmatpush.msra.mxu0 0.0
    %4108 = vmatpush.msra.mxu0 0.0
    %4109 = vmatpush.msra.mxu0 0.0
    %4110 = vmatpush.msra.mxu0 0.0
    %4111 = vmatpush.msra.mxu0 %v4088
    %4112 = vmatpush.msra.mxu0 %v4086
    %4113 = vmatpush.msra.mxu0 %v4084
    %4114 = vmatpush.msra.mxu0 %v4082
    %4115 = vmatmul.f32.gmra.mxu0 %v4097
    %v4116 = vpop.f32.mrf.mxu0
    %v4117 = vadd.f32 %v4094, %v4116
    %4118 = vdwg.mxu0
    %4119 = vmatpush.msra.mxu0 0.0
    %4120 = vmatpush.msra.mxu0 0.0
    %4121 = vmatpush.msra.mxu0 0.0
    %4122 = vmatpush.msra.mxu0 0.0
    %4123 = vmatpush.msra.mxu0 0.0
    %4124 = vmatpush.msra.mxu0 0.0
    %4125 = vmatpush.msra.mxu0 0.0
    %4126 = vmatpush.msra.mxu0 0.0
    %4127 = vmatpush.msra.mxu0 0.0
    %4128 = vmatpush.msra.mxu0 0.0
    %4129 = vmatpush.msra.mxu0 0.0
    %4130 = vmatpush.msra.mxu0 0.0
    %4131 = vmatpush.msra.mxu0 %v4089
    %4132 = vmatpush.msra.mxu0 %v4087
    %4133 = vmatpush.msra.mxu0 %v4085
    %4134 = vmatpush.msra.mxu0 %v4083
    %4135 = vmatmul.f32.gmra.mxu0 %v4097
    %v4136 = vpop.f32.mrf.mxu0
    %v4137 = vadd.f32 %v4094, %v4136
    %4138 = vdwg.mxu0
    %v4139 = vstv %s66
    %v4140 = vmul.f32 %v4139, %v94
    %v4141 = vadd.f32 %v4140, %v4117
    %4142 = vst [vmem:[#allocation10] sm:$0x1] %v4141
    %4143 = vst [vmem:[#allocation11 - $0x1] sm:$0x2] %v4117
    %v4145 = vrot.slane %v4137, 7
    %v4147 = vadd.f32 %v4140, %v4145
    %4148 = vst [vmem:[#allocation10] sm:$0x2] %v4147
    %4149 = vst [vmem:[#allocation11] sm:$0x2] %v4137
    // Predicated region
    $region46: #{tpu_custom_call.1} parent=1 // pred_check
      _
    $region47: #{tpu_custom_call.1} parent=1 // pred_check_branch
      %4151 = sbr.rel (0) target = $region49
    $region48: #{tpu_custom_call.1} parent=1 // pred_region
      %4153 = vsyncadd [#allocation7], 0
      %s4155 = sshll.u32 [#allocation10], 4
      %s4156 = int_to_ptr.vmem [resolvable:$true] %s4155
      %s4157 = sshll.u32 %s9, 4
      %s4158 = int_to_ptr.hbm [resolvable:$true] %s4157
      %4160 = dma.vmem_to_hbm [thread:$0]  %s4156, 32, %s4158, [#allocation7]
    $region49: #{tpu_custom_call.1} parent=1 // pred_fallthru
      _
    // Predicated region
    $region50: #{tpu_custom_call.1} parent=1 // pred_check
      _
    $region51: #{tpu_custom_call.1} parent=1 // pred_check_branch
      %4162 = sbr.rel (0) target = $region53
    $region52: #{tpu_custom_call.1} parent=1 // pred_region
      %4164 = vsyncadd [#allocation12], 0
      %s4166 = sshll.u32 [#allocation11], 4
      %s4167 = int_to_ptr.vmem [resolvable:$true] %s4166
      %s4168 = sshll.u32 %s10, 4
      %s4169 = int_to_ptr.hbm [resolvable:$true] %s4168
      %4171 = dma.vmem_to_hbm [thread:$0]  %s4167, 32, %s4169, [#allocation12]
    $region53: #{tpu_custom_call.1} parent=1 // pred_fallthru
      _
    // Predicated region
    $region54: #{tpu_custom_call.1} parent=1 // pred_check
      _
    $region55: #{tpu_custom_call.1} parent=1 // pred_check_branch
      %4173 = sbr.rel (0) target = $region57
    $region56: #{tpu_custom_call.1} parent=1 // pred_region
      %4175 = dma.done [#allocation7], 32
    $region57: #{tpu_custom_call.1} parent=1 // pred_fallthru
      _
    // Predicated region
    $region58: #{tpu_custom_call.1} parent=1 // pred_check
      _
    $region59: #{tpu_custom_call.1} parent=1 // pred_check_branch
      %4177 = sbr.rel (0) target = $region61
    $region60: #{tpu_custom_call.1} parent=1 // pred_region
      %4179 = dma.done [#allocation12], 32
    $region61: #{tpu_custom_call.1} parent=1 // pred_fallthru
      _
    %4180 = vsyncpa [#allocation6], 1
    %4181 = vsyncpa [#allocation7], 1
    %4182 = vsyncpa [#allocation12], 1
    %4183 = vsyncpa [#allocation8], 1

</llo_original>
